<compile_context>
chip_gen: v6e
topology: v6e:2x2x1
jax: 0.10.0
libtpu: 0.0.40
codegen_flags: <defaults>
</compile_context>

<pallas_src>
import functools

import jax
import jax.numpy as jnp
from jax import lax
from jax.experimental import pallas as pl
from jax.experimental.pallas import tpu as pltpu


def _fused_kernel(x_ref, w_ref, gamma_ref, beta_ref, res_ref, o_ref, *, eps, inv_m):
    # x_ref:      (Cin, M)    full, replicated across grid steps (one DMA)
    # w_ref:      (tm, Cin)   Cout tile of the 1x1-conv weight
    # gamma/beta: (tm, 1)
    # res_ref:    (tm, M)
    # o_ref:      (tm, M)
    y = jnp.dot(w_ref[...], x_ref[...], preferred_element_type=jnp.float32)  # (tm, M)

    # BatchNorm (training mode): biased batch statistics per output channel
    # (= per row).  Two-pass variance for robustness; the centered values are
    # consumed only by the reduction (not kept for the epilogue).
    mean = jnp.sum(y, axis=1, keepdims=True) * inv_m                 # (tm, 1)
    var = jnp.sum((y - mean) * (y - mean), axis=1, keepdims=True) * inv_m

    scale = lax.rsqrt(var + eps) * gamma_ref[...]                    # (tm, 1)
    shift = beta_ref[...] - mean * scale                             # (tm, 1)

    # Per-element epilogue: mul + add + add.
    o_ref[...] = (y * scale + shift + res_ref[...]).astype(o_ref.dtype)


def conv_bn_add(x_nchw, w_oihw, gamma, beta, res_nchw, *, eps=1e-5, tm=256):
    """1x1 conv (no bias) + BatchNorm2d (batch stats) + residual add.

    x_nchw:   (N, Cin, H, W)
    w_oihw:   (Cout, Cin, 1, 1)
    gamma:    (Cout,)
    beta:     (Cout,)
    res_nchw: (N, Cout, H, W)
    returns:  (N, Cout, H, W)
    """
    N, Cin, H, W = x_nchw.shape
    Cout = w_oihw.shape[0]
    M = N * H * W

    if Cout % tm != 0:
        tm = Cout  # fall back to a single Cout tile

    # Channel-major flat layout.  For N == 1 the transpose is over a size-1
    # axis, so these are free reshapes (no HBM traffic).
    x2d = jnp.transpose(x_nchw.reshape(N, Cin, H * W), (1, 0, 2)).reshape(Cin, M)
    res2d = jnp.transpose(res_nchw.reshape(N, Cout, H * W), (1, 0, 2)).reshape(Cout, M)
    w2d = w_oihw.reshape(Cout, Cin)
    gamma2d = gamma.reshape(Cout, 1)
    beta2d = beta.reshape(Cout, 1)

    kernel = functools.partial(_fused_kernel, eps=eps, inv_m=1.0 / M)

    bytes_per = jnp.dtype(x_nchw.dtype).itemsize
    cost = pl.CostEstimate(
        flops=2 * Cout * Cin * M,
        bytes_accessed=(Cin * M + Cout * Cin + 2 * Cout * M + 2 * Cout) * bytes_per,
        transcendentals=0,
    )

    out2d = pl.pallas_call(
        kernel,
        out_shape=jax.ShapeDtypeStruct((Cout, M), x_nchw.dtype),
        grid_spec=pltpu.PrefetchScalarGridSpec(
            num_scalar_prefetch=0,
            grid=(Cout // tm,),
            in_specs=[
                pl.BlockSpec((Cin, M), lambda j: (0, 0)),   # x (constant index -> one DMA)
                pl.BlockSpec((tm, Cin), lambda j: (j, 0)),  # weight tile
                pl.BlockSpec((tm, 1), lambda j: (j, 0)),    # gamma tile
                pl.BlockSpec((tm, 1), lambda j: (j, 0)),    # beta tile
                pl.BlockSpec((tm, M), lambda j: (j, 0)),    # residual tile
            ],
            out_specs=pl.BlockSpec((tm, M), lambda j: (j, 0)),
        ),
        compiler_params=pltpu.CompilerParams(
            dimension_semantics=("parallel",),
            vmem_limit_bytes=32 * 1024 * 1024,
        ),
        cost_estimate=cost,
    )(x2d, w2d, gamma2d, beta2d, res2d)

    # (Cout, M) -> NCHW.  Free for N == 1.
    return jnp.transpose(out2d.reshape(Cout, N, H, W), (1, 0, 2, 3))


if __name__ == "__main__":
    # Module's actual (small) shapes: Conv2d(256 -> 1024, 1x1) at 28x28.
    N, Cin, Cout, Hh, Ww = 1, 256, 1024, 28, 28
    eps = 1e-5

    key = jax.random.PRNGKey(0)
    k1, k2, k3, k4, k5 = jax.random.split(key, 5)

    x168 = jax.random.normal(k1, (N, Cin, Hh, Ww), dtype=jnp.float32)
    x162 = jax.random.normal(k2, (N, Cout, Hh, Ww), dtype=jnp.float32)
    w = jax.random.normal(k3, (Cout, Cin, 1, 1), dtype=jnp.float32) * 0.05
    gamma = jax.random.normal(k4, (Cout,), dtype=jnp.float32) * 0.1 + 1.0
    beta = jax.random.normal(k5, (Cout,), dtype=jnp.float32) * 0.1

    out = conv_bn_add(x168, w, gamma, beta, x162, eps=eps)
    out = jax.block_until_ready(out)

    # Pure-JAX reference (training-mode BN with batch statistics).
    y = jnp.einsum("nchw,oc->nohw", x168, w.reshape(Cout, Cin))
    mu = jnp.mean(y, axis=(0, 2, 3), keepdims=True)
    var = jnp.mean((y - mu) ** 2, axis=(0, 2, 3), keepdims=True)
    yn = (y - mu) / jnp.sqrt(var + eps) * gamma.reshape(1, Cout, 1, 1) \
         + beta.reshape(1, Cout, 1, 1)
    ref = yn + x162

    assert out.shape == (N, Cout, Hh, Ww)
    assert jnp.allclose(out, ref, atol=1e-4, rtol=1e-4), \
        float(jnp.max(jnp.abs(out - ref)))

    print("KERNEL_OK")
</pallas_src>

<mosaic_0001>
module attributes {stable_mosaic.version = 11 : i64} {
  func.func @_fused_kernel(%arg0: i32, %arg1: memref<256x784xf32, #tpu.memory_space<vmem>>, %arg2: memref<256x256xf32, #tpu.memory_space<vmem>>, %arg3: memref<256x1xf32, #tpu.memory_space<vmem>>, %arg4: memref<256x1xf32, #tpu.memory_space<vmem>>, %arg5: memref<256x784xf32, #tpu.memory_space<vmem>>, %arg6: memref<256x784xf32, #tpu.memory_space<vmem>>) attributes {dimension_semantics = [#tpu.dimension_semantics<parallel>], iteration_bounds = array<i64: 4>, scalar_prefetch = 0 : i64, scratch_operands = 0 : i64, tpu.core_type = #tpu.core_type<tc>, window_params = [{pipeline_mode = #tpu.pipeline_mode<synchronous>, transform_indices = @transform_0, window_bounds = array<i64: 256, 784>}, {transform_indices = @transform_1, window_bounds = array<i64: 256, 256>}, {transform_indices = @transform_2, window_bounds = array<i64: 256, 1>}, {transform_indices = @transform_3, window_bounds = array<i64: 256, 1>}, {transform_indices = @transform_4, window_bounds = array<i64: 256, 784>}, {transform_indices = @transform_5, window_bounds = array<i64: 256, 784>}]} {
    %c0 = arith.constant 0 : index
    %c0_0 = arith.constant 0 : index
    %0 = vector.load %arg2[%c0, %c0_0] : memref<256x256xf32, #tpu.memory_space<vmem>>, vector<256x256xf32>
    %c0_1 = arith.constant 0 : index
    %c0_2 = arith.constant 0 : index
    %1 = vector.load %arg1[%c0_1, %c0_2] : memref<256x784xf32, #tpu.memory_space<vmem>>, vector<256x784xf32>
    %cst = arith.constant dense<0.000000e+00> : vector<256x784xf32>
    %2 = tpu.matmul %0, %1, %cst {dimension_numbers = #tpu.dot_dimension_numbers<[1], [0], [0], [1], [0, 0, 1, 1], [], []>} : vector<256x256xf32>, vector<256x784xf32>, vector<256x784xf32> -> vector<256x784xf32>
    %cst_3 = arith.constant dense<0.000000e+00> : vector<256xf32>
    %3 = vector.multi_reduction <add>, %2, %cst_3 [1] : vector<256x784xf32> to vector<256xf32>
    %4 = vector.shape_cast %3 : vector<256xf32> to vector<256x1xf32>
    %cst_4 = arith.constant 0.00127551018 : f32
    %5 = vector.broadcast %cst_4 : f32 to vector<256x1xf32>
    %6 = arith.mulf %4, %5 : vector<256x1xf32>
    %7 = vector.broadcast %6 : vector<256x1xf32> to vector<256x784xf32>
    %8 = arith.subf %2, %7 : vector<256x784xf32>
    %9 = vector.broadcast %6 : vector<256x1xf32> to vector<256x784xf32>
    %10 = arith.subf %2, %9 : vector<256x784xf32>
    %11 = arith.mulf %8, %10 : vector<256x784xf32>
    %cst_5 = arith.constant dense<0.000000e+00> : vector<256xf32>
    %12 = vector.multi_reduction <add>, %11, %cst_5 [1] : vector<256x784xf32> to vector<256xf32>
    %13 = vector.shape_cast %12 : vector<256xf32> to vector<256x1xf32>
    %cst_6 = arith.constant 0.00127551018 : f32
    %14 = vector.broadcast %cst_6 : f32 to vector<256x1xf32>
    %15 = arith.mulf %13, %14 : vector<256x1xf32>
    %cst_7 = arith.constant 9.99999974E-6 : f32
    %16 = vector.broadcast %cst_7 : f32 to vector<256x1xf32>
    %17 = arith.addf %15, %16 : vector<256x1xf32>
    %18 = math.rsqrt %17 : vector<256x1xf32>
    %c0_8 = arith.constant 0 : index
    %c0_9 = arith.constant 0 : index
    %19 = vector.load %arg3[%c0_8, %c0_9] : memref<256x1xf32, #tpu.memory_space<vmem>>, vector<256x1xf32>
    %20 = arith.mulf %18, %19 : vector<256x1xf32>
    %c0_10 = arith.constant 0 : index
    %c0_11 = arith.constant 0 : index
    %21 = vector.load %arg4[%c0_10, %c0_11] : memref<256x1xf32, #tpu.memory_space<vmem>>, vector<256x1xf32>
    %22 = arith.mulf %6, %20 : vector<256x1xf32>
    %23 = arith.subf %21, %22 : vector<256x1xf32>
    %24 = vector.broadcast %20 : vector<256x1xf32> to vector<256x784xf32>
    %25 = arith.mulf %2, %24 : vector<256x784xf32>
    %26 = vector.broadcast %23 : vector<256x1xf32> to vector<256x784xf32>
    %27 = arith.addf %25, %26 : vector<256x784xf32>
    %c0_12 = arith.constant 0 : index
    %c0_13 = arith.constant 0 : index
    %28 = vector.load %arg5[%c0_12, %c0_13] : memref<256x784xf32, #tpu.memory_space<vmem>>, vector<256x784xf32>
    %29 = arith.addf %27, %28 : vector<256x784xf32>
    %c0_14 = arith.constant 0 : index
    %c0_15 = arith.constant 0 : index
    %30 = vector.load %arg6[%c0_14, %c0_15] : memref<256x784xf32, #tpu.memory_space<vmem>>, vector<256x784xf32>
    tpu.vector_store %arg6[%c0_14, %c0_15], %29 {strides = array<i32>} : memref<256x784xf32, #tpu.memory_space<vmem>>, vector<256x784xf32>,
    return
  }
  func.func @transform_0(%arg0: i32) -> (i32, i32) {
    %c0_i32 = arith.constant 0 : i32
    %c0_i32_0 = arith.constant 0 : i32
    %c0_i32_1 = arith.constant 0 : i32
    return %c0_i32, %c0_i32_0 : i32, i32
  }
  func.func @transform_1(%arg0: i32) -> (i32, i32) {
    %c0_i32 = arith.constant 0 : i32
    %c0_i32_0 = arith.constant 0 : i32
    return %arg0, %c0_i32 : i32, i32
  }
  func.func @transform_2(%arg0: i32) -> (i32, i32) {
    %c0_i32 = arith.constant 0 : i32
    %c0_i32_0 = arith.constant 0 : i32
    return %arg0, %c0_i32 : i32, i32
  }
  func.func @transform_3(%arg0: i32) -> (i32, i32) {
    %c0_i32 = arith.constant 0 : i32
    %c0_i32_0 = arith.constant 0 : i32
    return %arg0, %c0_i32 : i32, i32
  }
  func.func @transform_4(%arg0: i32) -> (i32, i32) {
    %c0_i32 = arith.constant 0 : i32
    %c0_i32_0 = arith.constant 0 : i32
    return %arg0, %c0_i32 : i32, i32
  }
  func.func @transform_5(%arg0: i32) -> (i32, i32) {
    %c0_i32 = arith.constant 0 : i32
    %c0_i32_0 = arith.constant 0 : i32
    return %arg0, %c0_i32 : i32, i32
  }
}

</mosaic_0001>

<llo_original>
// kernel: tpu_custom_call.1
$region0: #{tpu_custom_call.1}
  #allocation0 [shape = 'u32[]', space=smem, size = 0x4, offset = 0x4, fixed_abs, tag = 'smem constant byte address 0x4 - core index']
  #allocation1 [shape = 'u32[144,128]{1,0:T(1,128)}', space=vmem, size = 0x12000, scoped, tag = 'internal scratch']
  %s0 = inlined_call_operand.vmem [shape: f32[256,784], index: 0, kind: input, shape index: {}]
  %s1 = inlined_call_operand.vmem [shape: f32[1024,256], index: 1, kind: input, shape index: {}]
  %s2 = inlined_call_operand.vmem [shape: f32[1024,1], index: 2, kind: input, shape index: {}]
  %s3 = inlined_call_operand.vmem [shape: f32[1024,1], index: 3, kind: input, shape index: {}]
  %s4 = inlined_call_operand.vmem [shape: f32[1024,784], index: 4, kind: input, shape index: {}]
  %s5 = inlined_call_operand.vmem [shape: f32[1024,784], index: 5, kind: output, shape index: {}]
  %s6 = sld [smem:[#allocation0]]
  $region53: #{tpu_custom_call.1} parent=0
    _
  %s8 = ssub.s32 1, %s6
  %s9 = scalar_select 0, %s8, %s6
  loop: start=0, step=1, limit=6
  $region2: #{tpu_custom_call.1} parent=0 // loop_pre_header
    _
  $region3: #{tpu_custom_call.1} parent=0 // loop_header
    %s11 = sphi 0, %s15
    %p12 = scmp.ge.s32.totalorder %s11, 6
    %s19 = sphi 0, %s19
    %s21 = sphi 0, %s19
    %s22 = sphi 0, %s21
    %s36 = sphi 0, %s22
    %s42 = sphi 0, %s44
    %s45 = sphi 0, %s42
    %s46 = sphi 0, %s45
    %s62 = sphi 0, %s46
    %s68 = sphi 0, %s70
    %s71 = sphi 0, %s68
    %s72 = sphi 0, %s71
    %s88 = sphi 0, %s72
    %s94 = sphi 0, %s96
    %s97 = sphi 0, %s94
    %s98 = sphi 0, %s97
    %s114 = sphi 0, %s98
    %s120 = sphi 0, %s122
    %s123 = sphi 0, %s120
    %s124 = sphi 0, %s123
    %s140 = sphi 0, %s124
    %s146 = sphi 0, %s148
    %s149 = sphi 0, %s146
    %s150 = sphi 0, %s149
    %s166 = sphi 0, %s150
  $region4: #{tpu_custom_call.1} parent=0 // loop_header_branch
    %14 = sbr.rel (%p12) target = $region8
  $region5: #{tpu_custom_call.1} parent=0 // loop_body
    %s16 = ssub.s32 %s11, 1
    %s17 = ssub.s32 %s11, 2
    %s18 = sadd.s32 %s11, 1
    %s20 = sadd.s32 %s19, 1
    %p23 = scmp.eq.s32.totalorder %s11, 3
    %p24 = scmp.ne.s32.totalorder %s19, %s21
    %p25 = scmp.eq.s32.totalorder %s11, 0
    %p26 = por %p24, %p25
    %p27 = scmp.ne.s32.totalorder %s19, %s21
    %p28 = scmp.eq.s32.totalorder %s16, 3
    %p29 = por %p27, %p28
    %p30 = scmp.ne.s32.totalorder %s21, %s22
    %p31 = scmp.eq.s32.totalorder %s16, 0
    %p32 = por %p30, %p31
    %p33 = scmp.ne.s32.totalorder %s21, %s22
    %p34 = scmp.eq.s32.totalorder %s17, 3
    %p35 = por %p33, %p34
    %p37 = scmp.ne.s32.totalorder %s22, %s36
    %p38 = scmp.eq.s32.totalorder %s17, 0
    %p39 = por %p37, %p38
    %s40 = ssub.s32 %s11, %s18
    %p41 = scmp.eq.s32.totalorder %s40, 0
    %s43 = sadd.s32 %s42, 1
    %s44 = scalar_select %p41, %s42, %s43
    %p47 = pneg %p41
    %p48 = scmp.eq.s32.totalorder %s11, 3
    %p49 = por %p47, %p48
    %p50 = scmp.ne.s32.totalorder %s42, %s45
    %p51 = scmp.eq.s32.totalorder %s11, 0
    %p52 = por %p50, %p51
    %p53 = scmp.ne.s32.totalorder %s42, %s45
    %p54 = scmp.eq.s32.totalorder %s16, 3
    %p55 = por %p53, %p54
    %p56 = scmp.ne.s32.totalorder %s45, %s46
    %p57 = scmp.eq.s32.totalorder %s16, 0
    %p58 = por %p56, %p57
    %p59 = scmp.ne.s32.totalorder %s45, %s46
    %p60 = scmp.eq.s32.totalorder %s17, 3
    %p61 = por %p59, %p60
    %p63 = scmp.ne.s32.totalorder %s46, %s62
    %p64 = scmp.eq.s32.totalorder %s17, 0
    %p65 = por %p63, %p64
    %s66 = ssub.s32 %s11, %s18
    %p67 = scmp.eq.s32.totalorder %s66, 0
    %s69 = sadd.s32 %s68, 1
    %s70 = scalar_select %p67, %s68, %s69
    %p73 = pneg %p67
    %p74 = scmp.eq.s32.totalorder %s11, 3
    %p75 = por %p73, %p74
    %p76 = scmp.ne.s32.totalorder %s68, %s71
    %p77 = scmp.eq.s32.totalorder %s11, 0
    %p78 = por %p76, %p77
    %p79 = scmp.ne.s32.totalorder %s68, %s71
    %p80 = scmp.eq.s32.totalorder %s16, 3
    %p81 = por %p79, %p80
    %p82 = scmp.ne.s32.totalorder %s71, %s72
    %p83 = scmp.eq.s32.totalorder %s16, 0
    %p84 = por %p82, %p83
    %p85 = scmp.ne.s32.totalorder %s71, %s72
    %p86 = scmp.eq.s32.totalorder %s17, 3
    %p87 = por %p85, %p86
    %p89 = scmp.ne.s32.totalorder %s72, %s88
    %p90 = scmp.eq.s32.totalorder %s17, 0
    %p91 = por %p89, %p90
    %s92 = ssub.s32 %s11, %s18
    %p93 = scmp.eq.s32.totalorder %s92, 0
    %s95 = sadd.s32 %s94, 1
    %s96 = scalar_select %p93, %s94, %s95
    %p99 = pneg %p93
    %p100 = scmp.eq.s32.totalorder %s11, 3
    %p101 = por %p99, %p100
    %p102 = scmp.ne.s32.totalorder %s94, %s97
    %p103 = scmp.eq.s32.totalorder %s11, 0
    %p104 = por %p102, %p103
    %p105 = scmp.ne.s32.totalorder %s94, %s97
    %p106 = scmp.eq.s32.totalorder %s16, 3
    %p107 = por %p105, %p106
    %p108 = scmp.ne.s32.totalorder %s97, %s98
    %p109 = scmp.eq.s32.totalorder %s16, 0
    %p110 = por %p108, %p109
    %p111 = scmp.ne.s32.totalorder %s97, %s98
    %p112 = scmp.eq.s32.totalorder %s17, 3
    %p113 = por %p111, %p112
    %p115 = scmp.ne.s32.totalorder %s98, %s114
    %p116 = scmp.eq.s32.totalorder %s17, 0
    %p117 = por %p115, %p116
    %s118 = ssub.s32 %s11, %s18
    %p119 = scmp.eq.s32.totalorder %s118, 0
    %s121 = sadd.s32 %s120, 1
    %s122 = scalar_select %p119, %s120, %s121
    %p125 = pneg %p119
    %p126 = scmp.eq.s32.totalorder %s11, 3
    %p127 = por %p125, %p126
    %p128 = scmp.ne.s32.totalorder %s120, %s123
    %p129 = scmp.eq.s32.totalorder %s11, 0
    %p130 = por %p128, %p129
    %p131 = scmp.ne.s32.totalorder %s120, %s123
    %p132 = scmp.eq.s32.totalorder %s16, 3
    %p133 = por %p131, %p132
    %p134 = scmp.ne.s32.totalorder %s123, %s124
    %p135 = scmp.eq.s32.totalorder %s16, 0
    %p136 = por %p134, %p135
    %p137 = scmp.ne.s32.totalorder %s123, %s124
    %p138 = scmp.eq.s32.totalorder %s17, 3
    %p139 = por %p137, %p138
    %p141 = scmp.ne.s32.totalorder %s124, %s140
    %p142 = scmp.eq.s32.totalorder %s17, 0
    %p143 = por %p141, %p142
    %s144 = ssub.s32 %s11, %s18
    %p145 = scmp.eq.s32.totalorder %s144, 0
    %s147 = sadd.s32 %s146, 1
    %s148 = scalar_select %p145, %s146, %s147
    %p151 = pneg %p145
    %p152 = scmp.eq.s32.totalorder %s11, 3
    %p153 = por %p151, %p152
    %p154 = scmp.ne.s32.totalorder %s146, %s149
    %p155 = scmp.eq.s32.totalorder %s11, 0
    %p156 = por %p154, %p155
    %p157 = scmp.ne.s32.totalorder %s146, %s149
    %p158 = scmp.eq.s32.totalorder %s16, 3
    %p159 = por %p157, %p158
    %p160 = scmp.ne.s32.totalorder %s149, %s150
    %p161 = scmp.eq.s32.totalorder %s16, 0
    %p162 = por %p160, %p161
    %p163 = scmp.ne.s32.totalorder %s149, %s150
    %p164 = scmp.eq.s32.totalorder %s17, 3
    %p165 = por %p163, %p164
    %p167 = scmp.ne.s32.totalorder %s150, %s166
    %p168 = scmp.eq.s32.totalorder %s17, 0
    %p169 = por %p167, %p168
    %p170 = scmp.le.s32.totalorder 1, %s11
    %p171 = scmp.lt.s32.totalorder %s11, 5
    %p172 = pnand %p170, %p171
    %p173 = pneg %p172
    // Predicated region
    $region9: #{tpu_custom_call.1} parent=5 // pred_check
      _
    $region10: #{tpu_custom_call.1} parent=5 // pred_check_branch
      %175 = sbr.rel (%p172) target = $region12
    $region11: #{tpu_custom_call.1} parent=5 // pred_region
      %s176 = ssub.s32 %s11, 1
      // Predicated region
      $region13: #{tpu_custom_call.1} parent=11 // pred_check
        %p177 = pneg %p32
      $region14: #{tpu_custom_call.1} parent=11 // pred_check_branch
        %179 = sbr.rel (%p177) target = $region16
      $region15: #{tpu_custom_call.1} parent=11 // pred_region
        _
      $region16: #{tpu_custom_call.1} parent=11 // pred_fallthru
        _
    $region12: #{tpu_custom_call.1} parent=5 // pred_fallthru
      _
    %p180 = scmp.lt.s32.totalorder %s11, 4
    // Predicated region
    $region17: #{tpu_custom_call.1} parent=5 // pred_check
      %p181 = pneg %p180
    $region18: #{tpu_custom_call.1} parent=5 // pred_check_branch
      %183 = sbr.rel (%p181) target = $region20
    $region19: #{tpu_custom_call.1} parent=5 // pred_region
      // Predicated region
      $region21: #{tpu_custom_call.1} parent=19 // pred_check
        %p184 = pneg %p52
      $region22: #{tpu_custom_call.1} parent=19 // pred_check_branch
        %186 = sbr.rel (%p184) target = $region24
      $region23: #{tpu_custom_call.1} parent=19 // pred_region
        %s187 = smul.u32 32, %s11
        %p188 = scmp.lt.s32.totalorder %s187, 127
        %s189 = scalar_select %p188, %s187, 127
        %s190 = smul.addr %s189, 2
        %s191 = smul.addr %s190, 8
        %s192 = scalar_lea.vmem %s1, %s191
        %s193 = smul.u32 32, %s11
      $region24: #{tpu_custom_call.1} parent=19 // pred_fallthru
        _
      // Predicated region
      $region25: #{tpu_custom_call.1} parent=19 // pred_check
        %p194 = pneg %p78
      $region26: #{tpu_custom_call.1} parent=19 // pred_check_branch
        %196 = sbr.rel (%p194) target = $region28
      $region27: #{tpu_custom_call.1} parent=19 // pred_region
        %s197 = smul.u32 32, %s11
        %p198 = scmp.lt.s32.totalorder %s197, 127
        %s199 = scalar_select %p198, %s197, 127
        %s200 = smul.addr %s199, 8
        %s201 = scalar_lea.vmem %s2, %s200
        %s202 = smul.u32 32, %s11
      $region28: #{tpu_custom_call.1} parent=19 // pred_fallthru
        _
      // Predicated region
      $region29: #{tpu_custom_call.1} parent=19 // pred_check
        %p203 = pneg %p104
      $region30: #{tpu_custom_call.1} parent=19 // pred_check_branch
        %205 = sbr.rel (%p203) target = $region32
      $region31: #{tpu_custom_call.1} parent=19 // pred_region
        %s206 = smul.u32 32, %s11
        %p207 = scmp.lt.s32.totalorder %s206, 127
        %s208 = scalar_select %p207, %s206, 127
        %s209 = smul.addr %s208, 8
        %s210 = scalar_lea.vmem %s3, %s209
        %s211 = smul.u32 32, %s11
      $region32: #{tpu_custom_call.1} parent=19 // pred_fallthru
        _
      // Predicated region
      $region33: #{tpu_custom_call.1} parent=19 // pred_check
        %p212 = pneg %p130
      $region34: #{tpu_custom_call.1} parent=19 // pred_check_branch
        %214 = sbr.rel (%p212) target = $region36
      $region35: #{tpu_custom_call.1} parent=19 // pred_region
        %s215 = smul.u32 32, %s11
        %p216 = scmp.lt.s32.totalorder %s215, 127
        %s217 = scalar_select %p216, %s215, 127
        %s218 = smul.addr %s217, 7
        %s219 = smul.addr %s218, 8
        %s220 = scalar_lea.vmem %s4, %s219
        %s221 = smul.u32 32, %s11
      $region36: #{tpu_custom_call.1} parent=19 // pred_fallthru
        _
    $region20: #{tpu_custom_call.1} parent=5 // pred_fallthru
      _
    %p222 = scmp.le.s32.totalorder 1, %s11
    %p223 = scmp.lt.s32.totalorder %s11, 5
    %p224 = pnand %p222, %p223
    %p225 = pneg %p224
    // Predicated region
    $region37: #{tpu_custom_call.1} parent=5 // pred_check
      _
    $region38: #{tpu_custom_call.1} parent=5 // pred_check_branch
      %227 = sbr.rel (%p224) target = $region40
    $region39: #{tpu_custom_call.1} parent=5 // pred_region
      %s228 = ssub.s32 %s11, 1
      %p229 = pneg %p32
      %p230 = pneg %p29
      %s231 = smul.u32 32, %s16
      %p232 = scmp.lt.s32.totalorder %s231, 127
      %s233 = scalar_select %p232, %s231, 127
      %s234 = smul.addr %s233, 2
      %s235 = smul.addr %s234, 8
      %s236 = scalar_lea.vmem %s1, %s235
      %p237 = pneg %p58
      %p238 = pneg %p55
      %s239 = smul.u32 32, %s16
      %p240 = scmp.lt.s32.totalorder %s239, 127
      %s241 = scalar_select %p240, %s239, 127
      %s242 = smul.addr %s241, 8
      %s243 = scalar_lea.vmem %s2, %s242
      %p244 = pneg %p84
      %p245 = pneg %p81
      %s246 = smul.u32 32, %s16
      %p247 = scmp.lt.s32.totalorder %s246, 127
      %s248 = scalar_select %p247, %s246, 127
      %s249 = smul.addr %s248, 8
      %s250 = scalar_lea.vmem %s3, %s249
      %p251 = pneg %p110
      %p252 = pneg %p107
      %s253 = smul.u32 32, %s16
      %p254 = scmp.lt.s32.totalorder %s253, 127
      %s255 = scalar_select %p254, %s253, 127
      %s256 = smul.addr %s255, 7
      %s257 = smul.addr %s256, 8
      %s258 = scalar_lea.vmem %s4, %s257
      %p259 = pneg %p136
      %p260 = pneg %p133
      %p261 = pneg %p162
      %p262 = pneg %p159
      %s263 = smul.u32 32, %s16
      %p264 = scmp.lt.s32.totalorder %s263, 127
      %s265 = scalar_select %p264, %s263, 127
      %s266 = smul.addr %s265, 7
      %s267 = smul.addr %s266, 8
      %s268 = scalar_lea.vmem %s5, %s267
      %s269 = smul.u32 32, %s16
      %p270 = scmp.lt.s32.totalorder %s269, 127
      %s271 = scalar_select %p270, %s269, 127
      %s272 = smul.addr %s271, 2
      %s273 = smul.addr %s272, 8
      %s274 = scalar_lea.vmem %s1, %s273
      %s275 = smul.u32 32, %s16
      %s276 = smul.u32 32, %s16
      %p277 = scmp.lt.s32.totalorder %s276, 127
      %s278 = scalar_select %p277, %s276, 127
      %s279 = smul.addr %s278, 8
      %s280 = scalar_lea.vmem %s2, %s279
      %s281 = smul.u32 32, %s16
      %s282 = smul.u32 32, %s16
      %p283 = scmp.lt.s32.totalorder %s282, 127
      %s284 = scalar_select %p283, %s282, 127
      %s285 = smul.addr %s284, 8
      %s286 = scalar_lea.vmem %s3, %s285
      %s287 = smul.u32 32, %s16
      %s288 = smul.u32 32, %s16
      %p289 = scmp.lt.s32.totalorder %s288, 127
      %s290 = scalar_select %p289, %s288, 127
      %s291 = smul.addr %s290, 7
      %s292 = smul.addr %s291, 8
      %s293 = scalar_lea.vmem %s4, %s292
      %s294 = smul.u32 32, %s16
      %s295 = smul.u32 32, %s16
      %p296 = scmp.lt.s32.totalorder %s295, 127
      %s297 = scalar_select %p296, %s295, 127
      %s298 = smul.addr %s297, 7
      %s299 = smul.addr %s298, 8
      %s300 = scalar_lea.vmem %s5, %s299
      %s301 = smul.u32 32, %s16
      %v302 = vld [vmem:[%s274] sm:$0xff]
      %v303 = vld [vmem:[%s274 + $0x8] sm:$0xff]
      %v304 = vld [vmem:[%s274 + $0x10] sm:$0xff]
      %v305 = vld [vmem:[%s274 + $0x18] sm:$0xff]
      %v306 = vld [vmem:[%s274 + $0x20] sm:$0xff]
      %v307 = vld [vmem:[%s274 + $0x28] sm:$0xff]
      %v308 = vld [vmem:[%s274 + $0x30] sm:$0xff]
      %v309 = vld [vmem:[%s274 + $0x38] sm:$0xff]
      %v310 = vld [vmem:[%s274 + $0x40] sm:$0xff]
      %v311 = vld [vmem:[%s274 + $0x48] sm:$0xff]
      %v312 = vld [vmem:[%s274 + $0x50] sm:$0xff]
      %v313 = vld [vmem:[%s274 + $0x58] sm:$0xff]
      %v314 = vld [vmem:[%s274 + $0x60] sm:$0xff]
      %v315 = vld [vmem:[%s274 + $0x68] sm:$0xff]
      %v316 = vld [vmem:[%s274 + $0x70] sm:$0xff]
      %v317 = vld [vmem:[%s274 + $0x78] sm:$0xff]
      %v318 = vld [vmem:[%s274 + $0x80] sm:$0xff]
      %v319 = vld [vmem:[%s274 + $0x88] sm:$0xff]
      %v320 = vld [vmem:[%s274 + $0x90] sm:$0xff]
      %v321 = vld [vmem:[%s274 + $0x98] sm:$0xff]
      %v322 = vld [vmem:[%s274 + $0xa0] sm:$0xff]
      %v323 = vld [vmem:[%s274 + $0xa8] sm:$0xff]
      %v324 = vld [vmem:[%s274 + $0xb0] sm:$0xff]
      %v325 = vld [vmem:[%s274 + $0xb8] sm:$0xff]
      %v326 = vld [vmem:[%s274 + $0xc0] sm:$0xff]
      %v327 = vld [vmem:[%s274 + $0xc8] sm:$0xff]
      %v328 = vld [vmem:[%s274 + $0xd0] sm:$0xff]
      %v329 = vld [vmem:[%s274 + $0xd8] sm:$0xff]
      %v330 = vld [vmem:[%s274 + $0xe0] sm:$0xff]
      %v331 = vld [vmem:[%s274 + $0xe8] sm:$0xff]
      %v332 = vld [vmem:[%s274 + $0xf0] sm:$0xff]
      %v333 = vld [vmem:[%s274 + $0xf8] sm:$0xff]
      %v334 = vld [vmem:[%s274 + $0x100] sm:$0xff]
      %v335 = vld [vmem:[%s274 + $0x108] sm:$0xff]
      %v336 = vld [vmem:[%s274 + $0x110] sm:$0xff]
      %v337 = vld [vmem:[%s274 + $0x118] sm:$0xff]
      %v338 = vld [vmem:[%s274 + $0x120] sm:$0xff]
      %v339 = vld [vmem:[%s274 + $0x128] sm:$0xff]
      %v340 = vld [vmem:[%s274 + $0x130] sm:$0xff]
      %v341 = vld [vmem:[%s274 + $0x138] sm:$0xff]
      %v342 = vld [vmem:[%s274 + $0x140] sm:$0xff]
      %v343 = vld [vmem:[%s274 + $0x148] sm:$0xff]
      %v344 = vld [vmem:[%s274 + $0x150] sm:$0xff]
      %v345 = vld [vmem:[%s274 + $0x158] sm:$0xff]
      %v346 = vld [vmem:[%s274 + $0x160] sm:$0xff]
      %v347 = vld [vmem:[%s274 + $0x168] sm:$0xff]
      %v348 = vld [vmem:[%s274 + $0x170] sm:$0xff]
      %v349 = vld [vmem:[%s274 + $0x178] sm:$0xff]
      %v350 = vld [vmem:[%s274 + $0x180] sm:$0xff]
      %v351 = vld [vmem:[%s274 + $0x188] sm:$0xff]
      %v352 = vld [vmem:[%s274 + $0x190] sm:$0xff]
      %v353 = vld [vmem:[%s274 + $0x198] sm:$0xff]
      %v354 = vld [vmem:[%s274 + $0x1a0] sm:$0xff]
      %v355 = vld [vmem:[%s274 + $0x1a8] sm:$0xff]
      %v356 = vld [vmem:[%s274 + $0x1b0] sm:$0xff]
      %v357 = vld [vmem:[%s274 + $0x1b8] sm:$0xff]
      %v358 = vld [vmem:[%s274 + $0x1c0] sm:$0xff]
      %v359 = vld [vmem:[%s274 + $0x1c8] sm:$0xff]
      %v360 = vld [vmem:[%s274 + $0x1d0] sm:$0xff]
      %v361 = vld [vmem:[%s274 + $0x1d8] sm:$0xff]
      %v362 = vld [vmem:[%s274 + $0x1e0] sm:$0xff]
      %v363 = vld [vmem:[%s274 + $0x1e8] sm:$0xff]
      %v364 = vld [vmem:[%s274 + $0x1f0] sm:$0xff]
      %v365 = vld [vmem:[%s274 + $0x1f8] sm:$0xff]
      %v366 = vld [vmem:[%s0] sm:$0xff]
      %v367 = vld [vmem:[%s0 + $0x8] sm:$0xff]
      %v368 = vld [vmem:[%s0 + $0x10] sm:$0xff]
      %v369 = vld [vmem:[%s0 + $0x18] sm:$0xff]
      %v370 = vld [vmem:[%s0 + $0x20] sm:$0xff]
      %v371 = vld [vmem:[%s0 + $0x28] sm:$0xff]
      %v372 = vld [vmem:[%s0 + $0x30] sm:$0xff]
      %v373 = vld [vmem:[%s0 + $0x38] sm:$0xff]
      %v374 = vld [vmem:[%s0 + $0x40] sm:$0xff]
      %v375 = vld [vmem:[%s0 + $0x48] sm:$0xff]
      %v376 = vld [vmem:[%s0 + $0x50] sm:$0xff]
      %v377 = vld [vmem:[%s0 + $0x58] sm:$0xff]
      %v378 = vld [vmem:[%s0 + $0x60] sm:$0xff]
      %v379 = vld [vmem:[%s0 + $0x68] sm:$0xff]
      %v380 = vld [vmem:[%s0 + $0x70] sm:$0xff]
      %v381 = vld [vmem:[%s0 + $0x78] sm:$0xff]
      %v382 = vld [vmem:[%s0 + $0x80] sm:$0xff]
      %v383 = vld [vmem:[%s0 + $0x88] sm:$0xff]
      %v384 = vld [vmem:[%s0 + $0x90] sm:$0xff]
      %v385 = vld [vmem:[%s0 + $0x98] sm:$0xff]
      %v386 = vld [vmem:[%s0 + $0xa0] sm:$0xff]
      %v387 = vld [vmem:[%s0 + $0xa8] sm:$0xff]
      %v388 = vld [vmem:[%s0 + $0xb0] sm:$0xff]
      %v389 = vld [vmem:[%s0 + $0xb8] sm:$0xff]
      %v390 = vld [vmem:[%s0 + $0xc0] sm:$0xff]
      %v391 = vld [vmem:[%s0 + $0xc8] sm:$0xff]
      %v392 = vld [vmem:[%s0 + $0xd0] sm:$0xff]
      %v393 = vld [vmem:[%s0 + $0xd8] sm:$0xff]
      %v394 = vld [vmem:[%s0 + $0xe0] sm:$0xff]
      %v395 = vld [vmem:[%s0 + $0xe8] sm:$0xff]
      %v396 = vld [vmem:[%s0 + $0xf0] sm:$0xff]
      %v397 = vld [vmem:[%s0 + $0xf8] sm:$0xff]
      %v398 = vld [vmem:[%s0 + $0x100] sm:$0xff]
      %v399 = vld [vmem:[%s0 + $0x108] sm:$0xff]
      %v400 = vld [vmem:[%s0 + $0x110] sm:$0xff]
      %v401 = vld [vmem:[%s0 + $0x118] sm:$0xff]
      %v402 = vld [vmem:[%s0 + $0x120] sm:$0xff]
      %v403 = vld [vmem:[%s0 + $0x128] sm:$0xff]
      %v404 = vld [vmem:[%s0 + $0x130] sm:$0xff]
      %v405 = vld [vmem:[%s0 + $0x138] sm:$0xff]
      %v406 = vld [vmem:[%s0 + $0x140] sm:$0xff]
      %v407 = vld [vmem:[%s0 + $0x148] sm:$0xff]
      %v408 = vld [vmem:[%s0 + $0x150] sm:$0xff]
      %v409 = vld [vmem:[%s0 + $0x158] sm:$0xff]
      %v410 = vld [vmem:[%s0 + $0x160] sm:$0xff]
      %v411 = vld [vmem:[%s0 + $0x168] sm:$0xff]
      %v412 = vld [vmem:[%s0 + $0x170] sm:$0xff]
      %v413 = vld [vmem:[%s0 + $0x178] sm:$0xff]
      %v414 = vld [vmem:[%s0 + $0x180] sm:$0xff]
      %v415 = vld [vmem:[%s0 + $0x188] sm:$0xff]
      %v416 = vld [vmem:[%s0 + $0x190] sm:$0xff]
      %v417 = vld [vmem:[%s0 + $0x198] sm:$0xff]
      %v418 = vld [vmem:[%s0 + $0x1a0] sm:$0xff]
      %v419 = vld [vmem:[%s0 + $0x1a8] sm:$0xff]
      %v420 = vld [vmem:[%s0 + $0x1b0] sm:$0xff]
      %v421 = vld [vmem:[%s0 + $0x1b8] sm:$0xff]
      %v422 = vld [vmem:[%s0 + $0x1c0] sm:$0xff]
      %v423 = vld [vmem:[%s0 + $0x1c8] sm:$0xff]
      %v424 = vld [vmem:[%s0 + $0x1d0] sm:$0xff]
      %v425 = vld [vmem:[%s0 + $0x1d8] sm:$0xff]
      %v426 = vld [vmem:[%s0 + $0x1e0] sm:$0xff]
      %v427 = vld [vmem:[%s0 + $0x1e8] sm:$0xff]
      %v428 = vld [vmem:[%s0 + $0x1f0] sm:$0xff]
      %v429 = vld [vmem:[%s0 + $0x1f8] sm:$0xff]
      %v430 = vld [vmem:[%s0 + $0x200] sm:$0xff]
      %v431 = vld [vmem:[%s0 + $0x208] sm:$0xff]
      %v432 = vld [vmem:[%s0 + $0x210] sm:$0xff]
      %v433 = vld [vmem:[%s0 + $0x218] sm:$0xff]
      %v434 = vld [vmem:[%s0 + $0x220] sm:$0xff]
      %v435 = vld [vmem:[%s0 + $0x228] sm:$0xff]
      %v436 = vld [vmem:[%s0 + $0x230] sm:$0xff]
      %v437 = vld [vmem:[%s0 + $0x238] sm:$0xff]
      %v438 = vld [vmem:[%s0 + $0x240] sm:$0xff]
      %v439 = vld [vmem:[%s0 + $0x248] sm:$0xff]
      %v440 = vld [vmem:[%s0 + $0x250] sm:$0xff]
      %v441 = vld [vmem:[%s0 + $0x258] sm:$0xff]
      %v442 = vld [vmem:[%s0 + $0x260] sm:$0xff]
      %v443 = vld [vmem:[%s0 + $0x268] sm:$0xff]
      %v444 = vld [vmem:[%s0 + $0x270] sm:$0xff]
      %v445 = vld [vmem:[%s0 + $0x278] sm:$0xff]
      %v446 = vld [vmem:[%s0 + $0x280] sm:$0xff]
      %v447 = vld [vmem:[%s0 + $0x288] sm:$0xff]
      %v448 = vld [vmem:[%s0 + $0x290] sm:$0xff]
      %v449 = vld [vmem:[%s0 + $0x298] sm:$0xff]
      %v450 = vld [vmem:[%s0 + $0x2a0] sm:$0xff]
      %v451 = vld [vmem:[%s0 + $0x2a8] sm:$0xff]
      %v452 = vld [vmem:[%s0 + $0x2b0] sm:$0xff]
      %v453 = vld [vmem:[%s0 + $0x2b8] sm:$0xff]
      %v454 = vld [vmem:[%s0 + $0x2c0] sm:$0xff]
      %v455 = vld [vmem:[%s0 + $0x2c8] sm:$0xff]
      %v456 = vld [vmem:[%s0 + $0x2d0] sm:$0xff]
      %v457 = vld [vmem:[%s0 + $0x2d8] sm:$0xff]
      %v458 = vld [vmem:[%s0 + $0x2e0] sm:$0xff]
      %v459 = vld [vmem:[%s0 + $0x2e8] sm:$0xff]
      %v460 = vld [vmem:[%s0 + $0x2f0] sm:$0xff]
      %v461 = vld [vmem:[%s0 + $0x2f8] sm:$0xff]
      %v462 = vld [vmem:[%s0 + $0x300] sm:$0xff]
      %v463 = vld [vmem:[%s0 + $0x308] sm:$0xff]
      %v464 = vld [vmem:[%s0 + $0x310] sm:$0xff]
      %v465 = vld [vmem:[%s0 + $0x318] sm:$0xff]
      %v466 = vld [vmem:[%s0 + $0x320] sm:$0xff]
      %v467 = vld [vmem:[%s0 + $0x328] sm:$0xff]
      %v468 = vld [vmem:[%s0 + $0x330] sm:$0xff]
      %v469 = vld [vmem:[%s0 + $0x338] sm:$0xff]
      %v470 = vld [vmem:[%s0 + $0x340] sm:$0xff]
      %v471 = vld [vmem:[%s0 + $0x348] sm:$0xff]
      %v472 = vld [vmem:[%s0 + $0x350] sm:$0xff]
      %v473 = vld [vmem:[%s0 + $0x358] sm:$0xff]
      %v474 = vld [vmem:[%s0 + $0x360] sm:$0xff]
      %v475 = vld [vmem:[%s0 + $0x368] sm:$0xff]
      %v476 = vld [vmem:[%s0 + $0x370] sm:$0xff]
      %v477 = vld [vmem:[%s0 + $0x378] sm:$0xff]
      %v478 = vld [vmem:[%s0 + $0x380] sm:$0xff]
      %v479 = vld [vmem:[%s0 + $0x388] sm:$0xff]
      %v480 = vld [vmem:[%s0 + $0x390] sm:$0xff]
      %v481 = vld [vmem:[%s0 + $0x398] sm:$0xff]
      %v482 = vld [vmem:[%s0 + $0x3a0] sm:$0xff]
      %v483 = vld [vmem:[%s0 + $0x3a8] sm:$0xff]
      %v484 = vld [vmem:[%s0 + $0x3b0] sm:$0xff]
      %v485 = vld [vmem:[%s0 + $0x3b8] sm:$0xff]
      %v486 = vld [vmem:[%s0 + $0x3c0] sm:$0xff]
      %v487 = vld [vmem:[%s0 + $0x3c8] sm:$0xff]
      %v488 = vld [vmem:[%s0 + $0x3d0] sm:$0xff]
      %v489 = vld [vmem:[%s0 + $0x3d8] sm:$0xff]
      %v490 = vld [vmem:[%s0 + $0x3e0] sm:$0xff]
      %v491 = vld [vmem:[%s0 + $0x3e8] sm:$0xff]
      %v492 = vld [vmem:[%s0 + $0x3f0] sm:$0xff]
      %v493 = vld [vmem:[%s0 + $0x3f8] sm:$0xff]
      %v494 = vld [vmem:[%s0 + $0x400] sm:$0xff]
      %v495 = vld [vmem:[%s0 + $0x408] sm:$0xff]
      %v496 = vld [vmem:[%s0 + $0x410] sm:$0xff]
      %v497 = vld [vmem:[%s0 + $0x418] sm:$0xff]
      %v498 = vld [vmem:[%s0 + $0x420] sm:$0xff]
      %v499 = vld [vmem:[%s0 + $0x428] sm:$0xff]
      %v500 = vld [vmem:[%s0 + $0x430] sm:$0xff]
      %v501 = vld [vmem:[%s0 + $0x438] sm:$0xff]
      %v502 = vld [vmem:[%s0 + $0x440] sm:$0xff]
      %v503 = vld [vmem:[%s0 + $0x448] sm:$0xff]
      %v504 = vld [vmem:[%s0 + $0x450] sm:$0xff]
      %v505 = vld [vmem:[%s0 + $0x458] sm:$0xff]
      %v506 = vld [vmem:[%s0 + $0x460] sm:$0xff]
      %v507 = vld [vmem:[%s0 + $0x468] sm:$0xff]
      %v508 = vld [vmem:[%s0 + $0x470] sm:$0xff]
      %v509 = vld [vmem:[%s0 + $0x478] sm:$0xff]
      %v510 = vld [vmem:[%s0 + $0x480] sm:$0xff]
      %v511 = vld [vmem:[%s0 + $0x488] sm:$0xff]
      %v512 = vld [vmem:[%s0 + $0x490] sm:$0xff]
      %v513 = vld [vmem:[%s0 + $0x498] sm:$0xff]
      %v514 = vld [vmem:[%s0 + $0x4a0] sm:$0xff]
      %v515 = vld [vmem:[%s0 + $0x4a8] sm:$0xff]
      %v516 = vld [vmem:[%s0 + $0x4b0] sm:$0xff]
      %v517 = vld [vmem:[%s0 + $0x4b8] sm:$0xff]
      %v518 = vld [vmem:[%s0 + $0x4c0] sm:$0xff]
      %v519 = vld [vmem:[%s0 + $0x4c8] sm:$0xff]
      %v520 = vld [vmem:[%s0 + $0x4d0] sm:$0xff]
      %v521 = vld [vmem:[%s0 + $0x4d8] sm:$0xff]
      %v522 = vld [vmem:[%s0 + $0x4e0] sm:$0xff]
      %v523 = vld [vmem:[%s0 + $0x4e8] sm:$0xff]
      %v524 = vld [vmem:[%s0 + $0x4f0] sm:$0xff]
      %v525 = vld [vmem:[%s0 + $0x4f8] sm:$0xff]
      %v526 = vld [vmem:[%s0 + $0x500] sm:$0xff]
      %v527 = vld [vmem:[%s0 + $0x508] sm:$0xff]
      %v528 = vld [vmem:[%s0 + $0x510] sm:$0xff]
      %v529 = vld [vmem:[%s0 + $0x518] sm:$0xff]
      %v530 = vld [vmem:[%s0 + $0x520] sm:$0xff]
      %v531 = vld [vmem:[%s0 + $0x528] sm:$0xff]
      %v532 = vld [vmem:[%s0 + $0x530] sm:$0xff]
      %v533 = vld [vmem:[%s0 + $0x538] sm:$0xff]
      %v534 = vld [vmem:[%s0 + $0x540] sm:$0xff]
      %v535 = vld [vmem:[%s0 + $0x548] sm:$0xff]
      %v536 = vld [vmem:[%s0 + $0x550] sm:$0xff]
      %v537 = vld [vmem:[%s0 + $0x558] sm:$0xff]
      %v538 = vld [vmem:[%s0 + $0x560] sm:$0xff]
      %v539 = vld [vmem:[%s0 + $0x568] sm:$0xff]
      %v540 = vld [vmem:[%s0 + $0x570] sm:$0xff]
      %v541 = vld [vmem:[%s0 + $0x578] sm:$0xff]
      %v542 = vld [vmem:[%s0 + $0x580] sm:$0xff]
      %v543 = vld [vmem:[%s0 + $0x588] sm:$0xff]
      %v544 = vld [vmem:[%s0 + $0x590] sm:$0xff]
      %v545 = vld [vmem:[%s0 + $0x598] sm:$0xff]
      %v546 = vld [vmem:[%s0 + $0x5a0] sm:$0xff]
      %v547 = vld [vmem:[%s0 + $0x5a8] sm:$0xff]
      %v548 = vld [vmem:[%s0 + $0x5b0] sm:$0xff]
      %v549 = vld [vmem:[%s0 + $0x5b8] sm:$0xff]
      %v550 = vld [vmem:[%s0 + $0x5c0] sm:$0xff]
      %v551 = vld [vmem:[%s0 + $0x5c8] sm:$0xff]
      %v552 = vld [vmem:[%s0 + $0x5d0] sm:$0xff]
      %v553 = vld [vmem:[%s0 + $0x5d8] sm:$0xff]
      %v554 = vld [vmem:[%s0 + $0x5e0] sm:$0xff]
      %v555 = vld [vmem:[%s0 + $0x5e8] sm:$0xff]
      %v556 = vld [vmem:[%s0 + $0x5f0] sm:$0xff]
      %v557 = vld [vmem:[%s0 + $0x5f8] sm:$0xff]
      %v558 = vld [vmem:[%s0 + $0x600] sm:$0xff]
      %v559 = vld [vmem:[%s0 + $0x608] sm:$0xff]
      %v560 = vld [vmem:[%s0 + $0x610] sm:$0xff]
      %v561 = vld [vmem:[%s0 + $0x618] sm:$0xff]
      %v562 = vld [vmem:[%s0 + $0x620] sm:$0xff]
      %v563 = vld [vmem:[%s0 + $0x628] sm:$0xff]
      %v564 = vld [vmem:[%s0 + $0x630] sm:$0xff]
      %v565 = vld [vmem:[%s0 + $0x638] sm:$0xff]
      %v566 = vld [vmem:[%s0 + $0x640] sm:$0xff]
      %v567 = vld [vmem:[%s0 + $0x648] sm:$0xff]
      %v568 = vld [vmem:[%s0 + $0x650] sm:$0xff]
      %v569 = vld [vmem:[%s0 + $0x658] sm:$0xff]
      %v570 = vld [vmem:[%s0 + $0x660] sm:$0xff]
      %v571 = vld [vmem:[%s0 + $0x668] sm:$0xff]
      %v572 = vld [vmem:[%s0 + $0x670] sm:$0xff]
      %v573 = vld [vmem:[%s0 + $0x678] sm:$0xff]
      %v574 = vld [vmem:[%s0 + $0x680] sm:$0xff]
      %v575 = vld [vmem:[%s0 + $0x688] sm:$0xff]
      %v576 = vld [vmem:[%s0 + $0x690] sm:$0xff]
      %v577 = vld [vmem:[%s0 + $0x698] sm:$0xff]
      %v578 = vld [vmem:[%s0 + $0x6a0] sm:$0xff]
      %v579 = vld [vmem:[%s0 + $0x6a8] sm:$0xff]
      %v580 = vld [vmem:[%s0 + $0x6b0] sm:$0xff]
      %v581 = vld [vmem:[%s0 + $0x6b8] sm:$0xff]
      %v582 = vld [vmem:[%s0 + $0x6c0] sm:$0xff]
      %v583 = vld [vmem:[%s0 + $0x6c8] sm:$0xff]
      %v584 = vld [vmem:[%s0 + $0x6d0] sm:$0xff]
      %v585 = vld [vmem:[%s0 + $0x6d8] sm:$0xff]
      %v586 = vld [vmem:[%s0 + $0x6e0] sm:$0xff]
      %v587 = vld [vmem:[%s0 + $0x6e8] sm:$0xff]
      %v588 = vld [vmem:[%s0 + $0x6f0] sm:$0xff]
      %v589 = vld [vmem:[%s0 + $0x6f8] sm:$0xff]
      %590 = vmatprep.subr.mxu0 %v472
      %591 = vmatpush1.msra.mxu0 %v471
      %592 = vmatprep.subr.mxu0 %v465
      %593 = vmatpush1.msra.mxu0 %v464
      %594 = vmatprep.subr.mxu0 %v458
      %595 = vmatpush1.msra.mxu0 %v457
      %596 = vmatprep.subr.mxu0 %v451
      %597 = vmatpush1.msra.mxu0 %v450
      %598 = vmatprep.subr.mxu0 %v444
      %599 = vmatpush1.msra.mxu0 %v443
      %600 = vmatprep.subr.mxu0 %v437
      %601 = vmatpush1.msra.mxu0 %v436
      %602 = vmatprep.subr.mxu0 %v430
      %603 = vmatpush1.msra.mxu0 %v429
      %604 = vmatprep.subr.mxu0 %v423
      %605 = vmatpush1.msra.mxu0 %v422
      %606 = vmatprep.subr.mxu0 %v416
      %607 = vmatpush1.msra.mxu0 %v415
      %608 = vmatprep.subr.mxu0 %v409
      %609 = vmatpush1.msra.mxu0 %v408
      %610 = vmatprep.subr.mxu0 %v402
      %611 = vmatpush1.msra.mxu0 %v401
      %612 = vmatprep.subr.mxu0 %v395
      %613 = vmatpush1.msra.mxu0 %v394
      %614 = vmatprep.subr.mxu0 %v388
      %615 = vmatpush1.msra.mxu0 %v387
      %616 = vmatprep.subr.mxu0 %v381
      %617 = vmatpush1.msra.mxu0 %v380
      %618 = vmatprep.subr.mxu0 %v374
      %619 = vmatpush1.msra.mxu0 %v373
      %620 = vmatprep.subr.mxu0 %v367
      %621 = vmatpush1.msra.mxu0 %v366
      %622 = vmatprep.subr.mxu0 %v584
      %623 = vmatpush2.msra.mxu0 %v583
      %624 = vmatprep.subr.mxu0 %v577
      %625 = vmatpush2.msra.mxu0 %v576
      %626 = vmatprep.subr.mxu0 %v570
      %627 = vmatpush2.msra.mxu0 %v569
      %628 = vmatprep.subr.mxu0 %v563
      %629 = vmatpush2.msra.mxu0 %v562
      %630 = vmatprep.subr.mxu0 %v556
      %631 = vmatpush2.msra.mxu0 %v555
      %632 = vmatprep.subr.mxu0 %v549
      %633 = vmatpush2.msra.mxu0 %v548
      %634 = vmatprep.subr.mxu0 %v542
      %635 = vmatpush2.msra.mxu0 %v541
      %636 = vmatprep.subr.mxu0 %v535
      %637 = vmatpush2.msra.mxu0 %v534
      %638 = vmatprep.subr.mxu0 %v528
      %639 = vmatpush2.msra.mxu0 %v527
      %640 = vmatprep.subr.mxu0 %v521
      %641 = vmatpush2.msra.mxu0 %v520
      %642 = vmatprep.subr.mxu0 %v514
      %643 = vmatpush2.msra.mxu0 %v513
      %644 = vmatprep.subr.mxu0 %v507
      %645 = vmatpush2.msra.mxu0 %v506
      %646 = vmatprep.subr.mxu0 %v500
      %647 = vmatpush2.msra.mxu0 %v499
      %648 = vmatprep.subr.mxu0 %v493
      %649 = vmatpush2.msra.mxu0 %v492
      %650 = vmatprep.subr.mxu0 %v486
      %651 = vmatpush2.msra.mxu0 %v485
      %652 = vmatprep.subr.mxu0 %v479
      %653 = vmatpush2.msra.mxu0 %v478
      %654 = vmatprep.mubr.f32.mxu0 %v303
      %655 = vmatmul.mubr.f32.gmra.mxu0 %v302
      %v656 = vpop.f32.mrf.mxu0
      %v657 = vadd.f32 0.0, %v656
      %v658 = vpop.f32.mrf.mxu0
      %v659 = vadd.f32 0.0, %v658
      %660 = vmatprep.mubr.f32.mxu0 %v305
      %661 = vmatmul.mubr.f32.gmra.mxu0 %v304
      %v662 = vpop.f32.mrf.mxu0
      %v663 = vadd.f32 0.0, %v662
      %v664 = vpop.f32.mrf.mxu0
      %v665 = vadd.f32 0.0, %v664
      %666 = vmatprep.mubr.f32.mxu0 %v307
      %667 = vmatmul.mubr.f32.gmra.mxu0 %v306
      %v668 = vpop.f32.mrf.mxu0
      %v669 = vadd.f32 0.0, %v668
      %v670 = vpop.f32.mrf.mxu0
      %v671 = vadd.f32 0.0, %v670
      %672 = vmatprep.mubr.f32.mxu0 %v309
      %673 = vmatmul.mubr.f32.gmra.mxu0 %v308
      %v674 = vpop.f32.mrf.mxu0
      %v675 = vadd.f32 0.0, %v674
      %v676 = vpop.f32.mrf.mxu0
      %v677 = vadd.f32 0.0, %v676
      %678 = vmatprep.mubr.f32.mxu0 %v311
      %679 = vmatmul.mubr.f32.gmra.mxu0 %v310
      %v680 = vpop.f32.mrf.mxu0
      %v681 = vadd.f32 0.0, %v680
      %v682 = vpop.f32.mrf.mxu0
      %v683 = vadd.f32 0.0, %v682
      %684 = vmatprep.mubr.f32.mxu0 %v313
      %685 = vmatmul.mubr.f32.gmra.mxu0 %v312
      %v686 = vpop.f32.mrf.mxu0
      %v687 = vadd.f32 0.0, %v686
      %v688 = vpop.f32.mrf.mxu0
      %v689 = vadd.f32 0.0, %v688
      %690 = vmatprep.mubr.f32.mxu0 %v315
      %691 = vmatmul.mubr.f32.gmra.mxu0 %v314
      %v692 = vpop.f32.mrf.mxu0
      %v693 = vadd.f32 0.0, %v692
      %v694 = vpop.f32.mrf.mxu0
      %v695 = vadd.f32 0.0, %v694
      %696 = vmatprep.mubr.f32.mxu0 %v317
      %697 = vmatmul.mubr.f32.gmra.mxu0 %v316
      %v698 = vpop.f32.mrf.mxu0
      %v699 = vadd.f32 0.0, %v698
      %v700 = vpop.f32.mrf.mxu0
      %v701 = vadd.f32 0.0, %v700
      %702 = vmatprep.mubr.f32.mxu0 %v319
      %703 = vmatmul.mubr.f32.gmra.mxu0 %v318
      %v704 = vpop.f32.mrf.mxu0
      %v705 = vadd.f32 0.0, %v704
      %v706 = vpop.f32.mrf.mxu0
      %v707 = vadd.f32 0.0, %v706
      %708 = vmatprep.mubr.f32.mxu0 %v321
      %709 = vmatmul.mubr.f32.gmra.mxu0 %v320
      %v710 = vpop.f32.mrf.mxu0
      %v711 = vadd.f32 0.0, %v710
      %v712 = vpop.f32.mrf.mxu0
      %v713 = vadd.f32 0.0, %v712
      %714 = vmatprep.mubr.f32.mxu0 %v323
      %715 = vmatmul.mubr.f32.gmra.mxu0 %v322
      %v716 = vpop.f32.mrf.mxu0
      %v717 = vadd.f32 0.0, %v716
      %v718 = vpop.f32.mrf.mxu0
      %v719 = vadd.f32 0.0, %v718
      %720 = vmatprep.mubr.f32.mxu0 %v325
      %721 = vmatmul.mubr.f32.gmra.mxu0 %v324
      %v722 = vpop.f32.mrf.mxu0
      %v723 = vadd.f32 0.0, %v722
      %v724 = vpop.f32.mrf.mxu0
      %v725 = vadd.f32 0.0, %v724
      %726 = vmatprep.mubr.f32.mxu0 %v327
      %727 = vmatmul.mubr.f32.gmra.mxu0 %v326
      %v728 = vpop.f32.mrf.mxu0
      %v729 = vadd.f32 0.0, %v728
      %v730 = vpop.f32.mrf.mxu0
      %v731 = vadd.f32 0.0, %v730
      %732 = vmatprep.mubr.f32.mxu0 %v329
      %733 = vmatmul.mubr.f32.gmra.mxu0 %v328
      %v734 = vpop.f32.mrf.mxu0
      %v735 = vadd.f32 0.0, %v734
      %v736 = vpop.f32.mrf.mxu0
      %v737 = vadd.f32 0.0, %v736
      %738 = vmatprep.mubr.f32.mxu0 %v331
      %739 = vmatmul.mubr.f32.gmra.mxu0 %v330
      %v740 = vpop.f32.mrf.mxu0
      %v741 = vadd.f32 0.0, %v740
      %v742 = vpop.f32.mrf.mxu0
      %v743 = vadd.f32 0.0, %v742
      %744 = vmatprep.mubr.f32.mxu0 %v333
      %745 = vmatmul.mubr.f32.gmra.mxu0 %v332
      %v746 = vpop.f32.mrf.mxu0
      %v747 = vadd.f32 0.0, %v746
      %v748 = vpop.f32.mrf.mxu0
      %v749 = vadd.f32 0.0, %v748
      %750 = vmatprep.mubr.f32.mxu0 %v335
      %751 = vmatmul.mubr.f32.gmra.mxu0 %v334
      %v752 = vpop.f32.mrf.mxu0
      %v753 = vadd.f32 0.0, %v752
      %v754 = vpop.f32.mrf.mxu0
      %v755 = vadd.f32 0.0, %v754
      %756 = vmatprep.mubr.f32.mxu0 %v337
      %757 = vmatmul.mubr.f32.gmra.mxu0 %v336
      %v758 = vpop.f32.mrf.mxu0
      %v759 = vadd.f32 0.0, %v758
      %v760 = vpop.f32.mrf.mxu0
      %v761 = vadd.f32 0.0, %v760
      %762 = vmatprep.mubr.f32.mxu0 %v339
      %763 = vmatmul.mubr.f32.gmra.mxu0 %v338
      %v764 = vpop.f32.mrf.mxu0
      %v765 = vadd.f32 0.0, %v764
      %v766 = vpop.f32.mrf.mxu0
      %v767 = vadd.f32 0.0, %v766
      %768 = vmatprep.mubr.f32.mxu0 %v341
      %769 = vmatmul.mubr.f32.gmra.mxu0 %v340
      %v770 = vpop.f32.mrf.mxu0
      %v771 = vadd.f32 0.0, %v770
      %v772 = vpop.f32.mrf.mxu0
      %v773 = vadd.f32 0.0, %v772
      %774 = vmatprep.mubr.f32.mxu0 %v343
      %775 = vmatmul.mubr.f32.gmra.mxu0 %v342
      %v776 = vpop.f32.mrf.mxu0
      %v777 = vadd.f32 0.0, %v776
      %v778 = vpop.f32.mrf.mxu0
      %v779 = vadd.f32 0.0, %v778
      %780 = vmatprep.mubr.f32.mxu0 %v345
      %781 = vmatmul.mubr.f32.gmra.mxu0 %v344
      %v782 = vpop.f32.mrf.mxu0
      %v783 = vadd.f32 0.0, %v782
      %v784 = vpop.f32.mrf.mxu0
      %v785 = vadd.f32 0.0, %v784
      %786 = vmatprep.mubr.f32.mxu0 %v347
      %787 = vmatmul.mubr.f32.gmra.mxu0 %v346
      %v788 = vpop.f32.mrf.mxu0
      %v789 = vadd.f32 0.0, %v788
      %v790 = vpop.f32.mrf.mxu0
      %v791 = vadd.f32 0.0, %v790
      %792 = vmatprep.mubr.f32.mxu0 %v349
      %793 = vmatmul.mubr.f32.gmra.mxu0 %v348
      %v794 = vpop.f32.mrf.mxu0
      %v795 = vadd.f32 0.0, %v794
      %v796 = vpop.f32.mrf.mxu0
      %v797 = vadd.f32 0.0, %v796
      %798 = vmatprep.mubr.f32.mxu0 %v351
      %799 = vmatmul.mubr.f32.gmra.mxu0 %v350
      %v800 = vpop.f32.mrf.mxu0
      %v801 = vadd.f32 0.0, %v800
      %v802 = vpop.f32.mrf.mxu0
      %v803 = vadd.f32 0.0, %v802
      %804 = vmatprep.mubr.f32.mxu0 %v353
      %805 = vmatmul.mubr.f32.gmra.mxu0 %v352
      %v806 = vpop.f32.mrf.mxu0
      %v807 = vadd.f32 0.0, %v806
      %v808 = vpop.f32.mrf.mxu0
      %v809 = vadd.f32 0.0, %v808
      %810 = vmatprep.mubr.f32.mxu0 %v355
      %811 = vmatmul.mubr.f32.gmra.mxu0 %v354
      %v812 = vpop.f32.mrf.mxu0
      %v813 = vadd.f32 0.0, %v812
      %v814 = vpop.f32.mrf.mxu0
      %v815 = vadd.f32 0.0, %v814
      %816 = vmatprep.mubr.f32.mxu0 %v357
      %817 = vmatmul.mubr.f32.gmra.mxu0 %v356
      %v818 = vpop.f32.mrf.mxu0
      %v819 = vadd.f32 0.0, %v818
      %v820 = vpop.f32.mrf.mxu0
      %v821 = vadd.f32 0.0, %v820
      %822 = vmatprep.mubr.f32.mxu0 %v359
      %823 = vmatmul.mubr.f32.gmra.mxu0 %v358
      %v824 = vpop.f32.mrf.mxu0
      %v825 = vadd.f32 0.0, %v824
      %v826 = vpop.f32.mrf.mxu0
      %v827 = vadd.f32 0.0, %v826
      %828 = vmatprep.mubr.f32.mxu0 %v361
      %829 = vmatmul.mubr.f32.gmra.mxu0 %v360
      %v830 = vpop.f32.mrf.mxu0
      %v831 = vadd.f32 0.0, %v830
      %v832 = vpop.f32.mrf.mxu0
      %v833 = vadd.f32 0.0, %v832
      %834 = vmatprep.mubr.f32.mxu0 %v363
      %835 = vmatmul.mubr.f32.gmra.mxu0 %v362
      %v836 = vpop.f32.mrf.mxu0
      %v837 = vadd.f32 0.0, %v836
      %v838 = vpop.f32.mrf.mxu0
      %v839 = vadd.f32 0.0, %v838
      %840 = vmatprep.mubr.f32.mxu0 %v365
      %841 = vmatmul.mubr.f32.gmra.mxu0 %v364
      %v842 = vpop.f32.mrf.mxu0
      %v843 = vadd.f32 0.0, %v842
      %v844 = vpop.f32.mrf.mxu0
      %v845 = vadd.f32 0.0, %v844
      %846 = vdwg.mxu0
      %847 = vmatprep.subr.mxu0 %v474
      %848 = vmatpush1.msra.mxu0 %v473
      %849 = vmatprep.subr.mxu0 %v467
      %850 = vmatpush1.msra.mxu0 %v466
      %851 = vmatprep.subr.mxu0 %v460
      %852 = vmatpush1.msra.mxu0 %v459
      %853 = vmatprep.subr.mxu0 %v453
      %854 = vmatpush1.msra.mxu0 %v452
      %855 = vmatprep.subr.mxu0 %v446
      %856 = vmatpush1.msra.mxu0 %v445
      %857 = vmatprep.subr.mxu0 %v439
      %858 = vmatpush1.msra.mxu0 %v438
      %859 = vmatprep.subr.mxu0 %v432
      %860 = vmatpush1.msra.mxu0 %v431
      %861 = vmatprep.subr.mxu0 %v425
      %862 = vmatpush1.msra.mxu0 %v424
      %863 = vmatprep.subr.mxu0 %v418
      %864 = vmatpush1.msra.mxu0 %v417
      %865 = vmatprep.subr.mxu0 %v411
      %866 = vmatpush1.msra.mxu0 %v410
      %867 = vmatprep.subr.mxu0 %v404
      %868 = vmatpush1.msra.mxu0 %v403
      %869 = vmatprep.subr.mxu0 %v397
      %870 = vmatpush1.msra.mxu0 %v396
      %871 = vmatprep.subr.mxu0 %v390
      %872 = vmatpush1.msra.mxu0 %v389
      %873 = vmatprep.subr.mxu0 %v383
      %874 = vmatpush1.msra.mxu0 %v382
      %875 = vmatprep.subr.mxu0 %v376
      %876 = vmatpush1.msra.mxu0 %v375
      %877 = vmatprep.subr.mxu0 %v369
      %878 = vmatpush1.msra.mxu0 %v368
      %879 = vmatprep.subr.mxu0 %v586
      %880 = vmatpush2.msra.mxu0 %v585
      %881 = vmatprep.subr.mxu0 %v579
      %882 = vmatpush2.msra.mxu0 %v578
      %883 = vmatprep.subr.mxu0 %v572
      %884 = vmatpush2.msra.mxu0 %v571
      %885 = vmatprep.subr.mxu0 %v565
      %886 = vmatpush2.msra.mxu0 %v564
      %887 = vmatprep.subr.mxu0 %v558
      %888 = vmatpush2.msra.mxu0 %v557
      %889 = vmatprep.subr.mxu0 %v551
      %890 = vmatpush2.msra.mxu0 %v550
      %891 = vmatprep.subr.mxu0 %v544
      %892 = vmatpush2.msra.mxu0 %v543
      %893 = vmatprep.subr.mxu0 %v537
      %894 = vmatpush2.msra.mxu0 %v536
      %895 = vmatprep.subr.mxu0 %v530
      %896 = vmatpush2.msra.mxu0 %v529
      %897 = vmatprep.subr.mxu0 %v523
      %898 = vmatpush2.msra.mxu0 %v522
      %899 = vmatprep.subr.mxu0 %v516
      %900 = vmatpush2.msra.mxu0 %v515
      %901 = vmatprep.subr.mxu0 %v509
      %902 = vmatpush2.msra.mxu0 %v508
      %903 = vmatprep.subr.mxu0 %v502
      %904 = vmatpush2.msra.mxu0 %v501
      %905 = vmatprep.subr.mxu0 %v495
      %906 = vmatpush2.msra.mxu0 %v494
      %907 = vmatprep.subr.mxu0 %v488
      %908 = vmatpush2.msra.mxu0 %v487
      %909 = vmatprep.subr.mxu0 %v481
      %910 = vmatpush2.msra.mxu0 %v480
      %911 = vmatprep.mubr.f32.mxu0 %v303
      %912 = vmatmul.mubr.f32.gmra.mxu0 %v302
      %v913 = vpop.f32.mrf.mxu0
      %v914 = vadd.f32 0.0, %v913
      %v915 = vpop.f32.mrf.mxu0
      %v916 = vadd.f32 0.0, %v915
      %917 = vmatprep.mubr.f32.mxu0 %v305
      %918 = vmatmul.mubr.f32.gmra.mxu0 %v304
      %v919 = vpop.f32.mrf.mxu0
      %v920 = vadd.f32 0.0, %v919
      %v921 = vpop.f32.mrf.mxu0
      %v922 = vadd.f32 0.0, %v921
      %923 = vmatprep.mubr.f32.mxu0 %v307
      %924 = vmatmul.mubr.f32.gmra.mxu0 %v306
      %v925 = vpop.f32.mrf.mxu0
      %v926 = vadd.f32 0.0, %v925
      %v927 = vpop.f32.mrf.mxu0
      %v928 = vadd.f32 0.0, %v927
      %929 = vmatprep.mubr.f32.mxu0 %v309
      %930 = vmatmul.mubr.f32.gmra.mxu0 %v308
      %v931 = vpop.f32.mrf.mxu0
      %v932 = vadd.f32 0.0, %v931
      %v933 = vpop.f32.mrf.mxu0
      %v934 = vadd.f32 0.0, %v933
      %935 = vmatprep.mubr.f32.mxu0 %v311
      %936 = vmatmul.mubr.f32.gmra.mxu0 %v310
      %v937 = vpop.f32.mrf.mxu0
      %v938 = vadd.f32 0.0, %v937
      %v939 = vpop.f32.mrf.mxu0
      %v940 = vadd.f32 0.0, %v939
      %941 = vmatprep.mubr.f32.mxu0 %v313
      %942 = vmatmul.mubr.f32.gmra.mxu0 %v312
      %v943 = vpop.f32.mrf.mxu0
      %v944 = vadd.f32 0.0, %v943
      %v945 = vpop.f32.mrf.mxu0
      %v946 = vadd.f32 0.0, %v945
      %947 = vmatprep.mubr.f32.mxu0 %v315
      %948 = vmatmul.mubr.f32.gmra.mxu0 %v314
      %v949 = vpop.f32.mrf.mxu0
      %v950 = vadd.f32 0.0, %v949
      %v951 = vpop.f32.mrf.mxu0
      %v952 = vadd.f32 0.0, %v951
      %953 = vmatprep.mubr.f32.mxu0 %v317
      %954 = vmatmul.mubr.f32.gmra.mxu0 %v316
      %v955 = vpop.f32.mrf.mxu0
      %v956 = vadd.f32 0.0, %v955
      %v957 = vpop.f32.mrf.mxu0
      %v958 = vadd.f32 0.0, %v957
      %959 = vmatprep.mubr.f32.mxu0 %v319
      %960 = vmatmul.mubr.f32.gmra.mxu0 %v318
      %v961 = vpop.f32.mrf.mxu0
      %v962 = vadd.f32 0.0, %v961
      %v963 = vpop.f32.mrf.mxu0
      %v964 = vadd.f32 0.0, %v963
      %965 = vmatprep.mubr.f32.mxu0 %v321
      %966 = vmatmul.mubr.f32.gmra.mxu0 %v320
      %v967 = vpop.f32.mrf.mxu0
      %v968 = vadd.f32 0.0, %v967
      %v969 = vpop.f32.mrf.mxu0
      %v970 = vadd.f32 0.0, %v969
      %971 = vmatprep.mubr.f32.mxu0 %v323
      %972 = vmatmul.mubr.f32.gmra.mxu0 %v322
      %v973 = vpop.f32.mrf.mxu0
      %v974 = vadd.f32 0.0, %v973
      %v975 = vpop.f32.mrf.mxu0
      %v976 = vadd.f32 0.0, %v975
      %977 = vmatprep.mubr.f32.mxu0 %v325
      %978 = vmatmul.mubr.f32.gmra.mxu0 %v324
      %v979 = vpop.f32.mrf.mxu0
      %v980 = vadd.f32 0.0, %v979
      %v981 = vpop.f32.mrf.mxu0
      %v982 = vadd.f32 0.0, %v981
      %983 = vmatprep.mubr.f32.mxu0 %v327
      %984 = vmatmul.mubr.f32.gmra.mxu0 %v326
      %v985 = vpop.f32.mrf.mxu0
      %v986 = vadd.f32 0.0, %v985
      %v987 = vpop.f32.mrf.mxu0
      %v988 = vadd.f32 0.0, %v987
      %989 = vmatprep.mubr.f32.mxu0 %v329
      %990 = vmatmul.mubr.f32.gmra.mxu0 %v328
      %v991 = vpop.f32.mrf.mxu0
      %v992 = vadd.f32 0.0, %v991
      %v993 = vpop.f32.mrf.mxu0
      %v994 = vadd.f32 0.0, %v993
      %995 = vmatprep.mubr.f32.mxu0 %v331
      %996 = vmatmul.mubr.f32.gmra.mxu0 %v330
      %v997 = vpop.f32.mrf.mxu0
      %v998 = vadd.f32 0.0, %v997
      %v999 = vpop.f32.mrf.mxu0
      %v1000 = vadd.f32 0.0, %v999
      %1001 = vmatprep.mubr.f32.mxu0 %v333
      %1002 = vmatmul.mubr.f32.gmra.mxu0 %v332
      %v1003 = vpop.f32.mrf.mxu0
      %v1004 = vadd.f32 0.0, %v1003
      %v1005 = vpop.f32.mrf.mxu0
      %v1006 = vadd.f32 0.0, %v1005
      %1007 = vmatprep.mubr.f32.mxu0 %v335
      %1008 = vmatmul.mubr.f32.gmra.mxu0 %v334
      %v1009 = vpop.f32.mrf.mxu0
      %v1010 = vadd.f32 0.0, %v1009
      %v1011 = vpop.f32.mrf.mxu0
      %v1012 = vadd.f32 0.0, %v1011
      %1013 = vmatprep.mubr.f32.mxu0 %v337
      %1014 = vmatmul.mubr.f32.gmra.mxu0 %v336
      %v1015 = vpop.f32.mrf.mxu0
      %v1016 = vadd.f32 0.0, %v1015
      %v1017 = vpop.f32.mrf.mxu0
      %v1018 = vadd.f32 0.0, %v1017
      %1019 = vmatprep.mubr.f32.mxu0 %v339
      %1020 = vmatmul.mubr.f32.gmra.mxu0 %v338
      %v1021 = vpop.f32.mrf.mxu0
      %v1022 = vadd.f32 0.0, %v1021
      %v1023 = vpop.f32.mrf.mxu0
      %v1024 = vadd.f32 0.0, %v1023
      %1025 = vmatprep.mubr.f32.mxu0 %v341
      %1026 = vmatmul.mubr.f32.gmra.mxu0 %v340
      %v1027 = vpop.f32.mrf.mxu0
      %v1028 = vadd.f32 0.0, %v1027
      %v1029 = vpop.f32.mrf.mxu0
      %v1030 = vadd.f32 0.0, %v1029
      %1031 = vmatprep.mubr.f32.mxu0 %v343
      %1032 = vmatmul.mubr.f32.gmra.mxu0 %v342
      %v1033 = vpop.f32.mrf.mxu0
      %v1034 = vadd.f32 0.0, %v1033
      %v1035 = vpop.f32.mrf.mxu0
      %v1036 = vadd.f32 0.0, %v1035
      %1037 = vmatprep.mubr.f32.mxu0 %v345
      %1038 = vmatmul.mubr.f32.gmra.mxu0 %v344
      %v1039 = vpop.f32.mrf.mxu0
      %v1040 = vadd.f32 0.0, %v1039
      %v1041 = vpop.f32.mrf.mxu0
      %v1042 = vadd.f32 0.0, %v1041
      %1043 = vmatprep.mubr.f32.mxu0 %v347
      %1044 = vmatmul.mubr.f32.gmra.mxu0 %v346
      %v1045 = vpop.f32.mrf.mxu0
      %v1046 = vadd.f32 0.0, %v1045
      %v1047 = vpop.f32.mrf.mxu0
      %v1048 = vadd.f32 0.0, %v1047
      %1049 = vmatprep.mubr.f32.mxu0 %v349
      %1050 = vmatmul.mubr.f32.gmra.mxu0 %v348
      %v1051 = vpop.f32.mrf.mxu0
      %v1052 = vadd.f32 0.0, %v1051
      %v1053 = vpop.f32.mrf.mxu0
      %v1054 = vadd.f32 0.0, %v1053
      %1055 = vmatprep.mubr.f32.mxu0 %v351
      %1056 = vmatmul.mubr.f32.gmra.mxu0 %v350
      %v1057 = vpop.f32.mrf.mxu0
      %v1058 = vadd.f32 0.0, %v1057
      %v1059 = vpop.f32.mrf.mxu0
      %v1060 = vadd.f32 0.0, %v1059
      %1061 = vmatprep.mubr.f32.mxu0 %v353
      %1062 = vmatmul.mubr.f32.gmra.mxu0 %v352
      %v1063 = vpop.f32.mrf.mxu0
      %v1064 = vadd.f32 0.0, %v1063
      %v1065 = vpop.f32.mrf.mxu0
      %v1066 = vadd.f32 0.0, %v1065
      %1067 = vmatprep.mubr.f32.mxu0 %v355
      %1068 = vmatmul.mubr.f32.gmra.mxu0 %v354
      %v1069 = vpop.f32.mrf.mxu0
      %v1070 = vadd.f32 0.0, %v1069
      %v1071 = vpop.f32.mrf.mxu0
      %v1072 = vadd.f32 0.0, %v1071
      %1073 = vmatprep.mubr.f32.mxu0 %v357
      %1074 = vmatmul.mubr.f32.gmra.mxu0 %v356
      %v1075 = vpop.f32.mrf.mxu0
      %v1076 = vadd.f32 0.0, %v1075
      %v1077 = vpop.f32.mrf.mxu0
      %v1078 = vadd.f32 0.0, %v1077
      %1079 = vmatprep.mubr.f32.mxu0 %v359
      %1080 = vmatmul.mubr.f32.gmra.mxu0 %v358
      %v1081 = vpop.f32.mrf.mxu0
      %v1082 = vadd.f32 0.0, %v1081
      %v1083 = vpop.f32.mrf.mxu0
      %v1084 = vadd.f32 0.0, %v1083
      %1085 = vmatprep.mubr.f32.mxu0 %v361
      %1086 = vmatmul.mubr.f32.gmra.mxu0 %v360
      %v1087 = vpop.f32.mrf.mxu0
      %v1088 = vadd.f32 0.0, %v1087
      %v1089 = vpop.f32.mrf.mxu0
      %v1090 = vadd.f32 0.0, %v1089
      %1091 = vmatprep.mubr.f32.mxu0 %v363
      %1092 = vmatmul.mubr.f32.gmra.mxu0 %v362
      %v1093 = vpop.f32.mrf.mxu0
      %v1094 = vadd.f32 0.0, %v1093
      %v1095 = vpop.f32.mrf.mxu0
      %v1096 = vadd.f32 0.0, %v1095
      %1097 = vmatprep.mubr.f32.mxu0 %v365
      %1098 = vmatmul.mubr.f32.gmra.mxu0 %v364
      %v1099 = vpop.f32.mrf.mxu0
      %v1100 = vadd.f32 0.0, %v1099
      %v1101 = vpop.f32.mrf.mxu0
      %v1102 = vadd.f32 0.0, %v1101
      %1103 = vdwg.mxu0
      %1104 = vmatprep.subr.mxu0 %v476
      %1105 = vmatpush1.msra.mxu0 %v475
      %1106 = vmatprep.subr.mxu0 %v469
      %1107 = vmatpush1.msra.mxu0 %v468
      %1108 = vmatprep.subr.mxu0 %v462
      %1109 = vmatpush1.msra.mxu0 %v461
      %1110 = vmatprep.subr.mxu0 %v455
      %1111 = vmatpush1.msra.mxu0 %v454
      %1112 = vmatprep.subr.mxu0 %v448
      %1113 = vmatpush1.msra.mxu0 %v447
      %1114 = vmatprep.subr.mxu0 %v441
      %1115 = vmatpush1.msra.mxu0 %v440
      %1116 = vmatprep.subr.mxu0 %v434
      %1117 = vmatpush1.msra.mxu0 %v433
      %1118 = vmatprep.subr.mxu0 %v427
      %1119 = vmatpush1.msra.mxu0 %v426
      %1120 = vmatprep.subr.mxu0 %v420
      %1121 = vmatpush1.msra.mxu0 %v419
      %1122 = vmatprep.subr.mxu0 %v413
      %1123 = vmatpush1.msra.mxu0 %v412
      %1124 = vmatprep.subr.mxu0 %v406
      %1125 = vmatpush1.msra.mxu0 %v405
      %1126 = vmatprep.subr.mxu0 %v399
      %1127 = vmatpush1.msra.mxu0 %v398
      %1128 = vmatprep.subr.mxu0 %v392
      %1129 = vmatpush1.msra.mxu0 %v391
      %1130 = vmatprep.subr.mxu0 %v385
      %1131 = vmatpush1.msra.mxu0 %v384
      %1132 = vmatprep.subr.mxu0 %v378
      %1133 = vmatpush1.msra.mxu0 %v377
      %1134 = vmatprep.subr.mxu0 %v371
      %1135 = vmatpush1.msra.mxu0 %v370
      %1136 = vmatprep.subr.mxu0 %v588
      %1137 = vmatpush2.msra.mxu0 %v587
      %1138 = vmatprep.subr.mxu0 %v581
      %1139 = vmatpush2.msra.mxu0 %v580
      %1140 = vmatprep.subr.mxu0 %v574
      %1141 = vmatpush2.msra.mxu0 %v573
      %1142 = vmatprep.subr.mxu0 %v567
      %1143 = vmatpush2.msra.mxu0 %v566
      %1144 = vmatprep.subr.mxu0 %v560
      %1145 = vmatpush2.msra.mxu0 %v559
      %1146 = vmatprep.subr.mxu0 %v553
      %1147 = vmatpush2.msra.mxu0 %v552
      %1148 = vmatprep.subr.mxu0 %v546
      %1149 = vmatpush2.msra.mxu0 %v545
      %1150 = vmatprep.subr.mxu0 %v539
      %1151 = vmatpush2.msra.mxu0 %v538
      %1152 = vmatprep.subr.mxu0 %v532
      %1153 = vmatpush2.msra.mxu0 %v531
      %1154 = vmatprep.subr.mxu0 %v525
      %1155 = vmatpush2.msra.mxu0 %v524
      %1156 = vmatprep.subr.mxu0 %v518
      %1157 = vmatpush2.msra.mxu0 %v517
      %1158 = vmatprep.subr.mxu0 %v511
      %1159 = vmatpush2.msra.mxu0 %v510
      %1160 = vmatprep.subr.mxu0 %v504
      %1161 = vmatpush2.msra.mxu0 %v503
      %1162 = vmatprep.subr.mxu0 %v497
      %1163 = vmatpush2.msra.mxu0 %v496
      %1164 = vmatprep.subr.mxu0 %v490
      %1165 = vmatpush2.msra.mxu0 %v489
      %1166 = vmatprep.subr.mxu0 %v483
      %1167 = vmatpush2.msra.mxu0 %v482
      %1168 = vmatprep.mubr.f32.mxu0 %v303
      %1169 = vmatmul.mubr.f32.gmra.mxu0 %v302
      %v1170 = vpop.f32.mrf.mxu0
      %v1171 = vadd.f32 0.0, %v1170
      %v1172 = vpop.f32.mrf.mxu0
      %v1173 = vadd.f32 0.0, %v1172
      %1174 = vmatprep.mubr.f32.mxu0 %v305
      %1175 = vmatmul.mubr.f32.gmra.mxu0 %v304
      %v1176 = vpop.f32.mrf.mxu0
      %v1177 = vadd.f32 0.0, %v1176
      %v1178 = vpop.f32.mrf.mxu0
      %v1179 = vadd.f32 0.0, %v1178
      %1180 = vmatprep.mubr.f32.mxu0 %v307
      %1181 = vmatmul.mubr.f32.gmra.mxu0 %v306
      %v1182 = vpop.f32.mrf.mxu0
      %v1183 = vadd.f32 0.0, %v1182
      %v1184 = vpop.f32.mrf.mxu0
      %v1185 = vadd.f32 0.0, %v1184
      %1186 = vmatprep.mubr.f32.mxu0 %v309
      %1187 = vmatmul.mubr.f32.gmra.mxu0 %v308
      %v1188 = vpop.f32.mrf.mxu0
      %v1189 = vadd.f32 0.0, %v1188
      %v1190 = vpop.f32.mrf.mxu0
      %v1191 = vadd.f32 0.0, %v1190
      %1192 = vmatprep.mubr.f32.mxu0 %v311
      %1193 = vmatmul.mubr.f32.gmra.mxu0 %v310
      %v1194 = vpop.f32.mrf.mxu0
      %v1195 = vadd.f32 0.0, %v1194
      %v1196 = vpop.f32.mrf.mxu0
      %v1197 = vadd.f32 0.0, %v1196
      %1198 = vmatprep.mubr.f32.mxu0 %v313
      %1199 = vmatmul.mubr.f32.gmra.mxu0 %v312
      %v1200 = vpop.f32.mrf.mxu0
      %v1201 = vadd.f32 0.0, %v1200
      %v1202 = vpop.f32.mrf.mxu0
      %v1203 = vadd.f32 0.0, %v1202
      %1204 = vmatprep.mubr.f32.mxu0 %v315
      %1205 = vmatmul.mubr.f32.gmra.mxu0 %v314
      %v1206 = vpop.f32.mrf.mxu0
      %v1207 = vadd.f32 0.0, %v1206
      %v1208 = vpop.f32.mrf.mxu0
      %v1209 = vadd.f32 0.0, %v1208
      %1210 = vmatprep.mubr.f32.mxu0 %v317
      %1211 = vmatmul.mubr.f32.gmra.mxu0 %v316
      %v1212 = vpop.f32.mrf.mxu0
      %v1213 = vadd.f32 0.0, %v1212
      %v1214 = vpop.f32.mrf.mxu0
      %v1215 = vadd.f32 0.0, %v1214
      %1216 = vmatprep.mubr.f32.mxu0 %v319
      %1217 = vmatmul.mubr.f32.gmra.mxu0 %v318
      %v1218 = vpop.f32.mrf.mxu0
      %v1219 = vadd.f32 0.0, %v1218
      %v1220 = vpop.f32.mrf.mxu0
      %v1221 = vadd.f32 0.0, %v1220
      %1222 = vmatprep.mubr.f32.mxu0 %v321
      %1223 = vmatmul.mubr.f32.gmra.mxu0 %v320
      %v1224 = vpop.f32.mrf.mxu0
      %v1225 = vadd.f32 0.0, %v1224
      %v1226 = vpop.f32.mrf.mxu0
      %v1227 = vadd.f32 0.0, %v1226
      %1228 = vmatprep.mubr.f32.mxu0 %v323
      %1229 = vmatmul.mubr.f32.gmra.mxu0 %v322
      %v1230 = vpop.f32.mrf.mxu0
      %v1231 = vadd.f32 0.0, %v1230
      %v1232 = vpop.f32.mrf.mxu0
      %v1233 = vadd.f32 0.0, %v1232
      %1234 = vmatprep.mubr.f32.mxu0 %v325
      %1235 = vmatmul.mubr.f32.gmra.mxu0 %v324
      %v1236 = vpop.f32.mrf.mxu0
      %v1237 = vadd.f32 0.0, %v1236
      %v1238 = vpop.f32.mrf.mxu0
      %v1239 = vadd.f32 0.0, %v1238
      %1240 = vmatprep.mubr.f32.mxu0 %v327
      %1241 = vmatmul.mubr.f32.gmra.mxu0 %v326
      %v1242 = vpop.f32.mrf.mxu0
      %v1243 = vadd.f32 0.0, %v1242
      %v1244 = vpop.f32.mrf.mxu0
      %v1245 = vadd.f32 0.0, %v1244
      %1246 = vmatprep.mubr.f32.mxu0 %v329
      %1247 = vmatmul.mubr.f32.gmra.mxu0 %v328
      %v1248 = vpop.f32.mrf.mxu0
      %v1249 = vadd.f32 0.0, %v1248
      %v1250 = vpop.f32.mrf.mxu0
      %v1251 = vadd.f32 0.0, %v1250
      %1252 = vmatprep.mubr.f32.mxu0 %v331
      %1253 = vmatmul.mubr.f32.gmra.mxu0 %v330
      %v1254 = vpop.f32.mrf.mxu0
      %v1255 = vadd.f32 0.0, %v1254
      %v1256 = vpop.f32.mrf.mxu0
      %v1257 = vadd.f32 0.0, %v1256
      %1258 = vmatprep.mubr.f32.mxu0 %v333
      %1259 = vmatmul.mubr.f32.gmra.mxu0 %v332
      %v1260 = vpop.f32.mrf.mxu0
      %v1261 = vadd.f32 0.0, %v1260
      %v1262 = vpop.f32.mrf.mxu0
      %v1263 = vadd.f32 0.0, %v1262
      %1264 = vmatprep.mubr.f32.mxu0 %v335
      %1265 = vmatmul.mubr.f32.gmra.mxu0 %v334
      %v1266 = vpop.f32.mrf.mxu0
      %v1267 = vadd.f32 0.0, %v1266
      %v1268 = vpop.f32.mrf.mxu0
      %v1269 = vadd.f32 0.0, %v1268
      %1270 = vmatprep.mubr.f32.mxu0 %v337
      %1271 = vmatmul.mubr.f32.gmra.mxu0 %v336
      %v1272 = vpop.f32.mrf.mxu0
      %v1273 = vadd.f32 0.0, %v1272
      %v1274 = vpop.f32.mrf.mxu0
      %v1275 = vadd.f32 0.0, %v1274
      %1276 = vmatprep.mubr.f32.mxu0 %v339
      %1277 = vmatmul.mubr.f32.gmra.mxu0 %v338
      %v1278 = vpop.f32.mrf.mxu0
      %v1279 = vadd.f32 0.0, %v1278
      %v1280 = vpop.f32.mrf.mxu0
      %v1281 = vadd.f32 0.0, %v1280
      %1282 = vmatprep.mubr.f32.mxu0 %v341
      %1283 = vmatmul.mubr.f32.gmra.mxu0 %v340
      %v1284 = vpop.f32.mrf.mxu0
      %v1285 = vadd.f32 0.0, %v1284
      %v1286 = vpop.f32.mrf.mxu0
      %v1287 = vadd.f32 0.0, %v1286
      %1288 = vmatprep.mubr.f32.mxu0 %v343
      %1289 = vmatmul.mubr.f32.gmra.mxu0 %v342
      %v1290 = vpop.f32.mrf.mxu0
      %v1291 = vadd.f32 0.0, %v1290
      %v1292 = vpop.f32.mrf.mxu0
      %v1293 = vadd.f32 0.0, %v1292
      %1294 = vmatprep.mubr.f32.mxu0 %v345
      %1295 = vmatmul.mubr.f32.gmra.mxu0 %v344
      %v1296 = vpop.f32.mrf.mxu0
      %v1297 = vadd.f32 0.0, %v1296
      %v1298 = vpop.f32.mrf.mxu0
      %v1299 = vadd.f32 0.0, %v1298
      %1300 = vmatprep.mubr.f32.mxu0 %v347
      %1301 = vmatmul.mubr.f32.gmra.mxu0 %v346
      %v1302 = vpop.f32.mrf.mxu0
      %v1303 = vadd.f32 0.0, %v1302
      %v1304 = vpop.f32.mrf.mxu0
      %v1305 = vadd.f32 0.0, %v1304
      %1306 = vmatprep.mubr.f32.mxu0 %v349
      %1307 = vmatmul.mubr.f32.gmra.mxu0 %v348
      %v1308 = vpop.f32.mrf.mxu0
      %v1309 = vadd.f32 0.0, %v1308
      %v1310 = vpop.f32.mrf.mxu0
      %v1311 = vadd.f32 0.0, %v1310
      %1312 = vmatprep.mubr.f32.mxu0 %v351
      %1313 = vmatmul.mubr.f32.gmra.mxu0 %v350
      %v1314 = vpop.f32.mrf.mxu0
      %v1315 = vadd.f32 0.0, %v1314
      %v1316 = vpop.f32.mrf.mxu0
      %v1317 = vadd.f32 0.0, %v1316
      %1318 = vmatprep.mubr.f32.mxu0 %v353
      %1319 = vmatmul.mubr.f32.gmra.mxu0 %v352
      %v1320 = vpop.f32.mrf.mxu0
      %v1321 = vadd.f32 0.0, %v1320
      %v1322 = vpop.f32.mrf.mxu0
      %v1323 = vadd.f32 0.0, %v1322
      %1324 = vmatprep.mubr.f32.mxu0 %v355
      %1325 = vmatmul.mubr.f32.gmra.mxu0 %v354
      %v1326 = vpop.f32.mrf.mxu0
      %v1327 = vadd.f32 0.0, %v1326
      %v1328 = vpop.f32.mrf.mxu0
      %v1329 = vadd.f32 0.0, %v1328
      %1330 = vmatprep.mubr.f32.mxu0 %v357
      %1331 = vmatmul.mubr.f32.gmra.mxu0 %v356
      %v1332 = vpop.f32.mrf.mxu0
      %v1333 = vadd.f32 0.0, %v1332
      %v1334 = vpop.f32.mrf.mxu0
      %v1335 = vadd.f32 0.0, %v1334
      %1336 = vmatprep.mubr.f32.mxu0 %v359
      %1337 = vmatmul.mubr.f32.gmra.mxu0 %v358
      %v1338 = vpop.f32.mrf.mxu0
      %v1339 = vadd.f32 0.0, %v1338
      %v1340 = vpop.f32.mrf.mxu0
      %v1341 = vadd.f32 0.0, %v1340
      %1342 = vmatprep.mubr.f32.mxu0 %v361
      %1343 = vmatmul.mubr.f32.gmra.mxu0 %v360
      %v1344 = vpop.f32.mrf.mxu0
      %v1345 = vadd.f32 0.0, %v1344
      %v1346 = vpop.f32.mrf.mxu0
      %v1347 = vadd.f32 0.0, %v1346
      %1348 = vmatprep.mubr.f32.mxu0 %v363
      %1349 = vmatmul.mubr.f32.gmra.mxu0 %v362
      %v1350 = vpop.f32.mrf.mxu0
      %v1351 = vadd.f32 0.0, %v1350
      %v1352 = vpop.f32.mrf.mxu0
      %v1353 = vadd.f32 0.0, %v1352
      %1354 = vmatprep.mubr.f32.mxu0 %v365
      %1355 = vmatmul.mubr.f32.gmra.mxu0 %v364
      %v1356 = vpop.f32.mrf.mxu0
      %v1357 = vadd.f32 0.0, %v1356
      %v1358 = vpop.f32.mrf.mxu0
      %v1359 = vadd.f32 0.0, %v1358
      %1360 = vdwg.mxu0
      %1361 = vmatprep.subr.mxu0 0.0
      %1362 = vmatpush1.msra.mxu0 %v477
      %1363 = vmatprep.subr.mxu0 0.0
      %1364 = vmatpush1.msra.mxu0 %v470
      %1365 = vmatprep.subr.mxu0 0.0
      %1366 = vmatpush1.msra.mxu0 %v463
      %1367 = vmatprep.subr.mxu0 0.0
      %1368 = vmatpush1.msra.mxu0 %v456
      %1369 = vmatprep.subr.mxu0 0.0
      %1370 = vmatpush1.msra.mxu0 %v449
      %1371 = vmatprep.subr.mxu0 0.0
      %1372 = vmatpush1.msra.mxu0 %v442
      %1373 = vmatprep.subr.mxu0 0.0
      %1374 = vmatpush1.msra.mxu0 %v435
      %1375 = vmatprep.subr.mxu0 0.0
      %1376 = vmatpush1.msra.mxu0 %v428
      %1377 = vmatprep.subr.mxu0 0.0
      %1378 = vmatpush1.msra.mxu0 %v421
      %1379 = vmatprep.subr.mxu0 0.0
      %1380 = vmatpush1.msra.mxu0 %v414
      %1381 = vmatprep.subr.mxu0 0.0
      %1382 = vmatpush1.msra.mxu0 %v407
      %1383 = vmatprep.subr.mxu0 0.0
      %1384 = vmatpush1.msra.mxu0 %v400
      %1385 = vmatprep.subr.mxu0 0.0
      %1386 = vmatpush1.msra.mxu0 %v393
      %1387 = vmatprep.subr.mxu0 0.0
      %1388 = vmatpush1.msra.mxu0 %v386
      %1389 = vmatprep.subr.mxu0 0.0
      %1390 = vmatpush1.msra.mxu0 %v379
      %1391 = vmatprep.subr.mxu0 0.0
      %1392 = vmatpush1.msra.mxu0 %v372
      %1393 = vmatprep.subr.mxu0 0.0
      %1394 = vmatpush2.msra.mxu0 %v589
      %1395 = vmatprep.subr.mxu0 0.0
      %1396 = vmatpush2.msra.mxu0 %v582
      %1397 = vmatprep.subr.mxu0 0.0
      %1398 = vmatpush2.msra.mxu0 %v575
      %1399 = vmatprep.subr.mxu0 0.0
      %1400 = vmatpush2.msra.mxu0 %v568
      %1401 = vmatprep.subr.mxu0 0.0
      %1402 = vmatpush2.msra.mxu0 %v561
      %1403 = vmatprep.subr.mxu0 0.0
      %1404 = vmatpush2.msra.mxu0 %v554
      %1405 = vmatprep.subr.mxu0 0.0
      %1406 = vmatpush2.msra.mxu0 %v547
      %1407 = vmatprep.subr.mxu0 0.0
      %1408 = vmatpush2.msra.mxu0 %v540
      %1409 = vmatprep.subr.mxu0 0.0
      %1410 = vmatpush2.msra.mxu0 %v533
      %1411 = vmatprep.subr.mxu0 0.0
      %1412 = vmatpush2.msra.mxu0 %v526
      %1413 = vmatprep.subr.mxu0 0.0
      %1414 = vmatpush2.msra.mxu0 %v519
      %1415 = vmatprep.subr.mxu0 0.0
      %1416 = vmatpush2.msra.mxu0 %v512
      %1417 = vmatprep.subr.mxu0 0.0
      %1418 = vmatpush2.msra.mxu0 %v505
      %1419 = vmatprep.subr.mxu0 0.0
      %1420 = vmatpush2.msra.mxu0 %v498
      %1421 = vmatprep.subr.mxu0 0.0
      %1422 = vmatpush2.msra.mxu0 %v491
      %1423 = vmatprep.subr.mxu0 0.0
      %1424 = vmatpush2.msra.mxu0 %v484
      %1425 = vmatprep.mubr.f32.mxu0 %v303
      %1426 = vmatmul.mubr.f32.gmra.mxu0 %v302
      %v1427 = vpop.f32.mrf.mxu0
      %v1428 = vadd.f32 0.0, %v1427
      %v1429 = vpop.f32.mrf.mxu0
      %1430 = vmatprep.mubr.f32.mxu0 %v305
      %1431 = vmatmul.mubr.f32.gmra.mxu0 %v304
      %v1432 = vpop.f32.mrf.mxu0
      %v1433 = vadd.f32 0.0, %v1432
      %v1434 = vpop.f32.mrf.mxu0
      %1435 = vmatprep.mubr.f32.mxu0 %v307
      %1436 = vmatmul.mubr.f32.gmra.mxu0 %v306
      %v1437 = vpop.f32.mrf.mxu0
      %v1438 = vadd.f32 0.0, %v1437
      %v1439 = vpop.f32.mrf.mxu0
      %1440 = vmatprep.mubr.f32.mxu0 %v309
      %1441 = vmatmul.mubr.f32.gmra.mxu0 %v308
      %v1442 = vpop.f32.mrf.mxu0
      %v1443 = vadd.f32 0.0, %v1442
      %v1444 = vpop.f32.mrf.mxu0
      %1445 = vmatprep.mubr.f32.mxu0 %v311
      %1446 = vmatmul.mubr.f32.gmra.mxu0 %v310
      %v1447 = vpop.f32.mrf.mxu0
      %v1448 = vadd.f32 0.0, %v1447
      %v1449 = vpop.f32.mrf.mxu0
      %1450 = vmatprep.mubr.f32.mxu0 %v313
      %1451 = vmatmul.mubr.f32.gmra.mxu0 %v312
      %v1452 = vpop.f32.mrf.mxu0
      %v1453 = vadd.f32 0.0, %v1452
      %v1454 = vpop.f32.mrf.mxu0
      %1455 = vmatprep.mubr.f32.mxu0 %v315
      %1456 = vmatmul.mubr.f32.gmra.mxu0 %v314
      %v1457 = vpop.f32.mrf.mxu0
      %v1458 = vadd.f32 0.0, %v1457
      %v1459 = vpop.f32.mrf.mxu0
      %1460 = vmatprep.mubr.f32.mxu0 %v317
      %1461 = vmatmul.mubr.f32.gmra.mxu0 %v316
      %v1462 = vpop.f32.mrf.mxu0
      %v1463 = vadd.f32 0.0, %v1462
      %v1464 = vpop.f32.mrf.mxu0
      %1465 = vmatprep.mubr.f32.mxu0 %v319
      %1466 = vmatmul.mubr.f32.gmra.mxu0 %v318
      %v1467 = vpop.f32.mrf.mxu0
      %v1468 = vadd.f32 0.0, %v1467
      %v1469 = vpop.f32.mrf.mxu0
      %1470 = vmatprep.mubr.f32.mxu0 %v321
      %1471 = vmatmul.mubr.f32.gmra.mxu0 %v320
      %v1472 = vpop.f32.mrf.mxu0
      %v1473 = vadd.f32 0.0, %v1472
      %v1474 = vpop.f32.mrf.mxu0
      %1475 = vmatprep.mubr.f32.mxu0 %v323
      %1476 = vmatmul.mubr.f32.gmra.mxu0 %v322
      %v1477 = vpop.f32.mrf.mxu0
      %v1478 = vadd.f32 0.0, %v1477
      %v1479 = vpop.f32.mrf.mxu0
      %1480 = vmatprep.mubr.f32.mxu0 %v325
      %1481 = vmatmul.mubr.f32.gmra.mxu0 %v324
      %v1482 = vpop.f32.mrf.mxu0
      %v1483 = vadd.f32 0.0, %v1482
      %v1484 = vpop.f32.mrf.mxu0
      %1485 = vmatprep.mubr.f32.mxu0 %v327
      %1486 = vmatmul.mubr.f32.gmra.mxu0 %v326
      %v1487 = vpop.f32.mrf.mxu0
      %v1488 = vadd.f32 0.0, %v1487
      %v1489 = vpop.f32.mrf.mxu0
      %1490 = vmatprep.mubr.f32.mxu0 %v329
      %1491 = vmatmul.mubr.f32.gmra.mxu0 %v328
      %v1492 = vpop.f32.mrf.mxu0
      %v1493 = vadd.f32 0.0, %v1492
      %v1494 = vpop.f32.mrf.mxu0
      %1495 = vmatprep.mubr.f32.mxu0 %v331
      %1496 = vmatmul.mubr.f32.gmra.mxu0 %v330
      %v1497 = vpop.f32.mrf.mxu0
      %v1498 = vadd.f32 0.0, %v1497
      %v1499 = vpop.f32.mrf.mxu0
      %1500 = vmatprep.mubr.f32.mxu0 %v333
      %1501 = vmatmul.mubr.f32.gmra.mxu0 %v332
      %v1502 = vpop.f32.mrf.mxu0
      %v1503 = vadd.f32 0.0, %v1502
      %v1504 = vpop.f32.mrf.mxu0
      %1505 = vmatprep.mubr.f32.mxu0 %v335
      %1506 = vmatmul.mubr.f32.gmra.mxu0 %v334
      %v1507 = vpop.f32.mrf.mxu0
      %v1508 = vadd.f32 0.0, %v1507
      %v1509 = vpop.f32.mrf.mxu0
      %1510 = vmatprep.mubr.f32.mxu0 %v337
      %1511 = vmatmul.mubr.f32.gmra.mxu0 %v336
      %v1512 = vpop.f32.mrf.mxu0
      %v1513 = vadd.f32 0.0, %v1512
      %v1514 = vpop.f32.mrf.mxu0
      %1515 = vmatprep.mubr.f32.mxu0 %v339
      %1516 = vmatmul.mubr.f32.gmra.mxu0 %v338
      %v1517 = vpop.f32.mrf.mxu0
      %v1518 = vadd.f32 0.0, %v1517
      %v1519 = vpop.f32.mrf.mxu0
      %1520 = vmatprep.mubr.f32.mxu0 %v341
      %1521 = vmatmul.mubr.f32.gmra.mxu0 %v340
      %v1522 = vpop.f32.mrf.mxu0
      %v1523 = vadd.f32 0.0, %v1522
      %v1524 = vpop.f32.mrf.mxu0
      %1525 = vmatprep.mubr.f32.mxu0 %v343
      %1526 = vmatmul.mubr.f32.gmra.mxu0 %v342
      %v1527 = vpop.f32.mrf.mxu0
      %v1528 = vadd.f32 0.0, %v1527
      %v1529 = vpop.f32.mrf.mxu0
      %1530 = vmatprep.mubr.f32.mxu0 %v345
      %1531 = vmatmul.mubr.f32.gmra.mxu0 %v344
      %v1532 = vpop.f32.mrf.mxu0
      %v1533 = vadd.f32 0.0, %v1532
      %v1534 = vpop.f32.mrf.mxu0
      %1535 = vmatprep.mubr.f32.mxu0 %v347
      %1536 = vmatmul.mubr.f32.gmra.mxu0 %v346
      %v1537 = vpop.f32.mrf.mxu0
      %v1538 = vadd.f32 0.0, %v1537
      %v1539 = vpop.f32.mrf.mxu0
      %1540 = vmatprep.mubr.f32.mxu0 %v349
      %1541 = vmatmul.mubr.f32.gmra.mxu0 %v348
      %v1542 = vpop.f32.mrf.mxu0
      %v1543 = vadd.f32 0.0, %v1542
      %v1544 = vpop.f32.mrf.mxu0
      %1545 = vmatprep.mubr.f32.mxu0 %v351
      %1546 = vmatmul.mubr.f32.gmra.mxu0 %v350
      %v1547 = vpop.f32.mrf.mxu0
      %v1548 = vadd.f32 0.0, %v1547
      %v1549 = vpop.f32.mrf.mxu0
      %1550 = vmatprep.mubr.f32.mxu0 %v353
      %1551 = vmatmul.mubr.f32.gmra.mxu0 %v352
      %v1552 = vpop.f32.mrf.mxu0
      %v1553 = vadd.f32 0.0, %v1552
      %v1554 = vpop.f32.mrf.mxu0
      %1555 = vmatprep.mubr.f32.mxu0 %v355
      %1556 = vmatmul.mubr.f32.gmra.mxu0 %v354
      %v1557 = vpop.f32.mrf.mxu0
      %v1558 = vadd.f32 0.0, %v1557
      %v1559 = vpop.f32.mrf.mxu0
      %1560 = vmatprep.mubr.f32.mxu0 %v357
      %1561 = vmatmul.mubr.f32.gmra.mxu0 %v356
      %v1562 = vpop.f32.mrf.mxu0
      %v1563 = vadd.f32 0.0, %v1562
      %v1564 = vpop.f32.mrf.mxu0
      %1565 = vmatprep.mubr.f32.mxu0 %v359
      %1566 = vmatmul.mubr.f32.gmra.mxu0 %v358
      %v1567 = vpop.f32.mrf.mxu0
      %v1568 = vadd.f32 0.0, %v1567
      %v1569 = vpop.f32.mrf.mxu0
      %1570 = vmatprep.mubr.f32.mxu0 %v361
      %1571 = vmatmul.mubr.f32.gmra.mxu0 %v360
      %v1572 = vpop.f32.mrf.mxu0
      %v1573 = vadd.f32 0.0, %v1572
      %v1574 = vpop.f32.mrf.mxu0
      %1575 = vmatprep.mubr.f32.mxu0 %v363
      %1576 = vmatmul.mubr.f32.gmra.mxu0 %v362
      %v1577 = vpop.f32.mrf.mxu0
      %v1578 = vadd.f32 0.0, %v1577
      %v1579 = vpop.f32.mrf.mxu0
      %1580 = vmatprep.mubr.f32.mxu0 %v365
      %1581 = vmatmul.mubr.f32.gmra.mxu0 %v364
      %v1582 = vpop.f32.mrf.mxu0
      %v1583 = vadd.f32 0.0, %v1582
      %v1584 = vpop.f32.mrf.mxu0
      %1585 = vdwg.mxu0
      %v1586 = vadd.f32 %v657, %v659
      %v1587 = vadd.f32 %v1586, %v914
      %v1588 = vadd.f32 %v1587, %v916
      %v1589 = vadd.f32 %v1588, %v1171
      %v1590 = vadd.f32 %v1589, %v1173
      %vm1591 = vcmask 130048
      %v1592 = vsel %vm1591, %v1428, 0.0
      %v1593 = vadd.f32 %v1590, %v1592
      %1594 = vadd.xlane.f32.xlu0 %v1593
      %v1595 = vpop.xlane.xlu0 %1594
      %v1596 = vadd.f32 %v663, %v665
      %v1597 = vadd.f32 %v1596, %v920
      %v1598 = vadd.f32 %v1597, %v922
      %v1599 = vadd.f32 %v1598, %v1177
      %v1600 = vadd.f32 %v1599, %v1179
      %v1601 = vsel %vm1591, %v1433, 0.0
      %v1602 = vadd.f32 %v1600, %v1601
      %1603 = vadd.xlane.f32.xlu0 %v1602
      %v1604 = vpop.xlane.xlu0 %1603
      %v1605 = vadd.f32 %v669, %v671
      %v1606 = vadd.f32 %v1605, %v926
      %v1607 = vadd.f32 %v1606, %v928
      %v1608 = vadd.f32 %v1607, %v1183
      %v1609 = vadd.f32 %v1608, %v1185
      %v1610 = vsel %vm1591, %v1438, 0.0
      %v1611 = vadd.f32 %v1609, %v1610
      %1612 = vadd.xlane.f32.xlu0 %v1611
      %v1613 = vpop.xlane.xlu0 %1612
      %v1614 = vadd.f32 %v675, %v677
      %v1615 = vadd.f32 %v1614, %v932
      %v1616 = vadd.f32 %v1615, %v934
      %v1617 = vadd.f32 %v1616, %v1189
      %v1618 = vadd.f32 %v1617, %v1191
      %v1619 = vsel %vm1591, %v1443, 0.0
      %v1620 = vadd.f32 %v1618, %v1619
      %1621 = vadd.xlane.f32.xlu0 %v1620
      %v1622 = vpop.xlane.xlu0 %1621
      %v1623 = vadd.f32 %v681, %v683
      %v1624 = vadd.f32 %v1623, %v938
      %v1625 = vadd.f32 %v1624, %v940
      %v1626 = vadd.f32 %v1625, %v1195
      %v1627 = vadd.f32 %v1626, %v1197
      %v1628 = vsel %vm1591, %v1448, 0.0
      %v1629 = vadd.f32 %v1627, %v1628
      %1630 = vadd.xlane.f32.xlu0 %v1629
      %v1631 = vpop.xlane.xlu0 %1630
      %v1632 = vadd.f32 %v687, %v689
      %v1633 = vadd.f32 %v1632, %v944
      %v1634 = vadd.f32 %v1633, %v946
      %v1635 = vadd.f32 %v1634, %v1201
      %v1636 = vadd.f32 %v1635, %v1203
      %v1637 = vsel %vm1591, %v1453, 0.0
      %v1638 = vadd.f32 %v1636, %v1637
      %1639 = vadd.xlane.f32.xlu0 %v1638
      %v1640 = vpop.xlane.xlu0 %1639
      %v1641 = vadd.f32 %v693, %v695
      %v1642 = vadd.f32 %v1641, %v950
      %v1643 = vadd.f32 %v1642, %v952
      %v1644 = vadd.f32 %v1643, %v1207
      %v1645 = vadd.f32 %v1644, %v1209
      %v1646 = vsel %vm1591, %v1458, 0.0
      %v1647 = vadd.f32 %v1645, %v1646
      %1648 = vadd.xlane.f32.xlu0 %v1647
      %v1649 = vpop.xlane.xlu0 %1648
      %v1650 = vadd.f32 %v699, %v701
      %v1651 = vadd.f32 %v1650, %v956
      %v1652 = vadd.f32 %v1651, %v958
      %v1653 = vadd.f32 %v1652, %v1213
      %v1654 = vadd.f32 %v1653, %v1215
      %v1655 = vsel %vm1591, %v1463, 0.0
      %v1656 = vadd.f32 %v1654, %v1655
      %1657 = vadd.xlane.f32.xlu0 %v1656
      %v1658 = vpop.xlane.xlu0 %1657
      %v1659 = vadd.f32 %v705, %v707
      %v1660 = vadd.f32 %v1659, %v962
      %v1661 = vadd.f32 %v1660, %v964
      %v1662 = vadd.f32 %v1661, %v1219
      %v1663 = vadd.f32 %v1662, %v1221
      %v1664 = vsel %vm1591, %v1468, 0.0
      %v1665 = vadd.f32 %v1663, %v1664
      %1666 = vadd.xlane.f32.xlu0 %v1665
      %v1667 = vpop.xlane.xlu0 %1666
      %v1668 = vadd.f32 %v711, %v713
      %v1669 = vadd.f32 %v1668, %v968
      %v1670 = vadd.f32 %v1669, %v970
      %v1671 = vadd.f32 %v1670, %v1225
      %v1672 = vadd.f32 %v1671, %v1227
      %v1673 = vsel %vm1591, %v1473, 0.0
      %v1674 = vadd.f32 %v1672, %v1673
      %1675 = vadd.xlane.f32.xlu0 %v1674
      %v1676 = vpop.xlane.xlu0 %1675
      %v1677 = vadd.f32 %v717, %v719
      %v1678 = vadd.f32 %v1677, %v974
      %v1679 = vadd.f32 %v1678, %v976
      %v1680 = vadd.f32 %v1679, %v1231
      %v1681 = vadd.f32 %v1680, %v1233
      %v1682 = vsel %vm1591, %v1478, 0.0
      %v1683 = vadd.f32 %v1681, %v1682
      %1684 = vadd.xlane.f32.xlu0 %v1683
      %v1685 = vpop.xlane.xlu0 %1684
      %v1686 = vadd.f32 %v723, %v725
      %v1687 = vadd.f32 %v1686, %v980
      %v1688 = vadd.f32 %v1687, %v982
      %v1689 = vadd.f32 %v1688, %v1237
      %v1690 = vadd.f32 %v1689, %v1239
      %v1691 = vsel %vm1591, %v1483, 0.0
      %v1692 = vadd.f32 %v1690, %v1691
      %1693 = vadd.xlane.f32.xlu0 %v1692
      %v1694 = vpop.xlane.xlu0 %1693
      %v1695 = vadd.f32 %v729, %v731
      %v1696 = vadd.f32 %v1695, %v986
      %v1697 = vadd.f32 %v1696, %v988
      %v1698 = vadd.f32 %v1697, %v1243
      %v1699 = vadd.f32 %v1698, %v1245
      %v1700 = vsel %vm1591, %v1488, 0.0
      %v1701 = vadd.f32 %v1699, %v1700
      %1702 = vadd.xlane.f32.xlu0 %v1701
      %v1703 = vpop.xlane.xlu0 %1702
      %v1704 = vadd.f32 %v735, %v737
      %v1705 = vadd.f32 %v1704, %v992
      %v1706 = vadd.f32 %v1705, %v994
      %v1707 = vadd.f32 %v1706, %v1249
      %v1708 = vadd.f32 %v1707, %v1251
      %v1709 = vsel %vm1591, %v1493, 0.0
      %v1710 = vadd.f32 %v1708, %v1709
      %1711 = vadd.xlane.f32.xlu0 %v1710
      %v1712 = vpop.xlane.xlu0 %1711
      %v1713 = vadd.f32 %v741, %v743
      %v1714 = vadd.f32 %v1713, %v998
      %v1715 = vadd.f32 %v1714, %v1000
      %v1716 = vadd.f32 %v1715, %v1255
      %v1717 = vadd.f32 %v1716, %v1257
      %v1718 = vsel %vm1591, %v1498, 0.0
      %v1719 = vadd.f32 %v1717, %v1718
      %1720 = vadd.xlane.f32.xlu0 %v1719
      %v1721 = vpop.xlane.xlu0 %1720
      %v1722 = vadd.f32 %v747, %v749
      %v1723 = vadd.f32 %v1722, %v1004
      %v1724 = vadd.f32 %v1723, %v1006
      %v1725 = vadd.f32 %v1724, %v1261
      %v1726 = vadd.f32 %v1725, %v1263
      %v1727 = vsel %vm1591, %v1503, 0.0
      %v1728 = vadd.f32 %v1726, %v1727
      %1729 = vadd.xlane.f32.xlu0 %v1728
      %v1730 = vpop.xlane.xlu0 %1729
      %v1731 = vadd.f32 %v753, %v755
      %v1732 = vadd.f32 %v1731, %v1010
      %v1733 = vadd.f32 %v1732, %v1012
      %v1734 = vadd.f32 %v1733, %v1267
      %v1735 = vadd.f32 %v1734, %v1269
      %v1736 = vsel %vm1591, %v1508, 0.0
      %v1737 = vadd.f32 %v1735, %v1736
      %1738 = vadd.xlane.f32.xlu0 %v1737
      %v1739 = vpop.xlane.xlu0 %1738
      %v1740 = vadd.f32 %v759, %v761
      %v1741 = vadd.f32 %v1740, %v1016
      %v1742 = vadd.f32 %v1741, %v1018
      %v1743 = vadd.f32 %v1742, %v1273
      %v1744 = vadd.f32 %v1743, %v1275
      %v1745 = vsel %vm1591, %v1513, 0.0
      %v1746 = vadd.f32 %v1744, %v1745
      %1747 = vadd.xlane.f32.xlu0 %v1746
      %v1748 = vpop.xlane.xlu0 %1747
      %v1749 = vadd.f32 %v765, %v767
      %v1750 = vadd.f32 %v1749, %v1022
      %v1751 = vadd.f32 %v1750, %v1024
      %v1752 = vadd.f32 %v1751, %v1279
      %v1753 = vadd.f32 %v1752, %v1281
      %v1754 = vsel %vm1591, %v1518, 0.0
      %v1755 = vadd.f32 %v1753, %v1754
      %1756 = vadd.xlane.f32.xlu0 %v1755
      %v1757 = vpop.xlane.xlu0 %1756
      %v1758 = vadd.f32 %v771, %v773
      %v1759 = vadd.f32 %v1758, %v1028
      %v1760 = vadd.f32 %v1759, %v1030
      %v1761 = vadd.f32 %v1760, %v1285
      %v1762 = vadd.f32 %v1761, %v1287
      %v1763 = vsel %vm1591, %v1523, 0.0
      %v1764 = vadd.f32 %v1762, %v1763
      %1765 = vadd.xlane.f32.xlu0 %v1764
      %v1766 = vpop.xlane.xlu0 %1765
      %v1767 = vadd.f32 %v777, %v779
      %v1768 = vadd.f32 %v1767, %v1034
      %v1769 = vadd.f32 %v1768, %v1036
      %v1770 = vadd.f32 %v1769, %v1291
      %v1771 = vadd.f32 %v1770, %v1293
      %v1772 = vsel %vm1591, %v1528, 0.0
      %v1773 = vadd.f32 %v1771, %v1772
      %1774 = vadd.xlane.f32.xlu0 %v1773
      %v1775 = vpop.xlane.xlu0 %1774
      %v1776 = vadd.f32 %v783, %v785
      %v1777 = vadd.f32 %v1776, %v1040
      %v1778 = vadd.f32 %v1777, %v1042
      %v1779 = vadd.f32 %v1778, %v1297
      %v1780 = vadd.f32 %v1779, %v1299
      %v1781 = vsel %vm1591, %v1533, 0.0
      %v1782 = vadd.f32 %v1780, %v1781
      %1783 = vadd.xlane.f32.xlu0 %v1782
      %v1784 = vpop.xlane.xlu0 %1783
      %v1785 = vadd.f32 %v789, %v791
      %v1786 = vadd.f32 %v1785, %v1046
      %v1787 = vadd.f32 %v1786, %v1048
      %v1788 = vadd.f32 %v1787, %v1303
      %v1789 = vadd.f32 %v1788, %v1305
      %v1790 = vsel %vm1591, %v1538, 0.0
      %v1791 = vadd.f32 %v1789, %v1790
      %1792 = vadd.xlane.f32.xlu0 %v1791
      %v1793 = vpop.xlane.xlu0 %1792
      %v1794 = vadd.f32 %v795, %v797
      %v1795 = vadd.f32 %v1794, %v1052
      %v1796 = vadd.f32 %v1795, %v1054
      %v1797 = vadd.f32 %v1796, %v1309
      %v1798 = vadd.f32 %v1797, %v1311
      %v1799 = vsel %vm1591, %v1543, 0.0
      %v1800 = vadd.f32 %v1798, %v1799
      %1801 = vadd.xlane.f32.xlu0 %v1800
      %v1802 = vpop.xlane.xlu0 %1801
      %v1803 = vadd.f32 %v801, %v803
      %v1804 = vadd.f32 %v1803, %v1058
      %v1805 = vadd.f32 %v1804, %v1060
      %v1806 = vadd.f32 %v1805, %v1315
      %v1807 = vadd.f32 %v1806, %v1317
      %v1808 = vsel %vm1591, %v1548, 0.0
      %v1809 = vadd.f32 %v1807, %v1808
      %1810 = vadd.xlane.f32.xlu0 %v1809
      %v1811 = vpop.xlane.xlu0 %1810
      %v1812 = vadd.f32 %v807, %v809
      %v1813 = vadd.f32 %v1812, %v1064
      %v1814 = vadd.f32 %v1813, %v1066
      %v1815 = vadd.f32 %v1814, %v1321
      %v1816 = vadd.f32 %v1815, %v1323
      %v1817 = vsel %vm1591, %v1553, 0.0
      %v1818 = vadd.f32 %v1816, %v1817
      %1819 = vadd.xlane.f32.xlu0 %v1818
      %v1820 = vpop.xlane.xlu0 %1819
      %v1821 = vadd.f32 %v813, %v815
      %v1822 = vadd.f32 %v1821, %v1070
      %v1823 = vadd.f32 %v1822, %v1072
      %v1824 = vadd.f32 %v1823, %v1327
      %v1825 = vadd.f32 %v1824, %v1329
      %v1826 = vsel %vm1591, %v1558, 0.0
      %v1827 = vadd.f32 %v1825, %v1826
      %1828 = vadd.xlane.f32.xlu0 %v1827
      %v1829 = vpop.xlane.xlu0 %1828
      %v1830 = vadd.f32 %v819, %v821
      %v1831 = vadd.f32 %v1830, %v1076
      %v1832 = vadd.f32 %v1831, %v1078
      %v1833 = vadd.f32 %v1832, %v1333
      %v1834 = vadd.f32 %v1833, %v1335
      %v1835 = vsel %vm1591, %v1563, 0.0
      %v1836 = vadd.f32 %v1834, %v1835
      %1837 = vadd.xlane.f32.xlu0 %v1836
      %v1838 = vpop.xlane.xlu0 %1837
      %v1839 = vadd.f32 %v825, %v827
      %v1840 = vadd.f32 %v1839, %v1082
      %v1841 = vadd.f32 %v1840, %v1084
      %v1842 = vadd.f32 %v1841, %v1339
      %v1843 = vadd.f32 %v1842, %v1341
      %v1844 = vsel %vm1591, %v1568, 0.0
      %v1845 = vadd.f32 %v1843, %v1844
      %1846 = vadd.xlane.f32.xlu0 %v1845
      %v1847 = vpop.xlane.xlu0 %1846
      %v1848 = vadd.f32 %v831, %v833
      %v1849 = vadd.f32 %v1848, %v1088
      %v1850 = vadd.f32 %v1849, %v1090
      %v1851 = vadd.f32 %v1850, %v1345
      %v1852 = vadd.f32 %v1851, %v1347
      %v1853 = vsel %vm1591, %v1573, 0.0
      %v1854 = vadd.f32 %v1852, %v1853
      %1855 = vadd.xlane.f32.xlu0 %v1854
      %v1856 = vpop.xlane.xlu0 %1855
      %v1857 = vadd.f32 %v837, %v839
      %v1858 = vadd.f32 %v1857, %v1094
      %v1859 = vadd.f32 %v1858, %v1096
      %v1860 = vadd.f32 %v1859, %v1351
      %v1861 = vadd.f32 %v1860, %v1353
      %v1862 = vsel %vm1591, %v1578, 0.0
      %v1863 = vadd.f32 %v1861, %v1862
      %1864 = vadd.xlane.f32.xlu0 %v1863
      %v1865 = vpop.xlane.xlu0 %1864
      %v1866 = vadd.f32 %v843, %v845
      %v1867 = vadd.f32 %v1866, %v1100
      %v1868 = vadd.f32 %v1867, %v1102
      %v1869 = vadd.f32 %v1868, %v1357
      %v1870 = vadd.f32 %v1869, %v1359
      %v1871 = vsel %vm1591, %v1583, 0.0
      %v1872 = vadd.f32 %v1870, %v1871
      %1873 = vadd.xlane.f32.xlu0 %v1872
      %v1874 = vpop.xlane.xlu0 %1873
      %v1875 = vmul.f32 %v1595, 0.0012755102
      %v1876 = vmul.f32 %v1604, 0.0012755102
      %v1877 = vmul.f32 %v1613, 0.0012755102
      %v1878 = vmul.f32 %v1622, 0.0012755102
      %v1879 = vmul.f32 %v1631, 0.0012755102
      %v1880 = vmul.f32 %v1640, 0.0012755102
      %v1881 = vmul.f32 %v1649, 0.0012755102
      %v1882 = vmul.f32 %v1658, 0.0012755102
      %v1883 = vmul.f32 %v1667, 0.0012755102
      %v1884 = vmul.f32 %v1676, 0.0012755102
      %v1885 = vmul.f32 %v1685, 0.0012755102
      %v1886 = vmul.f32 %v1694, 0.0012755102
      %v1887 = vmul.f32 %v1703, 0.0012755102
      %v1888 = vmul.f32 %v1712, 0.0012755102
      %v1889 = vmul.f32 %v1721, 0.0012755102
      %v1890 = vmul.f32 %v1730, 0.0012755102
      %v1891 = vmul.f32 %v1739, 0.0012755102
      %v1892 = vmul.f32 %v1748, 0.0012755102
      %v1893 = vmul.f32 %v1757, 0.0012755102
      %v1894 = vmul.f32 %v1766, 0.0012755102
      %v1895 = vmul.f32 %v1775, 0.0012755102
      %v1896 = vmul.f32 %v1784, 0.0012755102
      %v1897 = vmul.f32 %v1793, 0.0012755102
      %v1898 = vmul.f32 %v1802, 0.0012755102
      %v1899 = vmul.f32 %v1811, 0.0012755102
      %v1900 = vmul.f32 %v1820, 0.0012755102
      %v1901 = vmul.f32 %v1829, 0.0012755102
      %v1902 = vmul.f32 %v1838, 0.0012755102
      %v1903 = vmul.f32 %v1847, 0.0012755102
      %v1904 = vmul.f32 %v1856, 0.0012755102
      %v1905 = vmul.f32 %v1865, 0.0012755102
      %v1906 = vmul.f32 %v1874, 0.0012755102
      %v1907 = vsub.f32 %v657, %v1875
      %v1908 = vsub.f32 %v659, %v1875
      %v1909 = vsub.f32 %v914, %v1875
      %v1910 = vsub.f32 %v916, %v1875
      %v1911 = vsub.f32 %v1171, %v1875
      %v1912 = vsub.f32 %v1173, %v1875
      %v1913 = vsub.f32 %v1428, %v1875
      %v1914 = vsub.f32 %v663, %v1876
      %v1915 = vsub.f32 %v665, %v1876
      %v1916 = vsub.f32 %v920, %v1876
      %v1917 = vsub.f32 %v922, %v1876
      %v1918 = vsub.f32 %v1177, %v1876
      %v1919 = vsub.f32 %v1179, %v1876
      %v1920 = vsub.f32 %v1433, %v1876
      %v1921 = vsub.f32 %v669, %v1877
      %v1922 = vsub.f32 %v671, %v1877
      %v1923 = vsub.f32 %v926, %v1877
      %v1924 = vsub.f32 %v928, %v1877
      %v1925 = vsub.f32 %v1183, %v1877
      %v1926 = vsub.f32 %v1185, %v1877
      %v1927 = vsub.f32 %v1438, %v1877
      %v1928 = vsub.f32 %v675, %v1878
      %v1929 = vsub.f32 %v677, %v1878
      %v1930 = vsub.f32 %v932, %v1878
      %v1931 = vsub.f32 %v934, %v1878
      %v1932 = vsub.f32 %v1189, %v1878
      %v1933 = vsub.f32 %v1191, %v1878
      %v1934 = vsub.f32 %v1443, %v1878
      %v1935 = vsub.f32 %v681, %v1879
      %v1936 = vsub.f32 %v683, %v1879
      %v1937 = vsub.f32 %v938, %v1879
      %v1938 = vsub.f32 %v940, %v1879
      %v1939 = vsub.f32 %v1195, %v1879
      %v1940 = vsub.f32 %v1197, %v1879
      %v1941 = vsub.f32 %v1448, %v1879
      %v1942 = vsub.f32 %v687, %v1880
      %v1943 = vsub.f32 %v689, %v1880
      %v1944 = vsub.f32 %v944, %v1880
      %v1945 = vsub.f32 %v946, %v1880
      %v1946 = vsub.f32 %v1201, %v1880
      %v1947 = vsub.f32 %v1203, %v1880
      %v1948 = vsub.f32 %v1453, %v1880
      %v1949 = vsub.f32 %v693, %v1881
      %v1950 = vsub.f32 %v695, %v1881
      %v1951 = vsub.f32 %v950, %v1881
      %v1952 = vsub.f32 %v952, %v1881
      %v1953 = vsub.f32 %v1207, %v1881
      %v1954 = vsub.f32 %v1209, %v1881
      %v1955 = vsub.f32 %v1458, %v1881
      %v1956 = vsub.f32 %v699, %v1882
      %v1957 = vsub.f32 %v701, %v1882
      %v1958 = vsub.f32 %v956, %v1882
      %v1959 = vsub.f32 %v958, %v1882
      %v1960 = vsub.f32 %v1213, %v1882
      %v1961 = vsub.f32 %v1215, %v1882
      %v1962 = vsub.f32 %v1463, %v1882
      %v1963 = vsub.f32 %v705, %v1883
      %v1964 = vsub.f32 %v707, %v1883
      %v1965 = vsub.f32 %v962, %v1883
      %v1966 = vsub.f32 %v964, %v1883
      %v1967 = vsub.f32 %v1219, %v1883
      %v1968 = vsub.f32 %v1221, %v1883
      %v1969 = vsub.f32 %v1468, %v1883
      %v1970 = vsub.f32 %v711, %v1884
      %v1971 = vsub.f32 %v713, %v1884
      %v1972 = vsub.f32 %v968, %v1884
      %v1973 = vsub.f32 %v970, %v1884
      %v1974 = vsub.f32 %v1225, %v1884
      %v1975 = vsub.f32 %v1227, %v1884
      %v1976 = vsub.f32 %v1473, %v1884
      %v1977 = vsub.f32 %v717, %v1885
      %v1978 = vsub.f32 %v719, %v1885
      %v1979 = vsub.f32 %v974, %v1885
      %v1980 = vsub.f32 %v976, %v1885
      %v1981 = vsub.f32 %v1231, %v1885
      %v1982 = vsub.f32 %v1233, %v1885
      %v1983 = vsub.f32 %v1478, %v1885
      %v1984 = vsub.f32 %v723, %v1886
      %v1985 = vsub.f32 %v725, %v1886
      %v1986 = vsub.f32 %v980, %v1886
      %v1987 = vsub.f32 %v982, %v1886
      %v1988 = vsub.f32 %v1237, %v1886
      %v1989 = vsub.f32 %v1239, %v1886
      %v1990 = vsub.f32 %v1483, %v1886
      %v1991 = vsub.f32 %v729, %v1887
      %v1992 = vsub.f32 %v731, %v1887
      %v1993 = vsub.f32 %v986, %v1887
      %v1994 = vsub.f32 %v988, %v1887
      %v1995 = vsub.f32 %v1243, %v1887
      %v1996 = vsub.f32 %v1245, %v1887
      %v1997 = vsub.f32 %v1488, %v1887
      %v1998 = vsub.f32 %v735, %v1888
      %v1999 = vsub.f32 %v737, %v1888
      %v2000 = vsub.f32 %v992, %v1888
      %v2001 = vsub.f32 %v994, %v1888
      %v2002 = vsub.f32 %v1249, %v1888
      %v2003 = vsub.f32 %v1251, %v1888
      %v2004 = vsub.f32 %v1493, %v1888
      %v2005 = vsub.f32 %v741, %v1889
      %v2006 = vsub.f32 %v743, %v1889
      %v2007 = vsub.f32 %v998, %v1889
      %v2008 = vsub.f32 %v1000, %v1889
      %v2009 = vsub.f32 %v1255, %v1889
      %v2010 = vsub.f32 %v1257, %v1889
      %v2011 = vsub.f32 %v1498, %v1889
      %v2012 = vsub.f32 %v747, %v1890
      %v2013 = vsub.f32 %v749, %v1890
      %v2014 = vsub.f32 %v1004, %v1890
      %v2015 = vsub.f32 %v1006, %v1890
      %v2016 = vsub.f32 %v1261, %v1890
      %v2017 = vsub.f32 %v1263, %v1890
      %v2018 = vsub.f32 %v1503, %v1890
      %v2019 = vsub.f32 %v753, %v1891
      %v2020 = vsub.f32 %v755, %v1891
      %v2021 = vsub.f32 %v1010, %v1891
      %v2022 = vsub.f32 %v1012, %v1891
      %v2023 = vsub.f32 %v1267, %v1891
      %v2024 = vsub.f32 %v1269, %v1891
      %v2025 = vsub.f32 %v1508, %v1891
      %v2026 = vsub.f32 %v759, %v1892
      %v2027 = vsub.f32 %v761, %v1892
      %v2028 = vsub.f32 %v1016, %v1892
      %v2029 = vsub.f32 %v1018, %v1892
      %v2030 = vsub.f32 %v1273, %v1892
      %v2031 = vsub.f32 %v1275, %v1892
      %v2032 = vsub.f32 %v1513, %v1892
      %v2033 = vsub.f32 %v765, %v1893
      %v2034 = vsub.f32 %v767, %v1893
      %v2035 = vsub.f32 %v1022, %v1893
      %v2036 = vsub.f32 %v1024, %v1893
      %v2037 = vsub.f32 %v1279, %v1893
      %v2038 = vsub.f32 %v1281, %v1893
      %v2039 = vsub.f32 %v1518, %v1893
      %v2040 = vsub.f32 %v771, %v1894
      %v2041 = vsub.f32 %v773, %v1894
      %v2042 = vsub.f32 %v1028, %v1894
      %v2043 = vsub.f32 %v1030, %v1894
      %v2044 = vsub.f32 %v1285, %v1894
      %v2045 = vsub.f32 %v1287, %v1894
      %v2046 = vsub.f32 %v1523, %v1894
      %v2047 = vsub.f32 %v777, %v1895
      %v2048 = vsub.f32 %v779, %v1895
      %v2049 = vsub.f32 %v1034, %v1895
      %v2050 = vsub.f32 %v1036, %v1895
      %v2051 = vsub.f32 %v1291, %v1895
      %v2052 = vsub.f32 %v1293, %v1895
      %v2053 = vsub.f32 %v1528, %v1895
      %v2054 = vsub.f32 %v783, %v1896
      %v2055 = vsub.f32 %v785, %v1896
      %v2056 = vsub.f32 %v1040, %v1896
      %v2057 = vsub.f32 %v1042, %v1896
      %v2058 = vsub.f32 %v1297, %v1896
      %v2059 = vsub.f32 %v1299, %v1896
      %v2060 = vsub.f32 %v1533, %v1896
      %v2061 = vsub.f32 %v789, %v1897
      %v2062 = vsub.f32 %v791, %v1897
      %v2063 = vsub.f32 %v1046, %v1897
      %v2064 = vsub.f32 %v1048, %v1897
      %v2065 = vsub.f32 %v1303, %v1897
      %v2066 = vsub.f32 %v1305, %v1897
      %v2067 = vsub.f32 %v1538, %v1897
      %v2068 = vsub.f32 %v795, %v1898
      %v2069 = vsub.f32 %v797, %v1898
      %v2070 = vsub.f32 %v1052, %v1898
      %v2071 = vsub.f32 %v1054, %v1898
      %v2072 = vsub.f32 %v1309, %v1898
      %v2073 = vsub.f32 %v1311, %v1898
      %v2074 = vsub.f32 %v1543, %v1898
      %v2075 = vsub.f32 %v801, %v1899
      %v2076 = vsub.f32 %v803, %v1899
      %v2077 = vsub.f32 %v1058, %v1899
      %v2078 = vsub.f32 %v1060, %v1899
      %v2079 = vsub.f32 %v1315, %v1899
      %v2080 = vsub.f32 %v1317, %v1899
      %v2081 = vsub.f32 %v1548, %v1899
      %v2082 = vsub.f32 %v807, %v1900
      %v2083 = vsub.f32 %v809, %v1900
      %v2084 = vsub.f32 %v1064, %v1900
      %v2085 = vsub.f32 %v1066, %v1900
      %v2086 = vsub.f32 %v1321, %v1900
      %v2087 = vsub.f32 %v1323, %v1900
      %v2088 = vsub.f32 %v1553, %v1900
      %v2089 = vsub.f32 %v813, %v1901
      %v2090 = vsub.f32 %v815, %v1901
      %v2091 = vsub.f32 %v1070, %v1901
      %v2092 = vsub.f32 %v1072, %v1901
      %v2093 = vsub.f32 %v1327, %v1901
      %v2094 = vsub.f32 %v1329, %v1901
      %v2095 = vsub.f32 %v1558, %v1901
      %v2096 = vsub.f32 %v819, %v1902
      %v2097 = vsub.f32 %v821, %v1902
      %v2098 = vsub.f32 %v1076, %v1902
      %v2099 = vsub.f32 %v1078, %v1902
      %v2100 = vsub.f32 %v1333, %v1902
      %v2101 = vsub.f32 %v1335, %v1902
      %v2102 = vsub.f32 %v1563, %v1902
      %v2103 = vsub.f32 %v825, %v1903
      %v2104 = vsub.f32 %v827, %v1903
      %v2105 = vsub.f32 %v1082, %v1903
      %v2106 = vsub.f32 %v1084, %v1903
      %v2107 = vsub.f32 %v1339, %v1903
      %v2108 = vsub.f32 %v1341, %v1903
      %v2109 = vsub.f32 %v1568, %v1903
      %v2110 = vsub.f32 %v831, %v1904
      %v2111 = vsub.f32 %v833, %v1904
      %v2112 = vsub.f32 %v1088, %v1904
      %v2113 = vsub.f32 %v1090, %v1904
      %v2114 = vsub.f32 %v1345, %v1904
      %v2115 = vsub.f32 %v1347, %v1904
      %v2116 = vsub.f32 %v1573, %v1904
      %v2117 = vsub.f32 %v837, %v1905
      %v2118 = vsub.f32 %v839, %v1905
      %v2119 = vsub.f32 %v1094, %v1905
      %v2120 = vsub.f32 %v1096, %v1905
      %v2121 = vsub.f32 %v1351, %v1905
      %v2122 = vsub.f32 %v1353, %v1905
      %v2123 = vsub.f32 %v1578, %v1905
      %v2124 = vsub.f32 %v843, %v1906
      %v2125 = vsub.f32 %v845, %v1906
      %v2126 = vsub.f32 %v1100, %v1906
      %v2127 = vsub.f32 %v1102, %v1906
      %v2128 = vsub.f32 %v1357, %v1906
      %v2129 = vsub.f32 %v1359, %v1906
      %v2130 = vsub.f32 %v1583, %v1906
      %v2131 = vmul.f32 %v1907, %v1907
      %v2132 = vmul.f32 %v1908, %v1908
      %v2133 = vmul.f32 %v1909, %v1909
      %v2134 = vmul.f32 %v1910, %v1910
      %v2135 = vmul.f32 %v1911, %v1911
      %v2136 = vmul.f32 %v1912, %v1912
      %v2137 = vmul.f32 %v1913, %v1913
      %v2138 = vmul.f32 %v1914, %v1914
      %v2139 = vmul.f32 %v1915, %v1915
      %v2140 = vmul.f32 %v1916, %v1916
      %v2141 = vmul.f32 %v1917, %v1917
      %v2142 = vmul.f32 %v1918, %v1918
      %v2143 = vmul.f32 %v1919, %v1919
      %v2144 = vmul.f32 %v1920, %v1920
      %v2145 = vmul.f32 %v1921, %v1921
      %v2146 = vmul.f32 %v1922, %v1922
      %v2147 = vmul.f32 %v1923, %v1923
      %v2148 = vmul.f32 %v1924, %v1924
      %v2149 = vmul.f32 %v1925, %v1925
      %v2150 = vmul.f32 %v1926, %v1926
      %v2151 = vmul.f32 %v1927, %v1927
      %v2152 = vmul.f32 %v1928, %v1928
      %v2153 = vmul.f32 %v1929, %v1929
      %v2154 = vmul.f32 %v1930, %v1930
      %v2155 = vmul.f32 %v1931, %v1931
      %v2156 = vmul.f32 %v1932, %v1932
      %v2157 = vmul.f32 %v1933, %v1933
      %v2158 = vmul.f32 %v1934, %v1934
      %v2159 = vmul.f32 %v1935, %v1935
      %v2160 = vmul.f32 %v1936, %v1936
      %v2161 = vmul.f32 %v1937, %v1937
      %v2162 = vmul.f32 %v1938, %v1938
      %v2163 = vmul.f32 %v1939, %v1939
      %v2164 = vmul.f32 %v1940, %v1940
      %v2165 = vmul.f32 %v1941, %v1941
      %v2166 = vmul.f32 %v1942, %v1942
      %v2167 = vmul.f32 %v1943, %v1943
      %v2168 = vmul.f32 %v1944, %v1944
      %v2169 = vmul.f32 %v1945, %v1945
      %v2170 = vmul.f32 %v1946, %v1946
      %v2171 = vmul.f32 %v1947, %v1947
      %v2172 = vmul.f32 %v1948, %v1948
      %v2173 = vmul.f32 %v1949, %v1949
      %v2174 = vmul.f32 %v1950, %v1950
      %v2175 = vmul.f32 %v1951, %v1951
      %v2176 = vmul.f32 %v1952, %v1952
      %v2177 = vmul.f32 %v1953, %v1953
      %v2178 = vmul.f32 %v1954, %v1954
      %v2179 = vmul.f32 %v1955, %v1955
      %v2180 = vmul.f32 %v1956, %v1956
      %v2181 = vmul.f32 %v1957, %v1957
      %v2182 = vmul.f32 %v1958, %v1958
      %v2183 = vmul.f32 %v1959, %v1959
      %v2184 = vmul.f32 %v1960, %v1960
      %v2185 = vmul.f32 %v1961, %v1961
      %v2186 = vmul.f32 %v1962, %v1962
      %v2187 = vmul.f32 %v1963, %v1963
      %v2188 = vmul.f32 %v1964, %v1964
      %v2189 = vmul.f32 %v1965, %v1965
      %v2190 = vmul.f32 %v1966, %v1966
      %v2191 = vmul.f32 %v1967, %v1967
      %v2192 = vmul.f32 %v1968, %v1968
      %v2193 = vmul.f32 %v1969, %v1969
      %v2194 = vmul.f32 %v1970, %v1970
      %v2195 = vmul.f32 %v1971, %v1971
      %v2196 = vmul.f32 %v1972, %v1972
      %v2197 = vmul.f32 %v1973, %v1973
      %v2198 = vmul.f32 %v1974, %v1974
      %v2199 = vmul.f32 %v1975, %v1975
      %v2200 = vmul.f32 %v1976, %v1976
      %v2201 = vmul.f32 %v1977, %v1977
      %v2202 = vmul.f32 %v1978, %v1978
      %v2203 = vmul.f32 %v1979, %v1979
      %v2204 = vmul.f32 %v1980, %v1980
      %v2205 = vmul.f32 %v1981, %v1981
      %v2206 = vmul.f32 %v1982, %v1982
      %v2207 = vmul.f32 %v1983, %v1983
      %v2208 = vmul.f32 %v1984, %v1984
      %v2209 = vmul.f32 %v1985, %v1985
      %v2210 = vmul.f32 %v1986, %v1986
      %v2211 = vmul.f32 %v1987, %v1987
      %v2212 = vmul.f32 %v1988, %v1988
      %v2213 = vmul.f32 %v1989, %v1989
      %v2214 = vmul.f32 %v1990, %v1990
      %v2215 = vmul.f32 %v1991, %v1991
      %v2216 = vmul.f32 %v1992, %v1992
      %v2217 = vmul.f32 %v1993, %v1993
      %v2218 = vmul.f32 %v1994, %v1994
      %v2219 = vmul.f32 %v1995, %v1995
      %v2220 = vmul.f32 %v1996, %v1996
      %v2221 = vmul.f32 %v1997, %v1997
      %v2222 = vmul.f32 %v1998, %v1998
      %v2223 = vmul.f32 %v1999, %v1999
      %v2224 = vmul.f32 %v2000, %v2000
      %v2225 = vmul.f32 %v2001, %v2001
      %v2226 = vmul.f32 %v2002, %v2002
      %v2227 = vmul.f32 %v2003, %v2003
      %v2228 = vmul.f32 %v2004, %v2004
      %v2229 = vmul.f32 %v2005, %v2005
      %v2230 = vmul.f32 %v2006, %v2006
      %v2231 = vmul.f32 %v2007, %v2007
      %v2232 = vmul.f32 %v2008, %v2008
      %v2233 = vmul.f32 %v2009, %v2009
      %v2234 = vmul.f32 %v2010, %v2010
      %v2235 = vmul.f32 %v2011, %v2011
      %v2236 = vmul.f32 %v2012, %v2012
      %v2237 = vmul.f32 %v2013, %v2013
      %v2238 = vmul.f32 %v2014, %v2014
      %v2239 = vmul.f32 %v2015, %v2015
      %v2240 = vmul.f32 %v2016, %v2016
      %v2241 = vmul.f32 %v2017, %v2017
      %v2242 = vmul.f32 %v2018, %v2018
      %v2243 = vmul.f32 %v2019, %v2019
      %v2244 = vmul.f32 %v2020, %v2020
      %v2245 = vmul.f32 %v2021, %v2021
      %v2246 = vmul.f32 %v2022, %v2022
      %v2247 = vmul.f32 %v2023, %v2023
      %v2248 = vmul.f32 %v2024, %v2024
      %v2249 = vmul.f32 %v2025, %v2025
      %v2250 = vmul.f32 %v2026, %v2026
      %v2251 = vmul.f32 %v2027, %v2027
      %v2252 = vmul.f32 %v2028, %v2028
      %v2253 = vmul.f32 %v2029, %v2029
      %v2254 = vmul.f32 %v2030, %v2030
      %v2255 = vmul.f32 %v2031, %v2031
      %v2256 = vmul.f32 %v2032, %v2032
      %v2257 = vmul.f32 %v2033, %v2033
      %v2258 = vmul.f32 %v2034, %v2034
      %v2259 = vmul.f32 %v2035, %v2035
      %v2260 = vmul.f32 %v2036, %v2036
      %v2261 = vmul.f32 %v2037, %v2037
      %v2262 = vmul.f32 %v2038, %v2038
      %v2263 = vmul.f32 %v2039, %v2039
      %v2264 = vmul.f32 %v2040, %v2040
      %v2265 = vmul.f32 %v2041, %v2041
      %v2266 = vmul.f32 %v2042, %v2042
      %v2267 = vmul.f32 %v2043, %v2043
      %v2268 = vmul.f32 %v2044, %v2044
      %v2269 = vmul.f32 %v2045, %v2045
      %v2270 = vmul.f32 %v2046, %v2046
      %v2271 = vmul.f32 %v2047, %v2047
      %v2272 = vmul.f32 %v2048, %v2048
      %v2273 = vmul.f32 %v2049, %v2049
      %v2274 = vmul.f32 %v2050, %v2050
      %v2275 = vmul.f32 %v2051, %v2051
      %v2276 = vmul.f32 %v2052, %v2052
      %v2277 = vmul.f32 %v2053, %v2053
      %v2278 = vmul.f32 %v2054, %v2054
      %v2279 = vmul.f32 %v2055, %v2055
      %v2280 = vmul.f32 %v2056, %v2056
      %v2281 = vmul.f32 %v2057, %v2057
      %v2282 = vmul.f32 %v2058, %v2058
      %v2283 = vmul.f32 %v2059, %v2059
      %v2284 = vmul.f32 %v2060, %v2060
      %v2285 = vmul.f32 %v2061, %v2061
      %v2286 = vmul.f32 %v2062, %v2062
      %v2287 = vmul.f32 %v2063, %v2063
      %v2288 = vmul.f32 %v2064, %v2064
      %v2289 = vmul.f32 %v2065, %v2065
      %v2290 = vmul.f32 %v2066, %v2066
      %v2291 = vmul.f32 %v2067, %v2067
      %v2292 = vmul.f32 %v2068, %v2068
      %v2293 = vmul.f32 %v2069, %v2069
      %v2294 = vmul.f32 %v2070, %v2070
      %v2295 = vmul.f32 %v2071, %v2071
      %v2296 = vmul.f32 %v2072, %v2072
      %v2297 = vmul.f32 %v2073, %v2073
      %v2298 = vmul.f32 %v2074, %v2074
      %v2299 = vmul.f32 %v2075, %v2075
      %v2300 = vmul.f32 %v2076, %v2076
      %v2301 = vmul.f32 %v2077, %v2077
      %v2302 = vmul.f32 %v2078, %v2078
      %v2303 = vmul.f32 %v2079, %v2079
      %v2304 = vmul.f32 %v2080, %v2080
      %v2305 = vmul.f32 %v2081, %v2081
      %v2306 = vmul.f32 %v2082, %v2082
      %v2307 = vmul.f32 %v2083, %v2083
      %v2308 = vmul.f32 %v2084, %v2084
      %v2309 = vmul.f32 %v2085, %v2085
      %v2310 = vmul.f32 %v2086, %v2086
      %v2311 = vmul.f32 %v2087, %v2087
      %v2312 = vmul.f32 %v2088, %v2088
      %v2313 = vmul.f32 %v2089, %v2089
      %v2314 = vmul.f32 %v2090, %v2090
      %v2315 = vmul.f32 %v2091, %v2091
      %v2316 = vmul.f32 %v2092, %v2092
      %v2317 = vmul.f32 %v2093, %v2093
      %v2318 = vmul.f32 %v2094, %v2094
      %v2319 = vmul.f32 %v2095, %v2095
      %v2320 = vmul.f32 %v2096, %v2096
      %v2321 = vmul.f32 %v2097, %v2097
      %v2322 = vmul.f32 %v2098, %v2098
      %v2323 = vmul.f32 %v2099, %v2099
      %v2324 = vmul.f32 %v2100, %v2100
      %v2325 = vmul.f32 %v2101, %v2101
      %v2326 = vmul.f32 %v2102, %v2102
      %v2327 = vmul.f32 %v2103, %v2103
      %v2328 = vmul.f32 %v2104, %v2104
      %v2329 = vmul.f32 %v2105, %v2105
      %v2330 = vmul.f32 %v2106, %v2106
      %v2331 = vmul.f32 %v2107, %v2107
      %v2332 = vmul.f32 %v2108, %v2108
      %v2333 = vmul.f32 %v2109, %v2109
      %v2334 = vmul.f32 %v2110, %v2110
      %v2335 = vmul.f32 %v2111, %v2111
      %v2336 = vmul.f32 %v2112, %v2112
      %v2337 = vmul.f32 %v2113, %v2113
      %v2338 = vmul.f32 %v2114, %v2114
      %v2339 = vmul.f32 %v2115, %v2115
      %v2340 = vmul.f32 %v2116, %v2116
      %v2341 = vmul.f32 %v2117, %v2117
      %v2342 = vmul.f32 %v2118, %v2118
      %v2343 = vmul.f32 %v2119, %v2119
      %v2344 = vmul.f32 %v2120, %v2120
      %v2345 = vmul.f32 %v2121, %v2121
      %v2346 = vmul.f32 %v2122, %v2122
      %v2347 = vmul.f32 %v2123, %v2123
      %v2348 = vmul.f32 %v2124, %v2124
      %v2349 = vmul.f32 %v2125, %v2125
      %v2350 = vmul.f32 %v2126, %v2126
      %v2351 = vmul.f32 %v2127, %v2127
      %v2352 = vmul.f32 %v2128, %v2128
      %v2353 = vmul.f32 %v2129, %v2129
      %v2354 = vmul.f32 %v2130, %v2130
      %v2355 = vadd.f32 %v2131, %v2132
      %v2356 = vadd.f32 %v2355, %v2133
      %v2357 = vadd.f32 %v2356, %v2134
      %v2358 = vadd.f32 %v2357, %v2135
      %v2359 = vadd.f32 %v2358, %v2136
      %v2360 = vsel %vm1591, %v2137, 0.0
      %v2361 = vadd.f32 %v2359, %v2360
      %2362 = vadd.xlane.f32.xlu0 %v2361
      %v2363 = vpop.xlane.xlu0 %2362
      %v2364 = vadd.f32 %v2138, %v2139
      %v2365 = vadd.f32 %v2364, %v2140
      %v2366 = vadd.f32 %v2365, %v2141
      %v2367 = vadd.f32 %v2366, %v2142
      %v2368 = vadd.f32 %v2367, %v2143
      %v2369 = vsel %vm1591, %v2144, 0.0
      %v2370 = vadd.f32 %v2368, %v2369
      %2371 = vadd.xlane.f32.xlu0 %v2370
      %v2372 = vpop.xlane.xlu0 %2371
      %v2373 = vadd.f32 %v2145, %v2146
      %v2374 = vadd.f32 %v2373, %v2147
      %v2375 = vadd.f32 %v2374, %v2148
      %v2376 = vadd.f32 %v2375, %v2149
      %v2377 = vadd.f32 %v2376, %v2150
      %v2378 = vsel %vm1591, %v2151, 0.0
      %v2379 = vadd.f32 %v2377, %v2378
      %2380 = vadd.xlane.f32.xlu0 %v2379
      %v2381 = vpop.xlane.xlu0 %2380
      %v2382 = vadd.f32 %v2152, %v2153
      %v2383 = vadd.f32 %v2382, %v2154
      %v2384 = vadd.f32 %v2383, %v2155
      %v2385 = vadd.f32 %v2384, %v2156
      %v2386 = vadd.f32 %v2385, %v2157
      %v2387 = vsel %vm1591, %v2158, 0.0
      %v2388 = vadd.f32 %v2386, %v2387
      %2389 = vadd.xlane.f32.xlu0 %v2388
      %v2390 = vpop.xlane.xlu0 %2389
      %v2391 = vadd.f32 %v2159, %v2160
      %v2392 = vadd.f32 %v2391, %v2161
      %v2393 = vadd.f32 %v2392, %v2162
      %v2394 = vadd.f32 %v2393, %v2163
      %v2395 = vadd.f32 %v2394, %v2164
      %v2396 = vsel %vm1591, %v2165, 0.0
      %v2397 = vadd.f32 %v2395, %v2396
      %2398 = vadd.xlane.f32.xlu0 %v2397
      %v2399 = vpop.xlane.xlu0 %2398
      %v2400 = vadd.f32 %v2166, %v2167
      %v2401 = vadd.f32 %v2400, %v2168
      %v2402 = vadd.f32 %v2401, %v2169
      %v2403 = vadd.f32 %v2402, %v2170
      %v2404 = vadd.f32 %v2403, %v2171
      %v2405 = vsel %vm1591, %v2172, 0.0
      %v2406 = vadd.f32 %v2404, %v2405
      %2407 = vadd.xlane.f32.xlu0 %v2406
      %v2408 = vpop.xlane.xlu0 %2407
      %v2409 = vadd.f32 %v2173, %v2174
      %v2410 = vadd.f32 %v2409, %v2175
      %v2411 = vadd.f32 %v2410, %v2176
      %v2412 = vadd.f32 %v2411, %v2177
      %v2413 = vadd.f32 %v2412, %v2178
      %v2414 = vsel %vm1591, %v2179, 0.0
      %v2415 = vadd.f32 %v2413, %v2414
      %2416 = vadd.xlane.f32.xlu0 %v2415
      %v2417 = vpop.xlane.xlu0 %2416
      %v2418 = vadd.f32 %v2180, %v2181
      %v2419 = vadd.f32 %v2418, %v2182
      %v2420 = vadd.f32 %v2419, %v2183
      %v2421 = vadd.f32 %v2420, %v2184
      %v2422 = vadd.f32 %v2421, %v2185
      %v2423 = vsel %vm1591, %v2186, 0.0
      %v2424 = vadd.f32 %v2422, %v2423
      %2425 = vadd.xlane.f32.xlu0 %v2424
      %v2426 = vpop.xlane.xlu0 %2425
      %v2427 = vadd.f32 %v2187, %v2188
      %v2428 = vadd.f32 %v2427, %v2189
      %v2429 = vadd.f32 %v2428, %v2190
      %v2430 = vadd.f32 %v2429, %v2191
      %v2431 = vadd.f32 %v2430, %v2192
      %v2432 = vsel %vm1591, %v2193, 0.0
      %v2433 = vadd.f32 %v2431, %v2432
      %2434 = vadd.xlane.f32.xlu0 %v2433
      %v2435 = vpop.xlane.xlu0 %2434
      %v2436 = vadd.f32 %v2194, %v2195
      %v2437 = vadd.f32 %v2436, %v2196
      %v2438 = vadd.f32 %v2437, %v2197
      %v2439 = vadd.f32 %v2438, %v2198
      %v2440 = vadd.f32 %v2439, %v2199
      %v2441 = vsel %vm1591, %v2200, 0.0
      %v2442 = vadd.f32 %v2440, %v2441
      %2443 = vadd.xlane.f32.xlu0 %v2442
      %v2444 = vpop.xlane.xlu0 %2443
      %v2445 = vadd.f32 %v2201, %v2202
      %v2446 = vadd.f32 %v2445, %v2203
      %v2447 = vadd.f32 %v2446, %v2204
      %v2448 = vadd.f32 %v2447, %v2205
      %v2449 = vadd.f32 %v2448, %v2206
      %v2450 = vsel %vm1591, %v2207, 0.0
      %v2451 = vadd.f32 %v2449, %v2450
      %2452 = vadd.xlane.f32.xlu0 %v2451
      %v2453 = vpop.xlane.xlu0 %2452
      %v2454 = vadd.f32 %v2208, %v2209
      %v2455 = vadd.f32 %v2454, %v2210
      %v2456 = vadd.f32 %v2455, %v2211
      %v2457 = vadd.f32 %v2456, %v2212
      %v2458 = vadd.f32 %v2457, %v2213
      %v2459 = vsel %vm1591, %v2214, 0.0
      %v2460 = vadd.f32 %v2458, %v2459
      %2461 = vadd.xlane.f32.xlu0 %v2460
      %v2462 = vpop.xlane.xlu0 %2461
      %v2463 = vadd.f32 %v2215, %v2216
      %v2464 = vadd.f32 %v2463, %v2217
      %v2465 = vadd.f32 %v2464, %v2218
      %v2466 = vadd.f32 %v2465, %v2219
      %v2467 = vadd.f32 %v2466, %v2220
      %v2468 = vsel %vm1591, %v2221, 0.0
      %v2469 = vadd.f32 %v2467, %v2468
      %2470 = vadd.xlane.f32.xlu0 %v2469
      %v2471 = vpop.xlane.xlu0 %2470
      %v2472 = vadd.f32 %v2222, %v2223
      %v2473 = vadd.f32 %v2472, %v2224
      %v2474 = vadd.f32 %v2473, %v2225
      %v2475 = vadd.f32 %v2474, %v2226
      %v2476 = vadd.f32 %v2475, %v2227
      %v2477 = vsel %vm1591, %v2228, 0.0
      %v2478 = vadd.f32 %v2476, %v2477
      %2479 = vadd.xlane.f32.xlu0 %v2478
      %v2480 = vpop.xlane.xlu0 %2479
      %v2481 = vadd.f32 %v2229, %v2230
      %v2482 = vadd.f32 %v2481, %v2231
      %v2483 = vadd.f32 %v2482, %v2232
      %v2484 = vadd.f32 %v2483, %v2233
      %v2485 = vadd.f32 %v2484, %v2234
      %v2486 = vsel %vm1591, %v2235, 0.0
      %v2487 = vadd.f32 %v2485, %v2486
      %2488 = vadd.xlane.f32.xlu0 %v2487
      %v2489 = vpop.xlane.xlu0 %2488
      %v2490 = vadd.f32 %v2236, %v2237
      %v2491 = vadd.f32 %v2490, %v2238
      %v2492 = vadd.f32 %v2491, %v2239
      %v2493 = vadd.f32 %v2492, %v2240
      %v2494 = vadd.f32 %v2493, %v2241
      %v2495 = vsel %vm1591, %v2242, 0.0
      %v2496 = vadd.f32 %v2494, %v2495
      %2497 = vadd.xlane.f32.xlu0 %v2496
      %v2498 = vpop.xlane.xlu0 %2497
      %v2499 = vadd.f32 %v2243, %v2244
      %v2500 = vadd.f32 %v2499, %v2245
      %v2501 = vadd.f32 %v2500, %v2246
      %v2502 = vadd.f32 %v2501, %v2247
      %v2503 = vadd.f32 %v2502, %v2248
      %v2504 = vsel %vm1591, %v2249, 0.0
      %v2505 = vadd.f32 %v2503, %v2504
      %2506 = vadd.xlane.f32.xlu0 %v2505
      %v2507 = vpop.xlane.xlu0 %2506
      %v2508 = vadd.f32 %v2250, %v2251
      %v2509 = vadd.f32 %v2508, %v2252
      %v2510 = vadd.f32 %v2509, %v2253
      %v2511 = vadd.f32 %v2510, %v2254
      %v2512 = vadd.f32 %v2511, %v2255
      %v2513 = vsel %vm1591, %v2256, 0.0
      %v2514 = vadd.f32 %v2512, %v2513
      %2515 = vadd.xlane.f32.xlu0 %v2514
      %v2516 = vpop.xlane.xlu0 %2515
      %v2517 = vadd.f32 %v2257, %v2258
      %v2518 = vadd.f32 %v2517, %v2259
      %v2519 = vadd.f32 %v2518, %v2260
      %v2520 = vadd.f32 %v2519, %v2261
      %v2521 = vadd.f32 %v2520, %v2262
      %v2522 = vsel %vm1591, %v2263, 0.0
      %v2523 = vadd.f32 %v2521, %v2522
      %2524 = vadd.xlane.f32.xlu0 %v2523
      %v2525 = vpop.xlane.xlu0 %2524
      %v2526 = vadd.f32 %v2264, %v2265
      %v2527 = vadd.f32 %v2526, %v2266
      %v2528 = vadd.f32 %v2527, %v2267
      %v2529 = vadd.f32 %v2528, %v2268
      %v2530 = vadd.f32 %v2529, %v2269
      %v2531 = vsel %vm1591, %v2270, 0.0
      %v2532 = vadd.f32 %v2530, %v2531
      %2533 = vadd.xlane.f32.xlu0 %v2532
      %v2534 = vpop.xlane.xlu0 %2533
      %v2535 = vadd.f32 %v2271, %v2272
      %v2536 = vadd.f32 %v2535, %v2273
      %v2537 = vadd.f32 %v2536, %v2274
      %v2538 = vadd.f32 %v2537, %v2275
      %v2539 = vadd.f32 %v2538, %v2276
      %v2540 = vsel %vm1591, %v2277, 0.0
      %v2541 = vadd.f32 %v2539, %v2540
      %2542 = vadd.xlane.f32.xlu0 %v2541
      %v2543 = vpop.xlane.xlu0 %2542
      %v2544 = vadd.f32 %v2278, %v2279
      %v2545 = vadd.f32 %v2544, %v2280
      %v2546 = vadd.f32 %v2545, %v2281
      %v2547 = vadd.f32 %v2546, %v2282
      %v2548 = vadd.f32 %v2547, %v2283
      %v2549 = vsel %vm1591, %v2284, 0.0
      %v2550 = vadd.f32 %v2548, %v2549
      %2551 = vadd.xlane.f32.xlu0 %v2550
      %v2552 = vpop.xlane.xlu0 %2551
      %v2553 = vadd.f32 %v2285, %v2286
      %v2554 = vadd.f32 %v2553, %v2287
      %v2555 = vadd.f32 %v2554, %v2288
      %v2556 = vadd.f32 %v2555, %v2289
      %v2557 = vadd.f32 %v2556, %v2290
      %v2558 = vsel %vm1591, %v2291, 0.0
      %v2559 = vadd.f32 %v2557, %v2558
      %2560 = vadd.xlane.f32.xlu0 %v2559
      %v2561 = vpop.xlane.xlu0 %2560
      %v2562 = vadd.f32 %v2292, %v2293
      %v2563 = vadd.f32 %v2562, %v2294
      %v2564 = vadd.f32 %v2563, %v2295
      %v2565 = vadd.f32 %v2564, %v2296
      %v2566 = vadd.f32 %v2565, %v2297
      %v2567 = vsel %vm1591, %v2298, 0.0
      %v2568 = vadd.f32 %v2566, %v2567
      %2569 = vadd.xlane.f32.xlu0 %v2568
      %v2570 = vpop.xlane.xlu0 %2569
      %v2571 = vadd.f32 %v2299, %v2300
      %v2572 = vadd.f32 %v2571, %v2301
      %v2573 = vadd.f32 %v2572, %v2302
      %v2574 = vadd.f32 %v2573, %v2303
      %v2575 = vadd.f32 %v2574, %v2304
      %v2576 = vsel %vm1591, %v2305, 0.0
      %v2577 = vadd.f32 %v2575, %v2576
      %2578 = vadd.xlane.f32.xlu0 %v2577
      %v2579 = vpop.xlane.xlu0 %2578
      %v2580 = vadd.f32 %v2306, %v2307
      %v2581 = vadd.f32 %v2580, %v2308
      %v2582 = vadd.f32 %v2581, %v2309
      %v2583 = vadd.f32 %v2582, %v2310
      %v2584 = vadd.f32 %v2583, %v2311
      %v2585 = vsel %vm1591, %v2312, 0.0
      %v2586 = vadd.f32 %v2584, %v2585
      %2587 = vadd.xlane.f32.xlu0 %v2586
      %v2588 = vpop.xlane.xlu0 %2587
      %v2589 = vadd.f32 %v2313, %v2314
      %v2590 = vadd.f32 %v2589, %v2315
      %v2591 = vadd.f32 %v2590, %v2316
      %v2592 = vadd.f32 %v2591, %v2317
      %v2593 = vadd.f32 %v2592, %v2318
      %v2594 = vsel %vm1591, %v2319, 0.0
      %v2595 = vadd.f32 %v2593, %v2594
      %2596 = vadd.xlane.f32.xlu0 %v2595
      %v2597 = vpop.xlane.xlu0 %2596
      %v2598 = vadd.f32 %v2320, %v2321
      %v2599 = vadd.f32 %v2598, %v2322
      %v2600 = vadd.f32 %v2599, %v2323
      %v2601 = vadd.f32 %v2600, %v2324
      %v2602 = vadd.f32 %v2601, %v2325
      %v2603 = vsel %vm1591, %v2326, 0.0
      %v2604 = vadd.f32 %v2602, %v2603
      %2605 = vadd.xlane.f32.xlu0 %v2604
      %v2606 = vpop.xlane.xlu0 %2605
      %v2607 = vadd.f32 %v2327, %v2328
      %v2608 = vadd.f32 %v2607, %v2329
      %v2609 = vadd.f32 %v2608, %v2330
      %v2610 = vadd.f32 %v2609, %v2331
      %v2611 = vadd.f32 %v2610, %v2332
      %v2612 = vsel %vm1591, %v2333, 0.0
      %v2613 = vadd.f32 %v2611, %v2612
      %2614 = vadd.xlane.f32.xlu0 %v2613
      %v2615 = vpop.xlane.xlu0 %2614
      %v2616 = vadd.f32 %v2334, %v2335
      %v2617 = vadd.f32 %v2616, %v2336
      %v2618 = vadd.f32 %v2617, %v2337
      %v2619 = vadd.f32 %v2618, %v2338
      %v2620 = vadd.f32 %v2619, %v2339
      %v2621 = vsel %vm1591, %v2340, 0.0
      %v2622 = vadd.f32 %v2620, %v2621
      %2623 = vadd.xlane.f32.xlu0 %v2622
      %v2624 = vpop.xlane.xlu0 %2623
      %v2625 = vadd.f32 %v2341, %v2342
      %v2626 = vadd.f32 %v2625, %v2343
      %v2627 = vadd.f32 %v2626, %v2344
      %v2628 = vadd.f32 %v2627, %v2345
      %v2629 = vadd.f32 %v2628, %v2346
      %v2630 = vsel %vm1591, %v2347, 0.0
      %v2631 = vadd.f32 %v2629, %v2630
      %2632 = vadd.xlane.f32.xlu0 %v2631
      %v2633 = vpop.xlane.xlu0 %2632
      %v2634 = vadd.f32 %v2348, %v2349
      %v2635 = vadd.f32 %v2634, %v2350
      %v2636 = vadd.f32 %v2635, %v2351
      %v2637 = vadd.f32 %v2636, %v2352
      %v2638 = vadd.f32 %v2637, %v2353
      %v2639 = vsel %vm1591, %v2354, 0.0
      %v2640 = vadd.f32 %v2638, %v2639
      %2641 = vadd.xlane.f32.xlu0 %v2640
      %v2642 = vpop.xlane.xlu0 %2641
      %v2643 = vmul.f32 %v2363, 0.0012755102
      %v2644 = vmul.f32 %v2372, 0.0012755102
      %v2645 = vmul.f32 %v2381, 0.0012755102
      %v2646 = vmul.f32 %v2390, 0.0012755102
      %v2647 = vmul.f32 %v2399, 0.0012755102
      %v2648 = vmul.f32 %v2408, 0.0012755102
      %v2649 = vmul.f32 %v2417, 0.0012755102
      %v2650 = vmul.f32 %v2426, 0.0012755102
      %v2651 = vmul.f32 %v2435, 0.0012755102
      %v2652 = vmul.f32 %v2444, 0.0012755102
      %v2653 = vmul.f32 %v2453, 0.0012755102
      %v2654 = vmul.f32 %v2462, 0.0012755102
      %v2655 = vmul.f32 %v2471, 0.0012755102
      %v2656 = vmul.f32 %v2480, 0.0012755102
      %v2657 = vmul.f32 %v2489, 0.0012755102
      %v2658 = vmul.f32 %v2498, 0.0012755102
      %v2659 = vmul.f32 %v2507, 0.0012755102
      %v2660 = vmul.f32 %v2516, 0.0012755102
      %v2661 = vmul.f32 %v2525, 0.0012755102
      %v2662 = vmul.f32 %v2534, 0.0012755102
      %v2663 = vmul.f32 %v2543, 0.0012755102
      %v2664 = vmul.f32 %v2552, 0.0012755102
      %v2665 = vmul.f32 %v2561, 0.0012755102
      %v2666 = vmul.f32 %v2570, 0.0012755102
      %v2667 = vmul.f32 %v2579, 0.0012755102
      %v2668 = vmul.f32 %v2588, 0.0012755102
      %v2669 = vmul.f32 %v2597, 0.0012755102
      %v2670 = vmul.f32 %v2606, 0.0012755102
      %v2671 = vmul.f32 %v2615, 0.0012755102
      %v2672 = vmul.f32 %v2624, 0.0012755102
      %v2673 = vmul.f32 %v2633, 0.0012755102
      %v2674 = vmul.f32 %v2642, 0.0012755102
      %v2675 = vadd.f32 %v2643, 1e-05
      %v2676 = vadd.f32 %v2644, 1e-05
      %v2677 = vadd.f32 %v2645, 1e-05
      %v2678 = vadd.f32 %v2646, 1e-05
      %v2679 = vadd.f32 %v2647, 1e-05
      %v2680 = vadd.f32 %v2648, 1e-05
      %v2681 = vadd.f32 %v2649, 1e-05
      %v2682 = vadd.f32 %v2650, 1e-05
      %v2683 = vadd.f32 %v2651, 1e-05
      %v2684 = vadd.f32 %v2652, 1e-05
      %v2685 = vadd.f32 %v2653, 1e-05
      %v2686 = vadd.f32 %v2654, 1e-05
      %v2687 = vadd.f32 %v2655, 1e-05
      %v2688 = vadd.f32 %v2656, 1e-05
      %v2689 = vadd.f32 %v2657, 1e-05
      %v2690 = vadd.f32 %v2658, 1e-05
      %v2691 = vadd.f32 %v2659, 1e-05
      %v2692 = vadd.f32 %v2660, 1e-05
      %v2693 = vadd.f32 %v2661, 1e-05
      %v2694 = vadd.f32 %v2662, 1e-05
      %v2695 = vadd.f32 %v2663, 1e-05
      %v2696 = vadd.f32 %v2664, 1e-05
      %v2697 = vadd.f32 %v2665, 1e-05
      %v2698 = vadd.f32 %v2666, 1e-05
      %v2699 = vadd.f32 %v2667, 1e-05
      %v2700 = vadd.f32 %v2668, 1e-05
      %v2701 = vadd.f32 %v2669, 1e-05
      %v2702 = vadd.f32 %v2670, 1e-05
      %v2703 = vadd.f32 %v2671, 1e-05
      %v2704 = vadd.f32 %v2672, 1e-05
      %v2705 = vadd.f32 %v2673, 1e-05
      %v2706 = vadd.f32 %v2674, 1e-05
      %v2707 = vrsqrt.pop %v2675
      %v2708 = vrsqrt.pop %v2676
      %v2709 = vrsqrt.pop %v2677
      %v2710 = vrsqrt.pop %v2678
      %v2711 = vrsqrt.pop %v2679
      %v2712 = vrsqrt.pop %v2680
      %v2713 = vrsqrt.pop %v2681
      %v2714 = vrsqrt.pop %v2682
      %v2715 = vrsqrt.pop %v2683
      %v2716 = vrsqrt.pop %v2684
      %v2717 = vrsqrt.pop %v2685
      %v2718 = vrsqrt.pop %v2686
      %v2719 = vrsqrt.pop %v2687
      %v2720 = vrsqrt.pop %v2688
      %v2721 = vrsqrt.pop %v2689
      %v2722 = vrsqrt.pop %v2690
      %v2723 = vrsqrt.pop %v2691
      %v2724 = vrsqrt.pop %v2692
      %v2725 = vrsqrt.pop %v2693
      %v2726 = vrsqrt.pop %v2694
      %v2727 = vrsqrt.pop %v2695
      %v2728 = vrsqrt.pop %v2696
      %v2729 = vrsqrt.pop %v2697
      %v2730 = vrsqrt.pop %v2698
      %v2731 = vrsqrt.pop %v2699
      %v2732 = vrsqrt.pop %v2700
      %v2733 = vrsqrt.pop %v2701
      %v2734 = vrsqrt.pop %v2702
      %v2735 = vrsqrt.pop %v2703
      %v2736 = vrsqrt.pop %v2704
      %v2737 = vrsqrt.pop %v2705
      %v2738 = vrsqrt.pop %v2706
      %v2739 = vld [vmem:[%s280] sm:$0xff]
      %v2740 = vld [vmem:[%s280 + $0x8] sm:$0xff]
      %v2741 = vld [vmem:[%s280 + $0x10] sm:$0xff]
      %v2742 = vld [vmem:[%s280 + $0x18] sm:$0xff]
      %v2743 = vld [vmem:[%s280 + $0x20] sm:$0xff]
      %v2744 = vld [vmem:[%s280 + $0x28] sm:$0xff]
      %v2745 = vld [vmem:[%s280 + $0x30] sm:$0xff]
      %v2746 = vld [vmem:[%s280 + $0x38] sm:$0xff]
      %v2747 = vld [vmem:[%s280 + $0x40] sm:$0xff]
      %v2748 = vld [vmem:[%s280 + $0x48] sm:$0xff]
      %v2749 = vld [vmem:[%s280 + $0x50] sm:$0xff]
      %v2750 = vld [vmem:[%s280 + $0x58] sm:$0xff]
      %v2751 = vld [vmem:[%s280 + $0x60] sm:$0xff]
      %v2752 = vld [vmem:[%s280 + $0x68] sm:$0xff]
      %v2753 = vld [vmem:[%s280 + $0x70] sm:$0xff]
      %v2754 = vld [vmem:[%s280 + $0x78] sm:$0xff]
      %v2755 = vld [vmem:[%s280 + $0x80] sm:$0xff]
      %v2756 = vld [vmem:[%s280 + $0x88] sm:$0xff]
      %v2757 = vld [vmem:[%s280 + $0x90] sm:$0xff]
      %v2758 = vld [vmem:[%s280 + $0x98] sm:$0xff]
      %v2759 = vld [vmem:[%s280 + $0xa0] sm:$0xff]
      %v2760 = vld [vmem:[%s280 + $0xa8] sm:$0xff]
      %v2761 = vld [vmem:[%s280 + $0xb0] sm:$0xff]
      %v2762 = vld [vmem:[%s280 + $0xb8] sm:$0xff]
      %v2763 = vld [vmem:[%s280 + $0xc0] sm:$0xff]
      %v2764 = vld [vmem:[%s280 + $0xc8] sm:$0xff]
      %v2765 = vld [vmem:[%s280 + $0xd0] sm:$0xff]
      %v2766 = vld [vmem:[%s280 + $0xd8] sm:$0xff]
      %v2767 = vld [vmem:[%s280 + $0xe0] sm:$0xff]
      %v2768 = vld [vmem:[%s280 + $0xe8] sm:$0xff]
      %v2769 = vld [vmem:[%s280 + $0xf0] sm:$0xff]
      %v2770 = vld [vmem:[%s280 + $0xf8] sm:$0xff]
      %v2771 = vmul.f32 %v2707, %v2739
      %v2772 = vmul.f32 %v2708, %v2740
      %v2773 = vmul.f32 %v2709, %v2741
      %v2774 = vmul.f32 %v2710, %v2742
      %v2775 = vmul.f32 %v2711, %v2743
      %v2776 = vmul.f32 %v2712, %v2744
      %v2777 = vmul.f32 %v2713, %v2745
      %v2778 = vmul.f32 %v2714, %v2746
      %v2779 = vmul.f32 %v2715, %v2747
      %v2780 = vmul.f32 %v2716, %v2748
      %v2781 = vmul.f32 %v2717, %v2749
      %v2782 = vmul.f32 %v2718, %v2750
      %v2783 = vmul.f32 %v2719, %v2751
      %v2784 = vmul.f32 %v2720, %v2752
      %v2785 = vmul.f32 %v2721, %v2753
      %v2786 = vmul.f32 %v2722, %v2754
      %v2787 = vmul.f32 %v2723, %v2755
      %v2788 = vmul.f32 %v2724, %v2756
      %v2789 = vmul.f32 %v2725, %v2757
      %v2790 = vmul.f32 %v2726, %v2758
      %v2791 = vmul.f32 %v2727, %v2759
      %v2792 = vmul.f32 %v2728, %v2760
      %v2793 = vmul.f32 %v2729, %v2761
      %v2794 = vmul.f32 %v2730, %v2762
      %v2795 = vmul.f32 %v2731, %v2763
      %v2796 = vmul.f32 %v2732, %v2764
      %v2797 = vmul.f32 %v2733, %v2765
      %v2798 = vmul.f32 %v2734, %v2766
      %v2799 = vmul.f32 %v2735, %v2767
      %v2800 = vmul.f32 %v2736, %v2768
      %v2801 = vmul.f32 %v2737, %v2769
      %v2802 = vmul.f32 %v2738, %v2770
      %v2803 = vld [vmem:[%s286] sm:$0xff]
      %v2804 = vld [vmem:[%s286 + $0x8] sm:$0xff]
      %v2805 = vld [vmem:[%s286 + $0x10] sm:$0xff]
      %v2806 = vld [vmem:[%s286 + $0x18] sm:$0xff]
      %v2807 = vld [vmem:[%s286 + $0x20] sm:$0xff]
      %v2808 = vld [vmem:[%s286 + $0x28] sm:$0xff]
      %v2809 = vld [vmem:[%s286 + $0x30] sm:$0xff]
      %v2810 = vld [vmem:[%s286 + $0x38] sm:$0xff]
      %v2811 = vld [vmem:[%s286 + $0x40] sm:$0xff]
      %v2812 = vld [vmem:[%s286 + $0x48] sm:$0xff]
      %v2813 = vld [vmem:[%s286 + $0x50] sm:$0xff]
      %v2814 = vld [vmem:[%s286 + $0x58] sm:$0xff]
      %v2815 = vld [vmem:[%s286 + $0x60] sm:$0xff]
      %v2816 = vld [vmem:[%s286 + $0x68] sm:$0xff]
      %v2817 = vld [vmem:[%s286 + $0x70] sm:$0xff]
      %v2818 = vld [vmem:[%s286 + $0x78] sm:$0xff]
      %v2819 = vld [vmem:[%s286 + $0x80] sm:$0xff]
      %v2820 = vld [vmem:[%s286 + $0x88] sm:$0xff]
      %v2821 = vld [vmem:[%s286 + $0x90] sm:$0xff]
      %v2822 = vld [vmem:[%s286 + $0x98] sm:$0xff]
      %v2823 = vld [vmem:[%s286 + $0xa0] sm:$0xff]
      %v2824 = vld [vmem:[%s286 + $0xa8] sm:$0xff]
      %v2825 = vld [vmem:[%s286 + $0xb0] sm:$0xff]
      %v2826 = vld [vmem:[%s286 + $0xb8] sm:$0xff]
      %v2827 = vld [vmem:[%s286 + $0xc0] sm:$0xff]
      %v2828 = vld [vmem:[%s286 + $0xc8] sm:$0xff]
      %v2829 = vld [vmem:[%s286 + $0xd0] sm:$0xff]
      %v2830 = vld [vmem:[%s286 + $0xd8] sm:$0xff]
      %v2831 = vld [vmem:[%s286 + $0xe0] sm:$0xff]
      %v2832 = vld [vmem:[%s286 + $0xe8] sm:$0xff]
      %v2833 = vld [vmem:[%s286 + $0xf0] sm:$0xff]
      %v2834 = vld [vmem:[%s286 + $0xf8] sm:$0xff]
      %v2835 = vmul.f32 %v1875, %v2771
      %v2836 = vmul.f32 %v1876, %v2772
      %v2837 = vmul.f32 %v1877, %v2773
      %v2838 = vmul.f32 %v1878, %v2774
      %v2839 = vmul.f32 %v1879, %v2775
      %v2840 = vmul.f32 %v1880, %v2776
      %v2841 = vmul.f32 %v1881, %v2777
      %v2842 = vmul.f32 %v1882, %v2778
      %v2843 = vmul.f32 %v1883, %v2779
      %v2844 = vmul.f32 %v1884, %v2780
      %v2845 = vmul.f32 %v1885, %v2781
      %v2846 = vmul.f32 %v1886, %v2782
      %v2847 = vmul.f32 %v1887, %v2783
      %v2848 = vmul.f32 %v1888, %v2784
      %v2849 = vmul.f32 %v1889, %v2785
      %v2850 = vmul.f32 %v1890, %v2786
      %v2851 = vmul.f32 %v1891, %v2787
      %v2852 = vmul.f32 %v1892, %v2788
      %v2853 = vmul.f32 %v1893, %v2789
      %v2854 = vmul.f32 %v1894, %v2790
      %v2855 = vmul.f32 %v1895, %v2791
      %v2856 = vmul.f32 %v1896, %v2792
      %v2857 = vmul.f32 %v1897, %v2793
      %v2858 = vmul.f32 %v1898, %v2794
      %v2859 = vmul.f32 %v1899, %v2795
      %v2860 = vmul.f32 %v1900, %v2796
      %v2861 = vmul.f32 %v1901, %v2797
      %v2862 = vmul.f32 %v1902, %v2798
      %v2863 = vmul.f32 %v1903, %v2799
      %v2864 = vmul.f32 %v1904, %v2800
      %v2865 = vmul.f32 %v1905, %v2801
      %v2866 = vmul.f32 %v1906, %v2802
      %v2867 = vsub.f32 %v2803, %v2835
      %v2868 = vsub.f32 %v2804, %v2836
      %v2869 = vsub.f32 %v2805, %v2837
      %v2870 = vsub.f32 %v2806, %v2838
      %v2871 = vsub.f32 %v2807, %v2839
      %v2872 = vsub.f32 %v2808, %v2840
      %v2873 = vsub.f32 %v2809, %v2841
      %v2874 = vsub.f32 %v2810, %v2842
      %v2875 = vsub.f32 %v2811, %v2843
      %v2876 = vsub.f32 %v2812, %v2844
      %v2877 = vsub.f32 %v2813, %v2845
      %v2878 = vsub.f32 %v2814, %v2846
      %v2879 = vsub.f32 %v2815, %v2847
      %v2880 = vsub.f32 %v2816, %v2848
      %v2881 = vsub.f32 %v2817, %v2849
      %v2882 = vsub.f32 %v2818, %v2850
      %v2883 = vsub.f32 %v2819, %v2851
      %v2884 = vsub.f32 %v2820, %v2852
      %v2885 = vsub.f32 %v2821, %v2853
      %v2886 = vsub.f32 %v2822, %v2854
      %v2887 = vsub.f32 %v2823, %v2855
      %v2888 = vsub.f32 %v2824, %v2856
      %v2889 = vsub.f32 %v2825, %v2857
      %v2890 = vsub.f32 %v2826, %v2858
      %v2891 = vsub.f32 %v2827, %v2859
      %v2892 = vsub.f32 %v2828, %v2860
      %v2893 = vsub.f32 %v2829, %v2861
      %v2894 = vsub.f32 %v2830, %v2862
      %v2895 = vsub.f32 %v2831, %v2863
      %v2896 = vsub.f32 %v2832, %v2864
      %v2897 = vsub.f32 %v2833, %v2865
      %v2898 = vsub.f32 %v2834, %v2866
      %2900 = vset.pattern.permute.xlu0 0
      %2901 = vperm.xlu0 %2900, %v2771
      %v2902 = vpop.permute.xlu0 %2901
      %2905 = vset.pattern.permute.xlu0 0
      %2906 = vperm.xlu0 %2905, %v2772
      %v2907 = vpop.permute.xlu0 %2906
      %2910 = vset.pattern.permute.xlu0 0
      %2911 = vperm.xlu0 %2910, %v2773
      %v2912 = vpop.permute.xlu0 %2911
      %2915 = vset.pattern.permute.xlu0 0
      %2916 = vperm.xlu0 %2915, %v2774
      %v2917 = vpop.permute.xlu0 %2916
      %2920 = vset.pattern.permute.xlu0 0
      %2921 = vperm.xlu0 %2920, %v2775
      %v2922 = vpop.permute.xlu0 %2921
      %2925 = vset.pattern.permute.xlu0 0
      %2926 = vperm.xlu0 %2925, %v2776
      %v2927 = vpop.permute.xlu0 %2926
      %2930 = vset.pattern.permute.xlu0 0
      %2931 = vperm.xlu0 %2930, %v2777
      %v2932 = vpop.permute.xlu0 %2931
      %2935 = vset.pattern.permute.xlu0 0
      %2936 = vperm.xlu0 %2935, %v2778
      %v2937 = vpop.permute.xlu0 %2936
      %2940 = vset.pattern.permute.xlu0 0
      %2941 = vperm.xlu0 %2940, %v2779
      %v2942 = vpop.permute.xlu0 %2941
      %2945 = vset.pattern.permute.xlu0 0
      %2946 = vperm.xlu0 %2945, %v2780
      %v2947 = vpop.permute.xlu0 %2946
      %2950 = vset.pattern.permute.xlu0 0
      %2951 = vperm.xlu0 %2950, %v2781
      %v2952 = vpop.permute.xlu0 %2951
      %2955 = vset.pattern.permute.xlu0 0
      %2956 = vperm.xlu0 %2955, %v2782
      %v2957 = vpop.permute.xlu0 %2956
      %2960 = vset.pattern.permute.xlu0 0
      %2961 = vperm.xlu0 %2960, %v2783
      %v2962 = vpop.permute.xlu0 %2961
      %2965 = vset.pattern.permute.xlu0 0
      %2966 = vperm.xlu0 %2965, %v2784
      %v2967 = vpop.permute.xlu0 %2966
      %2970 = vset.pattern.permute.xlu0 0
      %2971 = vperm.xlu0 %2970, %v2785
      %v2972 = vpop.permute.xlu0 %2971
      %2975 = vset.pattern.permute.xlu0 0
      %2976 = vperm.xlu0 %2975, %v2786
      %v2977 = vpop.permute.xlu0 %2976
      %2980 = vset.pattern.permute.xlu0 0
      %2981 = vperm.xlu0 %2980, %v2787
      %v2982 = vpop.permute.xlu0 %2981
      %2985 = vset.pattern.permute.xlu0 0
      %2986 = vperm.xlu0 %2985, %v2788
      %v2987 = vpop.permute.xlu0 %2986
      %2990 = vset.pattern.permute.xlu0 0
      %2991 = vperm.xlu0 %2990, %v2789
      %v2992 = vpop.permute.xlu0 %2991
      %2995 = vset.pattern.permute.xlu0 0
      %2996 = vperm.xlu0 %2995, %v2790
      %v2997 = vpop.permute.xlu0 %2996
      %3000 = vset.pattern.permute.xlu0 0
      %3001 = vperm.xlu0 %3000, %v2791
      %v3002 = vpop.permute.xlu0 %3001
      %3005 = vset.pattern.permute.xlu0 0
      %3006 = vperm.xlu0 %3005, %v2792
      %v3007 = vpop.permute.xlu0 %3006
      %3010 = vset.pattern.permute.xlu0 0
      %3011 = vperm.xlu0 %3010, %v2793
      %v3012 = vpop.permute.xlu0 %3011
      %3015 = vset.pattern.permute.xlu0 0
      %3016 = vperm.xlu0 %3015, %v2794
      %v3017 = vpop.permute.xlu0 %3016
      %3020 = vset.pattern.permute.xlu0 0
      %3021 = vperm.xlu0 %3020, %v2795
      %v3022 = vpop.permute.xlu0 %3021
      %3025 = vset.pattern.permute.xlu0 0
      %3026 = vperm.xlu0 %3025, %v2796
      %v3027 = vpop.permute.xlu0 %3026
      %3030 = vset.pattern.permute.xlu0 0
      %3031 = vperm.xlu0 %3030, %v2797
      %v3032 = vpop.permute.xlu0 %3031
      %3035 = vset.pattern.permute.xlu0 0
      %3036 = vperm.xlu0 %3035, %v2798
      %v3037 = vpop.permute.xlu0 %3036
      %3040 = vset.pattern.permute.xlu0 0
      %3041 = vperm.xlu0 %3040, %v2799
      %v3042 = vpop.permute.xlu0 %3041
      %3045 = vset.pattern.permute.xlu0 0
      %3046 = vperm.xlu0 %3045, %v2800
      %v3047 = vpop.permute.xlu0 %3046
      %3050 = vset.pattern.permute.xlu0 0
      %3051 = vperm.xlu0 %3050, %v2801
      %v3052 = vpop.permute.xlu0 %3051
      %3055 = vset.pattern.permute.xlu0 0
      %3056 = vperm.xlu0 %3055, %v2802
      %v3057 = vpop.permute.xlu0 %3056
      %v3059 = vmul.f32 %v657, %v2902
      %v3060 = vmul.f32 %v659, %v2902
      %v3061 = vmul.f32 %v914, %v2902
      %v3062 = vmul.f32 %v916, %v2902
      %v3063 = vmul.f32 %v1171, %v2902
      %v3064 = vmul.f32 %v1173, %v2902
      %v3065 = vmul.f32 %v1428, %v2902
      %v3066 = vmul.f32 %v663, %v2907
      %v3067 = vmul.f32 %v665, %v2907
      %v3068 = vmul.f32 %v920, %v2907
      %v3069 = vmul.f32 %v922, %v2907
      %v3070 = vmul.f32 %v1177, %v2907
      %v3071 = vmul.f32 %v1179, %v2907
      %v3072 = vmul.f32 %v1433, %v2907
      %v3073 = vmul.f32 %v669, %v2912
      %v3074 = vmul.f32 %v671, %v2912
      %v3075 = vmul.f32 %v926, %v2912
      %v3076 = vmul.f32 %v928, %v2912
      %v3077 = vmul.f32 %v1183, %v2912
      %v3078 = vmul.f32 %v1185, %v2912
      %v3079 = vmul.f32 %v1438, %v2912
      %v3080 = vmul.f32 %v675, %v2917
      %v3081 = vmul.f32 %v677, %v2917
      %v3082 = vmul.f32 %v932, %v2917
      %v3083 = vmul.f32 %v934, %v2917
      %v3084 = vmul.f32 %v1189, %v2917
      %v3085 = vmul.f32 %v1191, %v2917
      %v3086 = vmul.f32 %v1443, %v2917
      %v3087 = vmul.f32 %v681, %v2922
      %v3088 = vmul.f32 %v683, %v2922
      %v3089 = vmul.f32 %v938, %v2922
      %v3090 = vmul.f32 %v940, %v2922
      %v3091 = vmul.f32 %v1195, %v2922
      %v3092 = vmul.f32 %v1197, %v2922
      %v3093 = vmul.f32 %v1448, %v2922
      %v3094 = vmul.f32 %v687, %v2927
      %v3095 = vmul.f32 %v689, %v2927
      %v3096 = vmul.f32 %v944, %v2927
      %v3097 = vmul.f32 %v946, %v2927
      %v3098 = vmul.f32 %v1201, %v2927
      %v3099 = vmul.f32 %v1203, %v2927
      %v3100 = vmul.f32 %v1453, %v2927
      %v3101 = vmul.f32 %v693, %v2932
      %v3102 = vmul.f32 %v695, %v2932
      %v3103 = vmul.f32 %v950, %v2932
      %v3104 = vmul.f32 %v952, %v2932
      %v3105 = vmul.f32 %v1207, %v2932
      %v3106 = vmul.f32 %v1209, %v2932
      %v3107 = vmul.f32 %v1458, %v2932
      %v3108 = vmul.f32 %v699, %v2937
      %v3109 = vmul.f32 %v701, %v2937
      %v3110 = vmul.f32 %v956, %v2937
      %v3111 = vmul.f32 %v958, %v2937
      %v3112 = vmul.f32 %v1213, %v2937
      %v3113 = vmul.f32 %v1215, %v2937
      %v3114 = vmul.f32 %v1463, %v2937
      %v3115 = vmul.f32 %v705, %v2942
      %v3116 = vmul.f32 %v707, %v2942
      %v3117 = vmul.f32 %v962, %v2942
      %v3118 = vmul.f32 %v964, %v2942
      %v3119 = vmul.f32 %v1219, %v2942
      %v3120 = vmul.f32 %v1221, %v2942
      %v3121 = vmul.f32 %v1468, %v2942
      %v3122 = vmul.f32 %v711, %v2947
      %v3123 = vmul.f32 %v713, %v2947
      %v3124 = vmul.f32 %v968, %v2947
      %v3125 = vmul.f32 %v970, %v2947
      %v3126 = vmul.f32 %v1225, %v2947
      %v3127 = vmul.f32 %v1227, %v2947
      %v3128 = vmul.f32 %v1473, %v2947
      %v3129 = vmul.f32 %v717, %v2952
      %v3130 = vmul.f32 %v719, %v2952
      %v3131 = vmul.f32 %v974, %v2952
      %v3132 = vmul.f32 %v976, %v2952
      %v3133 = vmul.f32 %v1231, %v2952
      %v3134 = vmul.f32 %v1233, %v2952
      %v3135 = vmul.f32 %v1478, %v2952
      %v3136 = vmul.f32 %v723, %v2957
      %v3137 = vmul.f32 %v725, %v2957
      %v3138 = vmul.f32 %v980, %v2957
      %v3139 = vmul.f32 %v982, %v2957
      %v3140 = vmul.f32 %v1237, %v2957
      %v3141 = vmul.f32 %v1239, %v2957
      %v3142 = vmul.f32 %v1483, %v2957
      %v3143 = vmul.f32 %v729, %v2962
      %v3144 = vmul.f32 %v731, %v2962
      %v3145 = vmul.f32 %v986, %v2962
      %v3146 = vmul.f32 %v988, %v2962
      %v3147 = vmul.f32 %v1243, %v2962
      %v3148 = vmul.f32 %v1245, %v2962
      %v3149 = vmul.f32 %v1488, %v2962
      %v3150 = vmul.f32 %v735, %v2967
      %v3151 = vmul.f32 %v737, %v2967
      %v3152 = vmul.f32 %v992, %v2967
      %v3153 = vmul.f32 %v994, %v2967
      %v3154 = vmul.f32 %v1249, %v2967
      %v3155 = vmul.f32 %v1251, %v2967
      %v3156 = vmul.f32 %v1493, %v2967
      %v3157 = vmul.f32 %v741, %v2972
      %v3158 = vmul.f32 %v743, %v2972
      %v3159 = vmul.f32 %v998, %v2972
      %v3160 = vmul.f32 %v1000, %v2972
      %v3161 = vmul.f32 %v1255, %v2972
      %v3162 = vmul.f32 %v1257, %v2972
      %v3163 = vmul.f32 %v1498, %v2972
      %v3164 = vmul.f32 %v747, %v2977
      %v3165 = vmul.f32 %v749, %v2977
      %v3166 = vmul.f32 %v1004, %v2977
      %v3167 = vmul.f32 %v1006, %v2977
      %v3168 = vmul.f32 %v1261, %v2977
      %v3169 = vmul.f32 %v1263, %v2977
      %v3170 = vmul.f32 %v1503, %v2977
      %v3171 = vmul.f32 %v753, %v2982
      %v3172 = vmul.f32 %v755, %v2982
      %v3173 = vmul.f32 %v1010, %v2982
      %v3174 = vmul.f32 %v1012, %v2982
      %v3175 = vmul.f32 %v1267, %v2982
      %v3176 = vmul.f32 %v1269, %v2982
      %v3177 = vmul.f32 %v1508, %v2982
      %v3178 = vmul.f32 %v759, %v2987
      %v3179 = vmul.f32 %v761, %v2987
      %v3180 = vmul.f32 %v1016, %v2987
      %v3181 = vmul.f32 %v1018, %v2987
      %v3182 = vmul.f32 %v1273, %v2987
      %v3183 = vmul.f32 %v1275, %v2987
      %v3184 = vmul.f32 %v1513, %v2987
      %v3185 = vmul.f32 %v765, %v2992
      %v3186 = vmul.f32 %v767, %v2992
      %v3187 = vmul.f32 %v1022, %v2992
      %v3188 = vmul.f32 %v1024, %v2992
      %v3189 = vmul.f32 %v1279, %v2992
      %v3190 = vmul.f32 %v1281, %v2992
      %v3191 = vmul.f32 %v1518, %v2992
      %v3192 = vmul.f32 %v771, %v2997
      %v3193 = vmul.f32 %v773, %v2997
      %v3194 = vmul.f32 %v1028, %v2997
      %v3195 = vmul.f32 %v1030, %v2997
      %v3196 = vmul.f32 %v1285, %v2997
      %v3197 = vmul.f32 %v1287, %v2997
      %v3198 = vmul.f32 %v1523, %v2997
      %v3199 = vmul.f32 %v777, %v3002
      %v3200 = vmul.f32 %v779, %v3002
      %v3201 = vmul.f32 %v1034, %v3002
      %v3202 = vmul.f32 %v1036, %v3002
      %v3203 = vmul.f32 %v1291, %v3002
      %v3204 = vmul.f32 %v1293, %v3002
      %v3205 = vmul.f32 %v1528, %v3002
      %v3206 = vmul.f32 %v783, %v3007
      %v3207 = vmul.f32 %v785, %v3007
      %v3208 = vmul.f32 %v1040, %v3007
      %v3209 = vmul.f32 %v1042, %v3007
      %v3210 = vmul.f32 %v1297, %v3007
      %v3211 = vmul.f32 %v1299, %v3007
      %v3212 = vmul.f32 %v1533, %v3007
      %v3213 = vmul.f32 %v789, %v3012
      %v3214 = vmul.f32 %v791, %v3012
      %v3215 = vmul.f32 %v1046, %v3012
      %v3216 = vmul.f32 %v1048, %v3012
      %v3217 = vmul.f32 %v1303, %v3012
      %v3218 = vmul.f32 %v1305, %v3012
      %v3219 = vmul.f32 %v1538, %v3012
      %v3220 = vmul.f32 %v795, %v3017
      %v3221 = vmul.f32 %v797, %v3017
      %v3222 = vmul.f32 %v1052, %v3017
      %v3223 = vmul.f32 %v1054, %v3017
      %v3224 = vmul.f32 %v1309, %v3017
      %v3225 = vmul.f32 %v1311, %v3017
      %v3226 = vmul.f32 %v1543, %v3017
      %v3227 = vmul.f32 %v801, %v3022
      %v3228 = vmul.f32 %v803, %v3022
      %v3229 = vmul.f32 %v1058, %v3022
      %v3230 = vmul.f32 %v1060, %v3022
      %v3231 = vmul.f32 %v1315, %v3022
      %v3232 = vmul.f32 %v1317, %v3022
      %v3233 = vmul.f32 %v1548, %v3022
      %v3234 = vmul.f32 %v807, %v3027
      %v3235 = vmul.f32 %v809, %v3027
      %v3236 = vmul.f32 %v1064, %v3027
      %v3237 = vmul.f32 %v1066, %v3027
      %v3238 = vmul.f32 %v1321, %v3027
      %v3239 = vmul.f32 %v1323, %v3027
      %v3240 = vmul.f32 %v1553, %v3027
      %v3241 = vmul.f32 %v813, %v3032
      %v3242 = vmul.f32 %v815, %v3032
      %v3243 = vmul.f32 %v1070, %v3032
      %v3244 = vmul.f32 %v1072, %v3032
      %v3245 = vmul.f32 %v1327, %v3032
      %v3246 = vmul.f32 %v1329, %v3032
      %v3247 = vmul.f32 %v1558, %v3032
      %v3248 = vmul.f32 %v819, %v3037
      %v3249 = vmul.f32 %v821, %v3037
      %v3250 = vmul.f32 %v1076, %v3037
      %v3251 = vmul.f32 %v1078, %v3037
      %v3252 = vmul.f32 %v1333, %v3037
      %v3253 = vmul.f32 %v1335, %v3037
      %v3254 = vmul.f32 %v1563, %v3037
      %v3255 = vmul.f32 %v825, %v3042
      %v3256 = vmul.f32 %v827, %v3042
      %v3257 = vmul.f32 %v1082, %v3042
      %v3258 = vmul.f32 %v1084, %v3042
      %v3259 = vmul.f32 %v1339, %v3042
      %v3260 = vmul.f32 %v1341, %v3042
      %v3261 = vmul.f32 %v1568, %v3042
      %v3262 = vmul.f32 %v831, %v3047
      %v3263 = vmul.f32 %v833, %v3047
      %v3264 = vmul.f32 %v1088, %v3047
      %v3265 = vmul.f32 %v1090, %v3047
      %v3266 = vmul.f32 %v1345, %v3047
      %v3267 = vmul.f32 %v1347, %v3047
      %v3268 = vmul.f32 %v1573, %v3047
      %v3269 = vmul.f32 %v837, %v3052
      %v3270 = vmul.f32 %v839, %v3052
      %v3271 = vmul.f32 %v1094, %v3052
      %v3272 = vmul.f32 %v1096, %v3052
      %v3273 = vmul.f32 %v1351, %v3052
      %v3274 = vmul.f32 %v1353, %v3052
      %v3275 = vmul.f32 %v1578, %v3052
      %v3276 = vmul.f32 %v843, %v3057
      %v3277 = vmul.f32 %v845, %v3057
      %v3278 = vmul.f32 %v1100, %v3057
      %v3279 = vmul.f32 %v1102, %v3057
      %v3280 = vmul.f32 %v1357, %v3057
      %v3281 = vmul.f32 %v1359, %v3057
      %v3282 = vmul.f32 %v1583, %v3057
      %3284 = vset.pattern.permute.xlu0 0
      %3285 = vperm.xlu0 %3284, %v2867
      %v3286 = vpop.permute.xlu0 %3285
      %3289 = vset.pattern.permute.xlu0 0
      %3290 = vperm.xlu0 %3289, %v2868
      %v3291 = vpop.permute.xlu0 %3290
      %3294 = vset.pattern.permute.xlu0 0
      %3295 = vperm.xlu0 %3294, %v2869
      %v3296 = vpop.permute.xlu0 %3295
      %3299 = vset.pattern.permute.xlu0 0
      %3300 = vperm.xlu0 %3299, %v2870
      %v3301 = vpop.permute.xlu0 %3300
      %3304 = vset.pattern.permute.xlu0 0
      %3305 = vperm.xlu0 %3304, %v2871
      %v3306 = vpop.permute.xlu0 %3305
      %3309 = vset.pattern.permute.xlu0 0
      %3310 = vperm.xlu0 %3309, %v2872
      %v3311 = vpop.permute.xlu0 %3310
      %3314 = vset.pattern.permute.xlu0 0
      %3315 = vperm.xlu0 %3314, %v2873
      %v3316 = vpop.permute.xlu0 %3315
      %3319 = vset.pattern.permute.xlu0 0
      %3320 = vperm.xlu0 %3319, %v2874
      %v3321 = vpop.permute.xlu0 %3320
      %3324 = vset.pattern.permute.xlu0 0
      %3325 = vperm.xlu0 %3324, %v2875
      %v3326 = vpop.permute.xlu0 %3325
      %3329 = vset.pattern.permute.xlu0 0
      %3330 = vperm.xlu0 %3329, %v2876
      %v3331 = vpop.permute.xlu0 %3330
      %3334 = vset.pattern.permute.xlu0 0
      %3335 = vperm.xlu0 %3334, %v2877
      %v3336 = vpop.permute.xlu0 %3335
      %3339 = vset.pattern.permute.xlu0 0
      %3340 = vperm.xlu0 %3339, %v2878
      %v3341 = vpop.permute.xlu0 %3340
      %3344 = vset.pattern.permute.xlu0 0
      %3345 = vperm.xlu0 %3344, %v2879
      %v3346 = vpop.permute.xlu0 %3345
      %3349 = vset.pattern.permute.xlu0 0
      %3350 = vperm.xlu0 %3349, %v2880
      %v3351 = vpop.permute.xlu0 %3350
      %3354 = vset.pattern.permute.xlu0 0
      %3355 = vperm.xlu0 %3354, %v2881
      %v3356 = vpop.permute.xlu0 %3355
      %3359 = vset.pattern.permute.xlu0 0
      %3360 = vperm.xlu0 %3359, %v2882
      %v3361 = vpop.permute.xlu0 %3360
      %3364 = vset.pattern.permute.xlu0 0
      %3365 = vperm.xlu0 %3364, %v2883
      %v3366 = vpop.permute.xlu0 %3365
      %3369 = vset.pattern.permute.xlu0 0
      %3370 = vperm.xlu0 %3369, %v2884
      %v3371 = vpop.permute.xlu0 %3370
      %3374 = vset.pattern.permute.xlu0 0
      %3375 = vperm.xlu0 %3374, %v2885
      %v3376 = vpop.permute.xlu0 %3375
      %3379 = vset.pattern.permute.xlu0 0
      %3380 = vperm.xlu0 %3379, %v2886
      %v3381 = vpop.permute.xlu0 %3380
      %3384 = vset.pattern.permute.xlu0 0
      %3385 = vperm.xlu0 %3384, %v2887
      %v3386 = vpop.permute.xlu0 %3385
      %3389 = vset.pattern.permute.xlu0 0
      %3390 = vperm.xlu0 %3389, %v2888
      %v3391 = vpop.permute.xlu0 %3390
      %3394 = vset.pattern.permute.xlu0 0
      %3395 = vperm.xlu0 %3394, %v2889
      %v3396 = vpop.permute.xlu0 %3395
      %3399 = vset.pattern.permute.xlu0 0
      %3400 = vperm.xlu0 %3399, %v2890
      %v3401 = vpop.permute.xlu0 %3400
      %3404 = vset.pattern.permute.xlu0 0
      %3405 = vperm.xlu0 %3404, %v2891
      %v3406 = vpop.permute.xlu0 %3405
      %3409 = vset.pattern.permute.xlu0 0
      %3410 = vperm.xlu0 %3409, %v2892
      %v3411 = vpop.permute.xlu0 %3410
      %3414 = vset.pattern.permute.xlu0 0
      %3415 = vperm.xlu0 %3414, %v2893
      %v3416 = vpop.permute.xlu0 %3415
      %3419 = vset.pattern.permute.xlu0 0
      %3420 = vperm.xlu0 %3419, %v2894
      %v3421 = vpop.permute.xlu0 %3420
      %3424 = vset.pattern.permute.xlu0 0
      %3425 = vperm.xlu0 %3424, %v2895
      %v3426 = vpop.permute.xlu0 %3425
      %3429 = vset.pattern.permute.xlu0 0
      %3430 = vperm.xlu0 %3429, %v2896
      %v3431 = vpop.permute.xlu0 %3430
      %3434 = vset.pattern.permute.xlu0 0
      %3435 = vperm.xlu0 %3434, %v2897
      %v3436 = vpop.permute.xlu0 %3435
      %3439 = vset.pattern.permute.xlu0 0
      %3440 = vperm.xlu0 %3439, %v2898
      %v3441 = vpop.permute.xlu0 %3440
      %v3443 = vadd.f32 %v3059, %v3286
      %v3444 = vadd.f32 %v3060, %v3286
      %v3445 = vadd.f32 %v3061, %v3286
      %v3446 = vadd.f32 %v3062, %v3286
      %v3447 = vadd.f32 %v3063, %v3286
      %v3448 = vadd.f32 %v3064, %v3286
      %v3449 = vadd.f32 %v3065, %v3286
      %v3450 = vadd.f32 %v3066, %v3291
      %v3451 = vadd.f32 %v3067, %v3291
      %v3452 = vadd.f32 %v3068, %v3291
      %v3453 = vadd.f32 %v3069, %v3291
      %v3454 = vadd.f32 %v3070, %v3291
      %v3455 = vadd.f32 %v3071, %v3291
      %v3456 = vadd.f32 %v3072, %v3291
      %v3457 = vadd.f32 %v3073, %v3296
      %v3458 = vadd.f32 %v3074, %v3296
      %v3459 = vadd.f32 %v3075, %v3296
      %v3460 = vadd.f32 %v3076, %v3296
      %v3461 = vadd.f32 %v3077, %v3296
      %v3462 = vadd.f32 %v3078, %v3296
      %v3463 = vadd.f32 %v3079, %v3296
      %v3464 = vadd.f32 %v3080, %v3301
      %v3465 = vadd.f32 %v3081, %v3301
      %v3466 = vadd.f32 %v3082, %v3301
      %v3467 = vadd.f32 %v3083, %v3301
      %v3468 = vadd.f32 %v3084, %v3301
      %v3469 = vadd.f32 %v3085, %v3301
      %v3470 = vadd.f32 %v3086, %v3301
      %v3471 = vadd.f32 %v3087, %v3306
      %v3472 = vadd.f32 %v3088, %v3306
      %v3473 = vadd.f32 %v3089, %v3306
      %v3474 = vadd.f32 %v3090, %v3306
      %v3475 = vadd.f32 %v3091, %v3306
      %v3476 = vadd.f32 %v3092, %v3306
      %v3477 = vadd.f32 %v3093, %v3306
      %v3478 = vadd.f32 %v3094, %v3311
      %v3479 = vadd.f32 %v3095, %v3311
      %v3480 = vadd.f32 %v3096, %v3311
      %v3481 = vadd.f32 %v3097, %v3311
      %v3482 = vadd.f32 %v3098, %v3311
      %v3483 = vadd.f32 %v3099, %v3311
      %v3484 = vadd.f32 %v3100, %v3311
      %v3485 = vadd.f32 %v3101, %v3316
      %v3486 = vadd.f32 %v3102, %v3316
      %v3487 = vadd.f32 %v3103, %v3316
      %v3488 = vadd.f32 %v3104, %v3316
      %v3489 = vadd.f32 %v3105, %v3316
      %v3490 = vadd.f32 %v3106, %v3316
      %v3491 = vadd.f32 %v3107, %v3316
      %v3492 = vadd.f32 %v3108, %v3321
      %v3493 = vadd.f32 %v3109, %v3321
      %v3494 = vadd.f32 %v3110, %v3321
      %v3495 = vadd.f32 %v3111, %v3321
      %v3496 = vadd.f32 %v3112, %v3321
      %v3497 = vadd.f32 %v3113, %v3321
      %v3498 = vadd.f32 %v3114, %v3321
      %v3499 = vadd.f32 %v3115, %v3326
      %v3500 = vadd.f32 %v3116, %v3326
      %v3501 = vadd.f32 %v3117, %v3326
      %v3502 = vadd.f32 %v3118, %v3326
      %v3503 = vadd.f32 %v3119, %v3326
      %v3504 = vadd.f32 %v3120, %v3326
      %v3505 = vadd.f32 %v3121, %v3326
      %v3506 = vadd.f32 %v3122, %v3331
      %v3507 = vadd.f32 %v3123, %v3331
      %v3508 = vadd.f32 %v3124, %v3331
      %v3509 = vadd.f32 %v3125, %v3331
      %v3510 = vadd.f32 %v3126, %v3331
      %v3511 = vadd.f32 %v3127, %v3331
      %v3512 = vadd.f32 %v3128, %v3331
      %v3513 = vadd.f32 %v3129, %v3336
      %v3514 = vadd.f32 %v3130, %v3336
      %v3515 = vadd.f32 %v3131, %v3336
      %v3516 = vadd.f32 %v3132, %v3336
      %v3517 = vadd.f32 %v3133, %v3336
      %v3518 = vadd.f32 %v3134, %v3336
      %v3519 = vadd.f32 %v3135, %v3336
      %v3520 = vadd.f32 %v3136, %v3341
      %v3521 = vadd.f32 %v3137, %v3341
      %v3522 = vadd.f32 %v3138, %v3341
      %v3523 = vadd.f32 %v3139, %v3341
      %v3524 = vadd.f32 %v3140, %v3341
      %v3525 = vadd.f32 %v3141, %v3341
      %v3526 = vadd.f32 %v3142, %v3341
      %v3527 = vadd.f32 %v3143, %v3346
      %v3528 = vadd.f32 %v3144, %v3346
      %v3529 = vadd.f32 %v3145, %v3346
      %v3530 = vadd.f32 %v3146, %v3346
      %v3531 = vadd.f32 %v3147, %v3346
      %v3532 = vadd.f32 %v3148, %v3346
      %v3533 = vadd.f32 %v3149, %v3346
      %v3534 = vadd.f32 %v3150, %v3351
      %v3535 = vadd.f32 %v3151, %v3351
      %v3536 = vadd.f32 %v3152, %v3351
      %v3537 = vadd.f32 %v3153, %v3351
      %v3538 = vadd.f32 %v3154, %v3351
      %v3539 = vadd.f32 %v3155, %v3351
      %v3540 = vadd.f32 %v3156, %v3351
      %v3541 = vadd.f32 %v3157, %v3356
      %v3542 = vadd.f32 %v3158, %v3356
      %v3543 = vadd.f32 %v3159, %v3356
      %v3544 = vadd.f32 %v3160, %v3356
      %v3545 = vadd.f32 %v3161, %v3356
      %v3546 = vadd.f32 %v3162, %v3356
      %v3547 = vadd.f32 %v3163, %v3356
      %v3548 = vadd.f32 %v3164, %v3361
      %v3549 = vadd.f32 %v3165, %v3361
      %v3550 = vadd.f32 %v3166, %v3361
      %v3551 = vadd.f32 %v3167, %v3361
      %v3552 = vadd.f32 %v3168, %v3361
      %v3553 = vadd.f32 %v3169, %v3361
      %v3554 = vadd.f32 %v3170, %v3361
      %v3555 = vadd.f32 %v3171, %v3366
      %v3556 = vadd.f32 %v3172, %v3366
      %v3557 = vadd.f32 %v3173, %v3366
      %v3558 = vadd.f32 %v3174, %v3366
      %v3559 = vadd.f32 %v3175, %v3366
      %v3560 = vadd.f32 %v3176, %v3366
      %v3561 = vadd.f32 %v3177, %v3366
      %v3562 = vadd.f32 %v3178, %v3371
      %v3563 = vadd.f32 %v3179, %v3371
      %v3564 = vadd.f32 %v3180, %v3371
      %v3565 = vadd.f32 %v3181, %v3371
      %v3566 = vadd.f32 %v3182, %v3371
      %v3567 = vadd.f32 %v3183, %v3371
      %v3568 = vadd.f32 %v3184, %v3371
      %v3569 = vadd.f32 %v3185, %v3376
      %v3570 = vadd.f32 %v3186, %v3376
      %v3571 = vadd.f32 %v3187, %v3376
      %v3572 = vadd.f32 %v3188, %v3376
      %v3573 = vadd.f32 %v3189, %v3376
      %v3574 = vadd.f32 %v3190, %v3376
      %v3575 = vadd.f32 %v3191, %v3376
      %v3576 = vadd.f32 %v3192, %v3381
      %v3577 = vadd.f32 %v3193, %v3381
      %v3578 = vadd.f32 %v3194, %v3381
      %v3579 = vadd.f32 %v3195, %v3381
      %v3580 = vadd.f32 %v3196, %v3381
      %v3581 = vadd.f32 %v3197, %v3381
      %v3582 = vadd.f32 %v3198, %v3381
      %v3583 = vadd.f32 %v3199, %v3386
      %v3584 = vadd.f32 %v3200, %v3386
      %v3585 = vadd.f32 %v3201, %v3386
      %v3586 = vadd.f32 %v3202, %v3386
      %v3587 = vadd.f32 %v3203, %v3386
      %v3588 = vadd.f32 %v3204, %v3386
      %v3589 = vadd.f32 %v3205, %v3386
      %v3590 = vadd.f32 %v3206, %v3391
      %v3591 = vadd.f32 %v3207, %v3391
      %v3592 = vadd.f32 %v3208, %v3391
      %v3593 = vadd.f32 %v3209, %v3391
      %v3594 = vadd.f32 %v3210, %v3391
      %v3595 = vadd.f32 %v3211, %v3391
      %v3596 = vadd.f32 %v3212, %v3391
      %v3597 = vadd.f32 %v3213, %v3396
      %v3598 = vadd.f32 %v3214, %v3396
      %v3599 = vadd.f32 %v3215, %v3396
      %v3600 = vadd.f32 %v3216, %v3396
      %v3601 = vadd.f32 %v3217, %v3396
      %v3602 = vadd.f32 %v3218, %v3396
      %v3603 = vadd.f32 %v3219, %v3396
      %v3604 = vadd.f32 %v3220, %v3401
      %v3605 = vadd.f32 %v3221, %v3401
      %v3606 = vadd.f32 %v3222, %v3401
      %v3607 = vadd.f32 %v3223, %v3401
      %v3608 = vadd.f32 %v3224, %v3401
      %v3609 = vadd.f32 %v3225, %v3401
      %v3610 = vadd.f32 %v3226, %v3401
      %v3611 = vadd.f32 %v3227, %v3406
      %v3612 = vadd.f32 %v3228, %v3406
      %v3613 = vadd.f32 %v3229, %v3406
      %v3614 = vadd.f32 %v3230, %v3406
      %v3615 = vadd.f32 %v3231, %v3406
      %v3616 = vadd.f32 %v3232, %v3406
      %v3617 = vadd.f32 %v3233, %v3406
      %v3618 = vadd.f32 %v3234, %v3411
      %v3619 = vadd.f32 %v3235, %v3411
      %v3620 = vadd.f32 %v3236, %v3411
      %v3621 = vadd.f32 %v3237, %v3411
      %v3622 = vadd.f32 %v3238, %v3411
      %v3623 = vadd.f32 %v3239, %v3411
      %v3624 = vadd.f32 %v3240, %v3411
      %v3625 = vadd.f32 %v3241, %v3416
      %v3626 = vadd.f32 %v3242, %v3416
      %v3627 = vadd.f32 %v3243, %v3416
      %v3628 = vadd.f32 %v3244, %v3416
      %v3629 = vadd.f32 %v3245, %v3416
      %v3630 = vadd.f32 %v3246, %v3416
      %v3631 = vadd.f32 %v3247, %v3416
      %v3632 = vadd.f32 %v3248, %v3421
      %v3633 = vadd.f32 %v3249, %v3421
      %v3634 = vadd.f32 %v3250, %v3421
      %v3635 = vadd.f32 %v3251, %v3421
      %v3636 = vadd.f32 %v3252, %v3421
      %v3637 = vadd.f32 %v3253, %v3421
      %v3638 = vadd.f32 %v3254, %v3421
      %v3639 = vadd.f32 %v3255, %v3426
      %v3640 = vadd.f32 %v3256, %v3426
      %v3641 = vadd.f32 %v3257, %v3426
      %v3642 = vadd.f32 %v3258, %v3426
      %v3643 = vadd.f32 %v3259, %v3426
      %v3644 = vadd.f32 %v3260, %v3426
      %v3645 = vadd.f32 %v3261, %v3426
      %v3646 = vadd.f32 %v3262, %v3431
      %v3647 = vadd.f32 %v3263, %v3431
      %v3648 = vadd.f32 %v3264, %v3431
      %v3649 = vadd.f32 %v3265, %v3431
      %v3650 = vadd.f32 %v3266, %v3431
      %v3651 = vadd.f32 %v3267, %v3431
      %v3652 = vadd.f32 %v3268, %v3431
      %v3653 = vadd.f32 %v3269, %v3436
      %v3654 = vadd.f32 %v3270, %v3436
      %v3655 = vadd.f32 %v3271, %v3436
      %v3656 = vadd.f32 %v3272, %v3436
      %v3657 = vadd.f32 %v3273, %v3436
      %v3658 = vadd.f32 %v3274, %v3436
      %v3659 = vadd.f32 %v3275, %v3436
      %v3660 = vadd.f32 %v3276, %v3441
      %v3661 = vadd.f32 %v3277, %v3441
      %v3662 = vadd.f32 %v3278, %v3441
      %v3663 = vadd.f32 %v3279, %v3441
      %v3664 = vadd.f32 %v3280, %v3441
      %v3665 = vadd.f32 %v3281, %v3441
      %v3666 = vadd.f32 %v3282, %v3441
      %v3667 = vld [vmem:[%s293] sm:$0xff]
      %v3668 = vld [vmem:[%s293 + $0x8] sm:$0xff]
      %v3669 = vld [vmem:[%s293 + $0x10] sm:$0xff]
      %v3670 = vld [vmem:[%s293 + $0x18] sm:$0xff]
      %v3671 = vld [vmem:[%s293 + $0x20] sm:$0xff]
      %v3672 = vld [vmem:[%s293 + $0x28] sm:$0xff]
      %v3673 = vld [vmem:[%s293 + $0x30] sm:$0xff]
      %v3674 = vld [vmem:[%s293 + $0x38] sm:$0xff]
      %v3675 = vld [vmem:[%s293 + $0x40] sm:$0xff]
      %v3676 = vld [vmem:[%s293 + $0x48] sm:$0xff]
      %v3677 = vld [vmem:[%s293 + $0x50] sm:$0xff]
      %v3678 = vld [vmem:[%s293 + $0x58] sm:$0xff]
      %v3679 = vld [vmem:[%s293 + $0x60] sm:$0xff]
      %v3680 = vld [vmem:[%s293 + $0x68] sm:$0xff]
      %v3681 = vld [vmem:[%s293 + $0x70] sm:$0xff]
      %v3682 = vld [vmem:[%s293 + $0x78] sm:$0xff]
      %v3683 = vld [vmem:[%s293 + $0x80] sm:$0xff]
      %v3684 = vld [vmem:[%s293 + $0x88] sm:$0xff]
      %v3685 = vld [vmem:[%s293 + $0x90] sm:$0xff]
      %v3686 = vld [vmem:[%s293 + $0x98] sm:$0xff]
      %v3687 = vld [vmem:[%s293 + $0xa0] sm:$0xff]
      %v3688 = vld [vmem:[%s293 + $0xa8] sm:$0xff]
      %v3689 = vld [vmem:[%s293 + $0xb0] sm:$0xff]
      %v3690 = vld [vmem:[%s293 + $0xb8] sm:$0xff]
      %v3691 = vld [vmem:[%s293 + $0xc0] sm:$0xff]
      %v3692 = vld [vmem:[%s293 + $0xc8] sm:$0xff]
      %v3693 = vld [vmem:[%s293 + $0xd0] sm:$0xff]
      %v3694 = vld [vmem:[%s293 + $0xd8] sm:$0xff]
      %v3695 = vld [vmem:[%s293 + $0xe0] sm:$0xff]
      %v3696 = vld [vmem:[%s293 + $0xe8] sm:$0xff]
      %v3697 = vld [vmem:[%s293 + $0xf0] sm:$0xff]
      %v3698 = vld [vmem:[%s293 + $0xf8] sm:$0xff]
      %v3699 = vld [vmem:[%s293 + $0x100] sm:$0xff]
      %v3700 = vld [vmem:[%s293 + $0x108] sm:$0xff]
      %v3701 = vld [vmem:[%s293 + $0x110] sm:$0xff]
      %v3702 = vld [vmem:[%s293 + $0x118] sm:$0xff]
      %v3703 = vld [vmem:[%s293 + $0x120] sm:$0xff]
      %v3704 = vld [vmem:[%s293 + $0x128] sm:$0xff]
      %v3705 = vld [vmem:[%s293 + $0x130] sm:$0xff]
      %v3706 = vld [vmem:[%s293 + $0x138] sm:$0xff]
      %v3707 = vld [vmem:[%s293 + $0x140] sm:$0xff]
      %v3708 = vld [vmem:[%s293 + $0x148] sm:$0xff]
      %v3709 = vld [vmem:[%s293 + $0x150] sm:$0xff]
      %v3710 = vld [vmem:[%s293 + $0x158] sm:$0xff]
      %v3711 = vld [vmem:[%s293 + $0x160] sm:$0xff]
      %v3712 = vld [vmem:[%s293 + $0x168] sm:$0xff]
      %v3713 = vld [vmem:[%s293 + $0x170] sm:$0xff]
      %v3714 = vld [vmem:[%s293 + $0x178] sm:$0xff]
      %v3715 = vld [vmem:[%s293 + $0x180] sm:$0xff]
      %v3716 = vld [vmem:[%s293 + $0x188] sm:$0xff]
      %v3717 = vld [vmem:[%s293 + $0x190] sm:$0xff]
      %v3718 = vld [vmem:[%s293 + $0x198] sm:$0xff]
      %v3719 = vld [vmem:[%s293 + $0x1a0] sm:$0xff]
      %v3720 = vld [vmem:[%s293 + $0x1a8] sm:$0xff]
      %v3721 = vld [vmem:[%s293 + $0x1b0] sm:$0xff]
      %v3722 = vld [vmem:[%s293 + $0x1b8] sm:$0xff]
      %v3723 = vld [vmem:[%s293 + $0x1c0] sm:$0xff]
      %v3724 = vld [vmem:[%s293 + $0x1c8] sm:$0xff]
      %v3725 = vld [vmem:[%s293 + $0x1d0] sm:$0xff]
      %v3726 = vld [vmem:[%s293 + $0x1d8] sm:$0xff]
      %v3727 = vld [vmem:[%s293 + $0x1e0] sm:$0xff]
      %v3728 = vld [vmem:[%s293 + $0x1e8] sm:$0xff]
      %v3729 = vld [vmem:[%s293 + $0x1f0] sm:$0xff]
      %v3730 = vld [vmem:[%s293 + $0x1f8] sm:$0xff]
      %v3731 = vld [vmem:[%s293 + $0x200] sm:$0xff]
      %v3732 = vld [vmem:[%s293 + $0x208] sm:$0xff]
      %v3733 = vld [vmem:[%s293 + $0x210] sm:$0xff]
      %v3734 = vld [vmem:[%s293 + $0x218] sm:$0xff]
      %v3735 = vld [vmem:[%s293 + $0x220] sm:$0xff]
      %v3736 = vld [vmem:[%s293 + $0x228] sm:$0xff]
      %v3737 = vld [vmem:[%s293 + $0x230] sm:$0xff]
      %v3738 = vld [vmem:[%s293 + $0x238] sm:$0xff]
      %v3739 = vld [vmem:[%s293 + $0x240] sm:$0xff]
      %v3740 = vld [vmem:[%s293 + $0x248] sm:$0xff]
      %v3741 = vld [vmem:[%s293 + $0x250] sm:$0xff]
      %v3742 = vld [vmem:[%s293 + $0x258] sm:$0xff]
      %v3743 = vld [vmem:[%s293 + $0x260] sm:$0xff]
      %v3744 = vld [vmem:[%s293 + $0x268] sm:$0xff]
      %v3745 = vld [vmem:[%s293 + $0x270] sm:$0xff]
      %v3746 = vld [vmem:[%s293 + $0x278] sm:$0xff]
      %v3747 = vld [vmem:[%s293 + $0x280] sm:$0xff]
      %v3748 = vld [vmem:[%s293 + $0x288] sm:$0xff]
      %v3749 = vld [vmem:[%s293 + $0x290] sm:$0xff]
      %v3750 = vld [vmem:[%s293 + $0x298] sm:$0xff]
      %v3751 = vld [vmem:[%s293 + $0x2a0] sm:$0xff]
      %v3752 = vld [vmem:[%s293 + $0x2a8] sm:$0xff]
      %v3753 = vld [vmem:[%s293 + $0x2b0] sm:$0xff]
      %v3754 = vld [vmem:[%s293 + $0x2b8] sm:$0xff]
      %v3755 = vld [vmem:[%s293 + $0x2c0] sm:$0xff]
      %v3756 = vld [vmem:[%s293 + $0x2c8] sm:$0xff]
      %v3757 = vld [vmem:[%s293 + $0x2d0] sm:$0xff]
      %v3758 = vld [vmem:[%s293 + $0x2d8] sm:$0xff]
      %v3759 = vld [vmem:[%s293 + $0x2e0] sm:$0xff]
      %v3760 = vld [vmem:[%s293 + $0x2e8] sm:$0xff]
      %v3761 = vld [vmem:[%s293 + $0x2f0] sm:$0xff]
      %v3762 = vld [vmem:[%s293 + $0x2f8] sm:$0xff]
      %v3763 = vld [vmem:[%s293 + $0x300] sm:$0xff]
      %v3764 = vld [vmem:[%s293 + $0x308] sm:$0xff]
      %v3765 = vld [vmem:[%s293 + $0x310] sm:$0xff]
      %v3766 = vld [vmem:[%s293 + $0x318] sm:$0xff]
      %v3767 = vld [vmem:[%s293 + $0x320] sm:$0xff]
      %v3768 = vld [vmem:[%s293 + $0x328] sm:$0xff]
      %v3769 = vld [vmem:[%s293 + $0x330] sm:$0xff]
      %v3770 = vld [vmem:[%s293 + $0x338] sm:$0xff]
      %v3771 = vld [vmem:[%s293 + $0x340] sm:$0xff]
      %v3772 = vld [vmem:[%s293 + $0x348] sm:$0xff]
      %v3773 = vld [vmem:[%s293 + $0x350] sm:$0xff]
      %v3774 = vld [vmem:[%s293 + $0x358] sm:$0xff]
      %v3775 = vld [vmem:[%s293 + $0x360] sm:$0xff]
      %v3776 = vld [vmem:[%s293 + $0x368] sm:$0xff]
      %v3777 = vld [vmem:[%s293 + $0x370] sm:$0xff]
      %v3778 = vld [vmem:[%s293 + $0x378] sm:$0xff]
      %v3779 = vld [vmem:[%s293 + $0x380] sm:$0xff]
      %v3780 = vld [vmem:[%s293 + $0x388] sm:$0xff]
      %v3781 = vld [vmem:[%s293 + $0x390] sm:$0xff]
      %v3782 = vld [vmem:[%s293 + $0x398] sm:$0xff]
      %v3783 = vld [vmem:[%s293 + $0x3a0] sm:$0xff]
      %v3784 = vld [vmem:[%s293 + $0x3a8] sm:$0xff]
      %v3785 = vld [vmem:[%s293 + $0x3b0] sm:$0xff]
      %v3786 = vld [vmem:[%s293 + $0x3b8] sm:$0xff]
      %v3787 = vld [vmem:[%s293 + $0x3c0] sm:$0xff]
      %v3788 = vld [vmem:[%s293 + $0x3c8] sm:$0xff]
      %v3789 = vld [vmem:[%s293 + $0x3d0] sm:$0xff]
      %v3790 = vld [vmem:[%s293 + $0x3d8] sm:$0xff]
      %v3791 = vld [vmem:[%s293 + $0x3e0] sm:$0xff]
      %v3792 = vld [vmem:[%s293 + $0x3e8] sm:$0xff]
      %v3793 = vld [vmem:[%s293 + $0x3f0] sm:$0xff]
      %v3794 = vld [vmem:[%s293 + $0x3f8] sm:$0xff]
      %v3795 = vld [vmem:[%s293 + $0x400] sm:$0xff]
      %v3796 = vld [vmem:[%s293 + $0x408] sm:$0xff]
      %v3797 = vld [vmem:[%s293 + $0x410] sm:$0xff]
      %v3798 = vld [vmem:[%s293 + $0x418] sm:$0xff]
      %v3799 = vld [vmem:[%s293 + $0x420] sm:$0xff]
      %v3800 = vld [vmem:[%s293 + $0x428] sm:$0xff]
      %v3801 = vld [vmem:[%s293 + $0x430] sm:$0xff]
      %v3802 = vld [vmem:[%s293 + $0x438] sm:$0xff]
      %v3803 = vld [vmem:[%s293 + $0x440] sm:$0xff]
      %v3804 = vld [vmem:[%s293 + $0x448] sm:$0xff]
      %v3805 = vld [vmem:[%s293 + $0x450] sm:$0xff]
      %v3806 = vld [vmem:[%s293 + $0x458] sm:$0xff]
      %v3807 = vld [vmem:[%s293 + $0x460] sm:$0xff]
      %v3808 = vld [vmem:[%s293 + $0x468] sm:$0xff]
      %v3809 = vld [vmem:[%s293 + $0x470] sm:$0xff]
      %v3810 = vld [vmem:[%s293 + $0x478] sm:$0xff]
      %v3811 = vld [vmem:[%s293 + $0x480] sm:$0xff]
      %v3812 = vld [vmem:[%s293 + $0x488] sm:$0xff]
      %v3813 = vld [vmem:[%s293 + $0x490] sm:$0xff]
      %v3814 = vld [vmem:[%s293 + $0x498] sm:$0xff]
      %v3815 = vld [vmem:[%s293 + $0x4a0] sm:$0xff]
      %v3816 = vld [vmem:[%s293 + $0x4a8] sm:$0xff]
      %v3817 = vld [vmem:[%s293 + $0x4b0] sm:$0xff]
      %v3818 = vld [vmem:[%s293 + $0x4b8] sm:$0xff]
      %v3819 = vld [vmem:[%s293 + $0x4c0] sm:$0xff]
      %v3820 = vld [vmem:[%s293 + $0x4c8] sm:$0xff]
      %v3821 = vld [vmem:[%s293 + $0x4d0] sm:$0xff]
      %v3822 = vld [vmem:[%s293 + $0x4d8] sm:$0xff]
      %v3823 = vld [vmem:[%s293 + $0x4e0] sm:$0xff]
      %v3824 = vld [vmem:[%s293 + $0x4e8] sm:$0xff]
      %v3825 = vld [vmem:[%s293 + $0x4f0] sm:$0xff]
      %v3826 = vld [vmem:[%s293 + $0x4f8] sm:$0xff]
      %v3827 = vld [vmem:[%s293 + $0x500] sm:$0xff]
      %v3828 = vld [vmem:[%s293 + $0x508] sm:$0xff]
      %v3829 = vld [vmem:[%s293 + $0x510] sm:$0xff]
      %v3830 = vld [vmem:[%s293 + $0x518] sm:$0xff]
      %v3831 = vld [vmem:[%s293 + $0x520] sm:$0xff]
      %v3832 = vld [vmem:[%s293 + $0x528] sm:$0xff]
      %v3833 = vld [vmem:[%s293 + $0x530] sm:$0xff]
      %v3834 = vld [vmem:[%s293 + $0x538] sm:$0xff]
      %v3835 = vld [vmem:[%s293 + $0x540] sm:$0xff]
      %v3836 = vld [vmem:[%s293 + $0x548] sm:$0xff]
      %v3837 = vld [vmem:[%s293 + $0x550] sm:$0xff]
      %v3838 = vld [vmem:[%s293 + $0x558] sm:$0xff]
      %v3839 = vld [vmem:[%s293 + $0x560] sm:$0xff]
      %v3840 = vld [vmem:[%s293 + $0x568] sm:$0xff]
      %v3841 = vld [vmem:[%s293 + $0x570] sm:$0xff]
      %v3842 = vld [vmem:[%s293 + $0x578] sm:$0xff]
      %v3843 = vld [vmem:[%s293 + $0x580] sm:$0xff]
      %v3844 = vld [vmem:[%s293 + $0x588] sm:$0xff]
      %v3845 = vld [vmem:[%s293 + $0x590] sm:$0xff]
      %v3846 = vld [vmem:[%s293 + $0x598] sm:$0xff]
      %v3847 = vld [vmem:[%s293 + $0x5a0] sm:$0xff]
      %v3848 = vld [vmem:[%s293 + $0x5a8] sm:$0xff]
      %v3849 = vld [vmem:[%s293 + $0x5b0] sm:$0xff]
      %v3850 = vld [vmem:[%s293 + $0x5b8] sm:$0xff]
      %v3851 = vld [vmem:[%s293 + $0x5c0] sm:$0xff]
      %v3852 = vld [vmem:[%s293 + $0x5c8] sm:$0xff]
      %v3853 = vld [vmem:[%s293 + $0x5d0] sm:$0xff]
      %v3854 = vld [vmem:[%s293 + $0x5d8] sm:$0xff]
      %v3855 = vld [vmem:[%s293 + $0x5e0] sm:$0xff]
      %v3856 = vld [vmem:[%s293 + $0x5e8] sm:$0xff]
      %v3857 = vld [vmem:[%s293 + $0x5f0] sm:$0xff]
      %v3858 = vld [vmem:[%s293 + $0x5f8] sm:$0xff]
      %v3859 = vld [vmem:[%s293 + $0x600] sm:$0xff]
      %v3860 = vld [vmem:[%s293 + $0x608] sm:$0xff]
      %v3861 = vld [vmem:[%s293 + $0x610] sm:$0xff]
      %v3862 = vld [vmem:[%s293 + $0x618] sm:$0xff]
      %v3863 = vld [vmem:[%s293 + $0x620] sm:$0xff]
      %v3864 = vld [vmem:[%s293 + $0x628] sm:$0xff]
      %v3865 = vld [vmem:[%s293 + $0x630] sm:$0xff]
      %v3866 = vld [vmem:[%s293 + $0x638] sm:$0xff]
      %v3867 = vld [vmem:[%s293 + $0x640] sm:$0xff]
      %v3868 = vld [vmem:[%s293 + $0x648] sm:$0xff]
      %v3869 = vld [vmem:[%s293 + $0x650] sm:$0xff]
      %v3870 = vld [vmem:[%s293 + $0x658] sm:$0xff]
      %v3871 = vld [vmem:[%s293 + $0x660] sm:$0xff]
      %v3872 = vld [vmem:[%s293 + $0x668] sm:$0xff]
      %v3873 = vld [vmem:[%s293 + $0x670] sm:$0xff]
      %v3874 = vld [vmem:[%s293 + $0x678] sm:$0xff]
      %v3875 = vld [vmem:[%s293 + $0x680] sm:$0xff]
      %v3876 = vld [vmem:[%s293 + $0x688] sm:$0xff]
      %v3877 = vld [vmem:[%s293 + $0x690] sm:$0xff]
      %v3878 = vld [vmem:[%s293 + $0x698] sm:$0xff]
      %v3879 = vld [vmem:[%s293 + $0x6a0] sm:$0xff]
      %v3880 = vld [vmem:[%s293 + $0x6a8] sm:$0xff]
      %v3881 = vld [vmem:[%s293 + $0x6b0] sm:$0xff]
      %v3882 = vld [vmem:[%s293 + $0x6b8] sm:$0xff]
      %v3883 = vld [vmem:[%s293 + $0x6c0] sm:$0xff]
      %v3884 = vld [vmem:[%s293 + $0x6c8] sm:$0xff]
      %v3885 = vld [vmem:[%s293 + $0x6d0] sm:$0xff]
      %v3886 = vld [vmem:[%s293 + $0x6d8] sm:$0xff]
      %v3887 = vld [vmem:[%s293 + $0x6e0] sm:$0xff]
      %v3888 = vld [vmem:[%s293 + $0x6e8] sm:$0xff]
      %v3889 = vld [vmem:[%s293 + $0x6f0] sm:$0xff]
      %v3890 = vld [vmem:[%s293 + $0x6f8] sm:$0xff]
      %v3891 = vadd.f32 %v3443, %v3667
      %v3892 = vadd.f32 %v3444, %v3668
      %v3893 = vadd.f32 %v3445, %v3669
      %v3894 = vadd.f32 %v3446, %v3670
      %v3895 = vadd.f32 %v3447, %v3671
      %v3896 = vadd.f32 %v3448, %v3672
      %v3897 = vadd.f32 %v3449, %v3673
      %v3898 = vadd.f32 %v3450, %v3674
      %v3899 = vadd.f32 %v3451, %v3675
      %v3900 = vadd.f32 %v3452, %v3676
      %v3901 = vadd.f32 %v3453, %v3677
      %v3902 = vadd.f32 %v3454, %v3678
      %v3903 = vadd.f32 %v3455, %v3679
      %v3904 = vadd.f32 %v3456, %v3680
      %v3905 = vadd.f32 %v3457, %v3681
      %v3906 = vadd.f32 %v3458, %v3682
      %v3907 = vadd.f32 %v3459, %v3683
      %v3908 = vadd.f32 %v3460, %v3684
      %v3909 = vadd.f32 %v3461, %v3685
      %v3910 = vadd.f32 %v3462, %v3686
      %v3911 = vadd.f32 %v3463, %v3687
      %v3912 = vadd.f32 %v3464, %v3688
      %v3913 = vadd.f32 %v3465, %v3689
      %v3914 = vadd.f32 %v3466, %v3690
      %v3915 = vadd.f32 %v3467, %v3691
      %v3916 = vadd.f32 %v3468, %v3692
      %v3917 = vadd.f32 %v3469, %v3693
      %v3918 = vadd.f32 %v3470, %v3694
      %v3919 = vadd.f32 %v3471, %v3695
      %v3920 = vadd.f32 %v3472, %v3696
      %v3921 = vadd.f32 %v3473, %v3697
      %v3922 = vadd.f32 %v3474, %v3698
      %v3923 = vadd.f32 %v3475, %v3699
      %v3924 = vadd.f32 %v3476, %v3700
      %v3925 = vadd.f32 %v3477, %v3701
      %v3926 = vadd.f32 %v3478, %v3702
      %v3927 = vadd.f32 %v3479, %v3703
      %v3928 = vadd.f32 %v3480, %v3704
      %v3929 = vadd.f32 %v3481, %v3705
      %v3930 = vadd.f32 %v3482, %v3706
      %v3931 = vadd.f32 %v3483, %v3707
      %v3932 = vadd.f32 %v3484, %v3708
      %v3933 = vadd.f32 %v3485, %v3709
      %v3934 = vadd.f32 %v3486, %v3710
      %v3935 = vadd.f32 %v3487, %v3711
      %v3936 = vadd.f32 %v3488, %v3712
      %v3937 = vadd.f32 %v3489, %v3713
      %v3938 = vadd.f32 %v3490, %v3714
      %v3939 = vadd.f32 %v3491, %v3715
      %v3940 = vadd.f32 %v3492, %v3716
      %v3941 = vadd.f32 %v3493, %v3717
      %v3942 = vadd.f32 %v3494, %v3718
      %v3943 = vadd.f32 %v3495, %v3719
      %v3944 = vadd.f32 %v3496, %v3720
      %v3945 = vadd.f32 %v3497, %v3721
      %v3946 = vadd.f32 %v3498, %v3722
      %v3947 = vadd.f32 %v3499, %v3723
      %v3948 = vadd.f32 %v3500, %v3724
      %v3949 = vadd.f32 %v3501, %v3725
      %v3950 = vadd.f32 %v3502, %v3726
      %v3951 = vadd.f32 %v3503, %v3727
      %v3952 = vadd.f32 %v3504, %v3728
      %v3953 = vadd.f32 %v3505, %v3729
      %v3954 = vadd.f32 %v3506, %v3730
      %v3955 = vadd.f32 %v3507, %v3731
      %v3956 = vadd.f32 %v3508, %v3732
      %v3957 = vadd.f32 %v3509, %v3733
      %v3958 = vadd.f32 %v3510, %v3734
      %v3959 = vadd.f32 %v3511, %v3735
      %v3960 = vadd.f32 %v3512, %v3736
      %v3961 = vadd.f32 %v3513, %v3737
      %v3962 = vadd.f32 %v3514, %v3738
      %v3963 = vadd.f32 %v3515, %v3739
      %v3964 = vadd.f32 %v3516, %v3740
      %v3965 = vadd.f32 %v3517, %v3741
      %v3966 = vadd.f32 %v3518, %v3742
      %v3967 = vadd.f32 %v3519, %v3743
      %v3968 = vadd.f32 %v3520, %v3744
      %v3969 = vadd.f32 %v3521, %v3745
      %v3970 = vadd.f32 %v3522, %v3746
      %v3971 = vadd.f32 %v3523, %v3747
      %v3972 = vadd.f32 %v3524, %v3748
      %v3973 = vadd.f32 %v3525, %v3749
      %v3974 = vadd.f32 %v3526, %v3750
      %v3975 = vadd.f32 %v3527, %v3751
      %v3976 = vadd.f32 %v3528, %v3752
      %v3977 = vadd.f32 %v3529, %v3753
      %v3978 = vadd.f32 %v3530, %v3754
      %v3979 = vadd.f32 %v3531, %v3755
      %v3980 = vadd.f32 %v3532, %v3756
      %v3981 = vadd.f32 %v3533, %v3757
      %v3982 = vadd.f32 %v3534, %v3758
      %v3983 = vadd.f32 %v3535, %v3759
      %v3984 = vadd.f32 %v3536, %v3760
      %v3985 = vadd.f32 %v3537, %v3761
      %v3986 = vadd.f32 %v3538, %v3762
      %v3987 = vadd.f32 %v3539, %v3763
      %v3988 = vadd.f32 %v3540, %v3764
      %v3989 = vadd.f32 %v3541, %v3765
      %v3990 = vadd.f32 %v3542, %v3766
      %v3991 = vadd.f32 %v3543, %v3767
      %v3992 = vadd.f32 %v3544, %v3768
      %v3993 = vadd.f32 %v3545, %v3769
      %v3994 = vadd.f32 %v3546, %v3770
      %v3995 = vadd.f32 %v3547, %v3771
      %v3996 = vadd.f32 %v3548, %v3772
      %v3997 = vadd.f32 %v3549, %v3773
      %v3998 = vadd.f32 %v3550, %v3774
      %v3999 = vadd.f32 %v3551, %v3775
      %v4000 = vadd.f32 %v3552, %v3776
      %v4001 = vadd.f32 %v3553, %v3777
      %v4002 = vadd.f32 %v3554, %v3778
      %v4003 = vadd.f32 %v3555, %v3779
      %v4004 = vadd.f32 %v3556, %v3780
      %v4005 = vadd.f32 %v3557, %v3781
      %v4006 = vadd.f32 %v3558, %v3782
      %v4007 = vadd.f32 %v3559, %v3783
      %v4008 = vadd.f32 %v3560, %v3784
      %v4009 = vadd.f32 %v3561, %v3785
      %v4010 = vadd.f32 %v3562, %v3786
      %v4011 = vadd.f32 %v3563, %v3787
      %v4012 = vadd.f32 %v3564, %v3788
      %v4013 = vadd.f32 %v3565, %v3789
      %v4014 = vadd.f32 %v3566, %v3790
      %v4015 = vadd.f32 %v3567, %v3791
      %v4016 = vadd.f32 %v3568, %v3792
      %v4017 = vadd.f32 %v3569, %v3793
      %v4018 = vadd.f32 %v3570, %v3794
      %v4019 = vadd.f32 %v3571, %v3795
      %v4020 = vadd.f32 %v3572, %v3796
      %v4021 = vadd.f32 %v3573, %v3797
      %v4022 = vadd.f32 %v3574, %v3798
      %v4023 = vadd.f32 %v3575, %v3799
      %v4024 = vadd.f32 %v3576, %v3800
      %v4025 = vadd.f32 %v3577, %v3801
      %v4026 = vadd.f32 %v3578, %v3802
      %v4027 = vadd.f32 %v3579, %v3803
      %v4028 = vadd.f32 %v3580, %v3804
      %v4029 = vadd.f32 %v3581, %v3805
      %v4030 = vadd.f32 %v3582, %v3806
      %v4031 = vadd.f32 %v3583, %v3807
      %v4032 = vadd.f32 %v3584, %v3808
      %v4033 = vadd.f32 %v3585, %v3809
      %v4034 = vadd.f32 %v3586, %v3810
      %v4035 = vadd.f32 %v3587, %v3811
      %v4036 = vadd.f32 %v3588, %v3812
      %v4037 = vadd.f32 %v3589, %v3813
      %v4038 = vadd.f32 %v3590, %v3814
      %v4039 = vadd.f32 %v3591, %v3815
      %v4040 = vadd.f32 %v3592, %v3816
      %v4041 = vadd.f32 %v3593, %v3817
      %v4042 = vadd.f32 %v3594, %v3818
      %v4043 = vadd.f32 %v3595, %v3819
      %v4044 = vadd.f32 %v3596, %v3820
      %v4045 = vadd.f32 %v3597, %v3821
      %v4046 = vadd.f32 %v3598, %v3822
      %v4047 = vadd.f32 %v3599, %v3823
      %v4048 = vadd.f32 %v3600, %v3824
      %v4049 = vadd.f32 %v3601, %v3825
      %v4050 = vadd.f32 %v3602, %v3826
      %v4051 = vadd.f32 %v3603, %v3827
      %v4052 = vadd.f32 %v3604, %v3828
      %v4053 = vadd.f32 %v3605, %v3829
      %v4054 = vadd.f32 %v3606, %v3830
      %v4055 = vadd.f32 %v3607, %v3831
      %v4056 = vadd.f32 %v3608, %v3832
      %v4057 = vadd.f32 %v3609, %v3833
      %v4058 = vadd.f32 %v3610, %v3834
      %v4059 = vadd.f32 %v3611, %v3835
      %v4060 = vadd.f32 %v3612, %v3836
      %v4061 = vadd.f32 %v3613, %v3837
      %v4062 = vadd.f32 %v3614, %v3838
      %v4063 = vadd.f32 %v3615, %v3839
      %v4064 = vadd.f32 %v3616, %v3840
      %v4065 = vadd.f32 %v3617, %v3841
      %v4066 = vadd.f32 %v3618, %v3842
      %v4067 = vadd.f32 %v3619, %v3843
      %v4068 = vadd.f32 %v3620, %v3844
      %v4069 = vadd.f32 %v3621, %v3845
      %v4070 = vadd.f32 %v3622, %v3846
      %v4071 = vadd.f32 %v3623, %v3847
      %v4072 = vadd.f32 %v3624, %v3848
      %v4073 = vadd.f32 %v3625, %v3849
      %v4074 = vadd.f32 %v3626, %v3850
      %v4075 = vadd.f32 %v3627, %v3851
      %v4076 = vadd.f32 %v3628, %v3852
      %v4077 = vadd.f32 %v3629, %v3853
      %v4078 = vadd.f32 %v3630, %v3854
      %v4079 = vadd.f32 %v3631, %v3855
      %v4080 = vadd.f32 %v3632, %v3856
      %v4081 = vadd.f32 %v3633, %v3857
      %v4082 = vadd.f32 %v3634, %v3858
      %v4083 = vadd.f32 %v3635, %v3859
      %v4084 = vadd.f32 %v3636, %v3860
      %v4085 = vadd.f32 %v3637, %v3861
      %v4086 = vadd.f32 %v3638, %v3862
      %v4087 = vadd.f32 %v3639, %v3863
      %v4088 = vadd.f32 %v3640, %v3864
      %v4089 = vadd.f32 %v3641, %v3865
      %v4090 = vadd.f32 %v3642, %v3866
      %v4091 = vadd.f32 %v3643, %v3867
      %v4092 = vadd.f32 %v3644, %v3868
      %v4093 = vadd.f32 %v3645, %v3869
      %v4094 = vadd.f32 %v3646, %v3870
      %v4095 = vadd.f32 %v3647, %v3871
      %v4096 = vadd.f32 %v3648, %v3872
      %v4097 = vadd.f32 %v3649, %v3873
      %v4098 = vadd.f32 %v3650, %v3874
      %v4099 = vadd.f32 %v3651, %v3875
      %v4100 = vadd.f32 %v3652, %v3876
      %v4101 = vadd.f32 %v3653, %v3877
      %v4102 = vadd.f32 %v3654, %v3878
      %v4103 = vadd.f32 %v3655, %v3879
      %v4104 = vadd.f32 %v3656, %v3880
      %v4105 = vadd.f32 %v3657, %v3881
      %v4106 = vadd.f32 %v3658, %v3882
      %v4107 = vadd.f32 %v3659, %v3883
      %v4108 = vadd.f32 %v3660, %v3884
      %v4109 = vadd.f32 %v3661, %v3885
      %v4110 = vadd.f32 %v3662, %v3886
      %v4111 = vadd.f32 %v3663, %v3887
      %v4112 = vadd.f32 %v3664, %v3888
      %v4113 = vadd.f32 %v3665, %v3889
      %v4114 = vadd.f32 %v3666, %v3890
      %4115 = vst [vmem:[%s300] sm:$0xff] %v3891
      %4116 = vst [vmem:[%s300 + $0x8] sm:$0xff] %v3892
      %4117 = vst [vmem:[%s300 + $0x10] sm:$0xff] %v3893
      %4118 = vst [vmem:[%s300 + $0x18] sm:$0xff] %v3894
      %4119 = vst [vmem:[%s300 + $0x20] sm:$0xff] %v3895
      %4120 = vst [vmem:[%s300 + $0x28] sm:$0xff] %v3896
      %4121 = vst.msk [vmem:[%s300 + $0x30] sm:$0xff] %vm1591, %v3897
      %4122 = vst [vmem:[%s300 + $0x38] sm:$0xff] %v3898
      %4123 = vst [vmem:[%s300 + $0x40] sm:$0xff] %v3899
      %4124 = vst [vmem:[%s300 + $0x48] sm:$0xff] %v3900
      %4125 = vst [vmem:[%s300 + $0x50] sm:$0xff] %v3901
      %4126 = vst [vmem:[%s300 + $0x58] sm:$0xff] %v3902
      %4127 = vst [vmem:[%s300 + $0x60] sm:$0xff] %v3903
      %4128 = vst.msk [vmem:[%s300 + $0x68] sm:$0xff] %vm1591, %v3904
      %4129 = vst [vmem:[%s300 + $0x70] sm:$0xff] %v3905
      %4130 = vst [vmem:[%s300 + $0x78] sm:$0xff] %v3906
      %4131 = vst [vmem:[%s300 + $0x80] sm:$0xff] %v3907
      %4132 = vst [vmem:[%s300 + $0x88] sm:$0xff] %v3908
      %4133 = vst [vmem:[%s300 + $0x90] sm:$0xff] %v3909
      %4134 = vst [vmem:[%s300 + $0x98] sm:$0xff] %v3910
      %4135 = vst.msk [vmem:[%s300 + $0xa0] sm:$0xff] %vm1591, %v3911
      %4136 = vst [vmem:[%s300 + $0xa8] sm:$0xff] %v3912
      %4137 = vst [vmem:[%s300 + $0xb0] sm:$0xff] %v3913
      %4138 = vst [vmem:[%s300 + $0xb8] sm:$0xff] %v3914
      %4139 = vst [vmem:[%s300 + $0xc0] sm:$0xff] %v3915
      %4140 = vst [vmem:[%s300 + $0xc8] sm:$0xff] %v3916
      %4141 = vst [vmem:[%s300 + $0xd0] sm:$0xff] %v3917
      %4142 = vst.msk [vmem:[%s300 + $0xd8] sm:$0xff] %vm1591, %v3918
      %4143 = vst [vmem:[%s300 + $0xe0] sm:$0xff] %v3919
      %4144 = vst [vmem:[%s300 + $0xe8] sm:$0xff] %v3920
      %4145 = vst [vmem:[%s300 + $0xf0] sm:$0xff] %v3921
      %4146 = vst [vmem:[%s300 + $0xf8] sm:$0xff] %v3922
      %4147 = vst [vmem:[%s300 + $0x100] sm:$0xff] %v3923
      %4148 = vst [vmem:[%s300 + $0x108] sm:$0xff] %v3924
      %4149 = vst.msk [vmem:[%s300 + $0x110] sm:$0xff] %vm1591, %v3925
      %4150 = vst [vmem:[%s300 + $0x118] sm:$0xff] %v3926
      %4151 = vst [vmem:[%s300 + $0x120] sm:$0xff] %v3927
      %4152 = vst [vmem:[%s300 + $0x128] sm:$0xff] %v3928
      %4153 = vst [vmem:[%s300 + $0x130] sm:$0xff] %v3929
      %4154 = vst [vmem:[%s300 + $0x138] sm:$0xff] %v3930
      %4155 = vst [vmem:[%s300 + $0x140] sm:$0xff] %v3931
      %4156 = vst.msk [vmem:[%s300 + $0x148] sm:$0xff] %vm1591, %v3932
      %4157 = vst [vmem:[%s300 + $0x150] sm:$0xff] %v3933
      %4158 = vst [vmem:[%s300 + $0x158] sm:$0xff] %v3934
      %4159 = vst [vmem:[%s300 + $0x160] sm:$0xff] %v3935
      %4160 = vst [vmem:[%s300 + $0x168] sm:$0xff] %v3936
      %4161 = vst [vmem:[%s300 + $0x170] sm:$0xff] %v3937
      %4162 = vst [vmem:[%s300 + $0x178] sm:$0xff] %v3938
      %4163 = vst.msk [vmem:[%s300 + $0x180] sm:$0xff] %vm1591, %v3939
      %4164 = vst [vmem:[%s300 + $0x188] sm:$0xff] %v3940
      %4165 = vst [vmem:[%s300 + $0x190] sm:$0xff] %v3941
      %4166 = vst [vmem:[%s300 + $0x198] sm:$0xff] %v3942
      %4167 = vst [vmem:[%s300 + $0x1a0] sm:$0xff] %v3943
      %4168 = vst [vmem:[%s300 + $0x1a8] sm:$0xff] %v3944
      %4169 = vst [vmem:[%s300 + $0x1b0] sm:$0xff] %v3945
      %4170 = vst.msk [vmem:[%s300 + $0x1b8] sm:$0xff] %vm1591, %v3946
      %4171 = vst [vmem:[%s300 + $0x1c0] sm:$0xff] %v3947
      %4172 = vst [vmem:[%s300 + $0x1c8] sm:$0xff] %v3948
      %4173 = vst [vmem:[%s300 + $0x1d0] sm:$0xff] %v3949
      %4174 = vst [vmem:[%s300 + $0x1d8] sm:$0xff] %v3950
      %4175 = vst [vmem:[%s300 + $0x1e0] sm:$0xff] %v3951
      %4176 = vst [vmem:[%s300 + $0x1e8] sm:$0xff] %v3952
      %4177 = vst.msk [vmem:[%s300 + $0x1f0] sm:$0xff] %vm1591, %v3953
      %4178 = vst [vmem:[%s300 + $0x1f8] sm:$0xff] %v3954
      %4179 = vst [vmem:[%s300 + $0x200] sm:$0xff] %v3955
      %4180 = vst [vmem:[%s300 + $0x208] sm:$0xff] %v3956
      %4181 = vst [vmem:[%s300 + $0x210] sm:$0xff] %v3957
      %4182 = vst [vmem:[%s300 + $0x218] sm:$0xff] %v3958
      %4183 = vst [vmem:[%s300 + $0x220] sm:$0xff] %v3959
      %4184 = vst.msk [vmem:[%s300 + $0x228] sm:$0xff] %vm1591, %v3960
      %4185 = vst [vmem:[%s300 + $0x230] sm:$0xff] %v3961
      %4186 = vst [vmem:[%s300 + $0x238] sm:$0xff] %v3962
      %4187 = vst [vmem:[%s300 + $0x240] sm:$0xff] %v3963
      %4188 = vst [vmem:[%s300 + $0x248] sm:$0xff] %v3964
      %4189 = vst [vmem:[%s300 + $0x250] sm:$0xff] %v3965
      %4190 = vst [vmem:[%s300 + $0x258] sm:$0xff] %v3966
      %4191 = vst.msk [vmem:[%s300 + $0x260] sm:$0xff] %vm1591, %v3967
      %4192 = vst [vmem:[%s300 + $0x268] sm:$0xff] %v3968
      %4193 = vst [vmem:[%s300 + $0x270] sm:$0xff] %v3969
      %4194 = vst [vmem:[%s300 + $0x278] sm:$0xff] %v3970
      %4195 = vst [vmem:[%s300 + $0x280] sm:$0xff] %v3971
      %4196 = vst [vmem:[%s300 + $0x288] sm:$0xff] %v3972
      %4197 = vst [vmem:[%s300 + $0x290] sm:$0xff] %v3973
      %4198 = vst.msk [vmem:[%s300 + $0x298] sm:$0xff] %vm1591, %v3974
      %4199 = vst [vmem:[%s300 + $0x2a0] sm:$0xff] %v3975
      %4200 = vst [vmem:[%s300 + $0x2a8] sm:$0xff] %v3976
      %4201 = vst [vmem:[%s300 + $0x2b0] sm:$0xff] %v3977
      %4202 = vst [vmem:[%s300 + $0x2b8] sm:$0xff] %v3978
      %4203 = vst [vmem:[%s300 + $0x2c0] sm:$0xff] %v3979
      %4204 = vst [vmem:[%s300 + $0x2c8] sm:$0xff] %v3980
      %4205 = vst.msk [vmem:[%s300 + $0x2d0] sm:$0xff] %vm1591, %v3981
      %4206 = vst [vmem:[%s300 + $0x2d8] sm:$0xff] %v3982
      %4207 = vst [vmem:[%s300 + $0x2e0] sm:$0xff] %v3983
      %4208 = vst [vmem:[%s300 + $0x2e8] sm:$0xff] %v3984
      %4209 = vst [vmem:[%s300 + $0x2f0] sm:$0xff] %v3985
      %4210 = vst [vmem:[%s300 + $0x2f8] sm:$0xff] %v3986
      %4211 = vst [vmem:[%s300 + $0x300] sm:$0xff] %v3987
      %4212 = vst.msk [vmem:[%s300 + $0x308] sm:$0xff] %vm1591, %v3988
      %4213 = vst [vmem:[%s300 + $0x310] sm:$0xff] %v3989
      %4214 = vst [vmem:[%s300 + $0x318] sm:$0xff] %v3990
      %4215 = vst [vmem:[%s300 + $0x320] sm:$0xff] %v3991
      %4216 = vst [vmem:[%s300 + $0x328] sm:$0xff] %v3992
      %4217 = vst [vmem:[%s300 + $0x330] sm:$0xff] %v3993
      %4218 = vst [vmem:[%s300 + $0x338] sm:$0xff] %v3994
      %4219 = vst.msk [vmem:[%s300 + $0x340] sm:$0xff] %vm1591, %v3995
      %4220 = vst [vmem:[%s300 + $0x348] sm:$0xff] %v3996
      %4221 = vst [vmem:[%s300 + $0x350] sm:$0xff] %v3997
      %4222 = vst [vmem:[%s300 + $0x358] sm:$0xff] %v3998
      %4223 = vst [vmem:[%s300 + $0x360] sm:$0xff] %v3999
      %4224 = vst [vmem:[%s300 + $0x368] sm:$0xff] %v4000
      %4225 = vst [vmem:[%s300 + $0x370] sm:$0xff] %v4001
      %4226 = vst.msk [vmem:[%s300 + $0x378] sm:$0xff] %vm1591, %v4002
      %4227 = vst [vmem:[%s300 + $0x380] sm:$0xff] %v4003
      %4228 = vst [vmem:[%s300 + $0x388] sm:$0xff] %v4004
      %4229 = vst [vmem:[%s300 + $0x390] sm:$0xff] %v4005
      %4230 = vst [vmem:[%s300 + $0x398] sm:$0xff] %v4006
      %4231 = vst [vmem:[%s300 + $0x3a0] sm:$0xff] %v4007
      %4232 = vst [vmem:[%s300 + $0x3a8] sm:$0xff] %v4008
      %4233 = vst.msk [vmem:[%s300 + $0x3b0] sm:$0xff] %vm1591, %v4009
      %4234 = vst [vmem:[%s300 + $0x3b8] sm:$0xff] %v4010
      %4235 = vst [vmem:[%s300 + $0x3c0] sm:$0xff] %v4011
      %4236 = vst [vmem:[%s300 + $0x3c8] sm:$0xff] %v4012
      %4237 = vst [vmem:[%s300 + $0x3d0] sm:$0xff] %v4013
      %4238 = vst [vmem:[%s300 + $0x3d8] sm:$0xff] %v4014
      %4239 = vst [vmem:[%s300 + $0x3e0] sm:$0xff] %v4015
      %4240 = vst.msk [vmem:[%s300 + $0x3e8] sm:$0xff] %vm1591, %v4016
      %4241 = vst [vmem:[%s300 + $0x3f0] sm:$0xff] %v4017
      %4242 = vst [vmem:[%s300 + $0x3f8] sm:$0xff] %v4018
      %4243 = vst [vmem:[%s300 + $0x400] sm:$0xff] %v4019
      %4244 = vst [vmem:[%s300 + $0x408] sm:$0xff] %v4020
      %4245 = vst [vmem:[%s300 + $0x410] sm:$0xff] %v4021
      %4246 = vst [vmem:[%s300 + $0x418] sm:$0xff] %v4022
      %4247 = vst.msk [vmem:[%s300 + $0x420] sm:$0xff] %vm1591, %v4023
      %4248 = vst [vmem:[%s300 + $0x428] sm:$0xff] %v4024
      %4249 = vst [vmem:[%s300 + $0x430] sm:$0xff] %v4025
      %4250 = vst [vmem:[%s300 + $0x438] sm:$0xff] %v4026
      %4251 = vst [vmem:[%s300 + $0x440] sm:$0xff] %v4027
      %4252 = vst [vmem:[%s300 + $0x448] sm:$0xff] %v4028
      %4253 = vst [vmem:[%s300 + $0x450] sm:$0xff] %v4029
      %4254 = vst.msk [vmem:[%s300 + $0x458] sm:$0xff] %vm1591, %v4030
      %4255 = vst [vmem:[%s300 + $0x460] sm:$0xff] %v4031
      %4256 = vst [vmem:[%s300 + $0x468] sm:$0xff] %v4032
      %4257 = vst [vmem:[%s300 + $0x470] sm:$0xff] %v4033
      %4258 = vst [vmem:[%s300 + $0x478] sm:$0xff] %v4034
      %4259 = vst [vmem:[%s300 + $0x480] sm:$0xff] %v4035
      %4260 = vst [vmem:[%s300 + $0x488] sm:$0xff] %v4036
      %4261 = vst.msk [vmem:[%s300 + $0x490] sm:$0xff] %vm1591, %v4037
      %4262 = vst [vmem:[%s300 + $0x498] sm:$0xff] %v4038
      %4263 = vst [vmem:[%s300 + $0x4a0] sm:$0xff] %v4039
      %4264 = vst [vmem:[%s300 + $0x4a8] sm:$0xff] %v4040
      %4265 = vst [vmem:[%s300 + $0x4b0] sm:$0xff] %v4041
      %4266 = vst [vmem:[%s300 + $0x4b8] sm:$0xff] %v4042
      %4267 = vst [vmem:[%s300 + $0x4c0] sm:$0xff] %v4043
      %4268 = vst.msk [vmem:[%s300 + $0x4c8] sm:$0xff] %vm1591, %v4044
      %4269 = vst [vmem:[%s300 + $0x4d0] sm:$0xff] %v4045
      %4270 = vst [vmem:[%s300 + $0x4d8] sm:$0xff] %v4046
      %4271 = vst [vmem:[%s300 + $0x4e0] sm:$0xff] %v4047
      %4272 = vst [vmem:[%s300 + $0x4e8] sm:$0xff] %v4048
      %4273 = vst [vmem:[%s300 + $0x4f0] sm:$0xff] %v4049
      %4274 = vst [vmem:[%s300 + $0x4f8] sm:$0xff] %v4050
      %4275 = vst.msk [vmem:[%s300 + $0x500] sm:$0xff] %vm1591, %v4051
      %4276 = vst [vmem:[%s300 + $0x508] sm:$0xff] %v4052
      %4277 = vst [vmem:[%s300 + $0x510] sm:$0xff] %v4053
      %4278 = vst [vmem:[%s300 + $0x518] sm:$0xff] %v4054
      %4279 = vst [vmem:[%s300 + $0x520] sm:$0xff] %v4055
      %4280 = vst [vmem:[%s300 + $0x528] sm:$0xff] %v4056
      %4281 = vst [vmem:[%s300 + $0x530] sm:$0xff] %v4057
      %4282 = vst.msk [vmem:[%s300 + $0x538] sm:$0xff] %vm1591, %v4058
      %4283 = vst [vmem:[%s300 + $0x540] sm:$0xff] %v4059
      %4284 = vst [vmem:[%s300 + $0x548] sm:$0xff] %v4060
      %4285 = vst [vmem:[%s300 + $0x550] sm:$0xff] %v4061
      %4286 = vst [vmem:[%s300 + $0x558] sm:$0xff] %v4062
      %4287 = vst [vmem:[%s300 + $0x560] sm:$0xff] %v4063
      %4288 = vst [vmem:[%s300 + $0x568] sm:$0xff] %v4064
      %4289 = vst.msk [vmem:[%s300 + $0x570] sm:$0xff] %vm1591, %v4065
      %4290 = vst [vmem:[%s300 + $0x578] sm:$0xff] %v4066
      %4291 = vst [vmem:[%s300 + $0x580] sm:$0xff] %v4067
      %4292 = vst [vmem:[%s300 + $0x588] sm:$0xff] %v4068
      %4293 = vst [vmem:[%s300 + $0x590] sm:$0xff] %v4069
      %4294 = vst [vmem:[%s300 + $0x598] sm:$0xff] %v4070
      %4295 = vst [vmem:[%s300 + $0x5a0] sm:$0xff] %v4071
      %4296 = vst.msk [vmem:[%s300 + $0x5a8] sm:$0xff] %vm1591, %v4072
      %4297 = vst [vmem:[%s300 + $0x5b0] sm:$0xff] %v4073
      %4298 = vst [vmem:[%s300 + $0x5b8] sm:$0xff] %v4074
      %4299 = vst [vmem:[%s300 + $0x5c0] sm:$0xff] %v4075
      %4300 = vst [vmem:[%s300 + $0x5c8] sm:$0xff] %v4076
      %4301 = vst [vmem:[%s300 + $0x5d0] sm:$0xff] %v4077
      %4302 = vst [vmem:[%s300 + $0x5d8] sm:$0xff] %v4078
      %4303 = vst.msk [vmem:[%s300 + $0x5e0] sm:$0xff] %vm1591, %v4079
      %4304 = vst [vmem:[%s300 + $0x5e8] sm:$0xff] %v4080
      %4305 = vst [vmem:[%s300 + $0x5f0] sm:$0xff] %v4081
      %4306 = vst [vmem:[%s300 + $0x5f8] sm:$0xff] %v4082
      %4307 = vst [vmem:[%s300 + $0x600] sm:$0xff] %v4083
      %4308 = vst [vmem:[%s300 + $0x608] sm:$0xff] %v4084
      %4309 = vst [vmem:[%s300 + $0x610] sm:$0xff] %v4085
      %4310 = vst.msk [vmem:[%s300 + $0x618] sm:$0xff] %vm1591, %v4086
      %4311 = vst [vmem:[%s300 + $0x620] sm:$0xff] %v4087
      %4312 = vst [vmem:[%s300 + $0x628] sm:$0xff] %v4088
      %4313 = vst [vmem:[%s300 + $0x630] sm:$0xff] %v4089
      %4314 = vst [vmem:[%s300 + $0x638] sm:$0xff] %v4090
      %4315 = vst [vmem:[%s300 + $0x640] sm:$0xff] %v4091
      %4316 = vst [vmem:[%s300 + $0x648] sm:$0xff] %v4092
      %4317 = vst.msk [vmem:[%s300 + $0x650] sm:$0xff] %vm1591, %v4093
      %4318 = vst [vmem:[%s300 + $0x658] sm:$0xff] %v4094
      %4319 = vst [vmem:[%s300 + $0x660] sm:$0xff] %v4095
      %4320 = vst [vmem:[%s300 + $0x668] sm:$0xff] %v4096
      %4321 = vst [vmem:[%s300 + $0x670] sm:$0xff] %v4097
      %4322 = vst [vmem:[%s300 + $0x678] sm:$0xff] %v4098
      %4323 = vst [vmem:[%s300 + $0x680] sm:$0xff] %v4099
      %4324 = vst.msk [vmem:[%s300 + $0x688] sm:$0xff] %vm1591, %v4100
      %4325 = vst [vmem:[%s300 + $0x690] sm:$0xff] %v4101
      %4326 = vst [vmem:[%s300 + $0x698] sm:$0xff] %v4102
      %4327 = vst [vmem:[%s300 + $0x6a0] sm:$0xff] %v4103
      %4328 = vst [vmem:[%s300 + $0x6a8] sm:$0xff] %v4104
      %4329 = vst [vmem:[%s300 + $0x6b0] sm:$0xff] %v4105
      %4330 = vst [vmem:[%s300 + $0x6b8] sm:$0xff] %v4106
      %4331 = vst.msk [vmem:[%s300 + $0x6c0] sm:$0xff] %vm1591, %v4107
      %4332 = vst [vmem:[%s300 + $0x6c8] sm:$0xff] %v4108
      %4333 = vst [vmem:[%s300 + $0x6d0] sm:$0xff] %v4109
      %4334 = vst [vmem:[%s300 + $0x6d8] sm:$0xff] %v4110
      %4335 = vst [vmem:[%s300 + $0x6e0] sm:$0xff] %v4111
      %4336 = vst [vmem:[%s300 + $0x6e8] sm:$0xff] %v4112
      %4337 = vst [vmem:[%s300 + $0x6f0] sm:$0xff] %v4113
      %4338 = vst.msk [vmem:[%s300 + $0x6f8] sm:$0xff] %vm1591, %v4114
      %s4339 = smul.u32 32, %s16
      %p4340 = scmp.lt.s32.totalorder %s4339, 127
      %s4341 = scalar_select %p4340, %s4339, 127
      %s4342 = smul.addr %s4341, 7
      %s4343 = smul.addr %s4342, 8
      %s4344 = scalar_lea.vmem %s5, %s4343
      // Predicated region
      $region41: #{tpu_custom_call.1} parent=39 // pred_check
        %p4345 = pneg %p159
      $region42: #{tpu_custom_call.1} parent=39 // pred_check_branch
        %4347 = sbr.rel (%p4345) target = $region44
      $region43: #{tpu_custom_call.1} parent=39 // pred_region
        %s4348 = smul.u32 32, %s16
      $region44: #{tpu_custom_call.1} parent=39 // pred_fallthru
        _
    $region40: #{tpu_custom_call.1} parent=5 // pred_fallthru
      _
    %p4349 = scmp.le.s32.totalorder 2, %s11
    // Predicated region
    $region45: #{tpu_custom_call.1} parent=5 // pred_check
      %p4350 = pneg %p4349
    $region46: #{tpu_custom_call.1} parent=5 // pred_check_branch
      %4352 = sbr.rel (%p4350) target = $region48
    $region47: #{tpu_custom_call.1} parent=5 // pred_region
      %s4353 = ssub.s32 %s11, 2
      // Predicated region
      $region49: #{tpu_custom_call.1} parent=47 // pred_check
        %p4354 = pneg %p165
      $region50: #{tpu_custom_call.1} parent=47 // pred_check_branch
        %4356 = sbr.rel (%p4354) target = $region52
      $region51: #{tpu_custom_call.1} parent=47 // pred_region
        %s4357 = smul.u32 32, %s17
        %p4358 = scmp.lt.s32.totalorder %s4357, 127
        %s4359 = scalar_select %p4358, %s4357, 127
        %s4360 = smul.addr %s4359, 7
        %s4361 = smul.addr %s4360, 8
        %s4362 = scalar_lea.vmem %s5, %s4361
      $region52: #{tpu_custom_call.1} parent=47 // pred_fallthru
        _
    $region48: #{tpu_custom_call.1} parent=5 // pred_fallthru
      _
  $region6: #{tpu_custom_call.1} parent=0 // loop_footer
    %s15 = sadd.s32 1, %s11
  $region7: #{tpu_custom_call.1} parent=0 // loop_footer_branch
    %10 = sbr.rel target = $region3
  $region8: #{tpu_custom_call.1} parent=0 // loop_exit
    _

</llo_original>
